<compile_context>
chip_gen: v7x
topology: tpu7x:2x2x1
jax: 0.10.0
libtpu: 0.0.40
codegen_flags: <defaults>
</compile_context>

<pallas_src>
import functools

import jax
import jax.numpy as jnp
from jax.experimental import pallas as pl
from jax.experimental.pallas import tpu as pltpu


# ------------------------------ kernels ------------------------------------


def _ffn_kernel_resident(x_ref, w1_ref, b1_ref, w2_ref, b2_ref, o_ref, *, ts, n_sub):
    """Weights-resident fast path: whole (padded) hidden dim in one grid step.

    No accumulator scratch: sub-chunk partials are combined in registers /
    compiler-managed VMEM and written straight to o_ref.
    """
    x = x_ref[...]
    acc = None
    for c in range(n_sub):  # static, fully visible to the scheduler
        lo = c * ts
        h = jnp.dot(x, w1_ref[:, lo:lo + ts], preferred_element_type=jnp.float32)
        h = jnp.maximum(h + b1_ref[0:1, lo:lo + ts], 0.0)
        d = jnp.dot(h.astype(w2_ref.dtype), w2_ref[lo:lo + ts, :],
                    preferred_element_type=jnp.float32)
        acc = d if acc is None else acc + d
    o_ref[...] = (acc + b2_ref[0:1, :]).astype(o_ref.dtype)


def _ffn_kernel_chunked(x_ref, w1_ref, b1_ref, w2_ref, b2_ref, o_ref, acc_ref,
                        *, ts, n_sub):
    """Hidden dim split over grid axis 1 (reduction) with an f32 VMEM accumulator."""
    k = pl.program_id(1)

    @pl.when(k == 0)
    def _init():
        acc_ref[...] = jnp.zeros_like(acc_ref)

    x = x_ref[...]
    for c in range(n_sub):
        lo = c * ts
        h = jnp.dot(x, w1_ref[:, lo:lo + ts], preferred_element_type=jnp.float32)
        h = jnp.maximum(h + b1_ref[0:1, lo:lo + ts], 0.0)
        acc_ref[...] += jnp.dot(h.astype(w2_ref.dtype), w2_ref[lo:lo + ts, :],
                                preferred_element_type=jnp.float32)

    @pl.when(k == pl.num_programs(1) - 1)
    def _finalize():
        o_ref[...] = (acc_ref[...] + b2_ref[0:1, :]).astype(o_ref.dtype)


# ------------------------------ tiling logic --------------------------------


def _round_up(n, m):
    return ((n + m - 1) // m) * m


def _tpu_defaults():
    """Generation-aware tuning knobs (row tile, VMEM cap, weight buffering)."""
    kind = ""
    try:
        kind = jax.devices()[0].device_kind.lower()
    except Exception:
        pass
    if "v2" in kind or "v3" in kind:
        return dict(tm=256, vmem_cap=12 << 20, weight_bufs=2, gen="legacy")
    if "v4" in kind:
        return dict(tm=512, vmem_cap=96 << 20, weight_bufs=2, gen="v4")
    if "v5" in kind:
        return dict(tm=256, vmem_cap=100 << 20, weight_bufs=2, gen="v5")
    if "v6" in kind:
        return dict(tm=1024, vmem_cap=96 << 20, weight_bufs=3, gen="v6")
    if "v7" in kind or "tpu7" in kind or "7x" in kind:
        return dict(tm=512, vmem_cap=52 << 20, weight_bufs=2, gen="v7")
    return dict(tm=512, vmem_cap=48 << 20, weight_bufs=2, gen="unknown")


def _fixed_vmem(tm, E, out_itemsize):
    """Per-step VMEM that does not depend on tk."""
    return (2 * tm * E * 2              # x tile (bf16, double-buffered)
            + 2 * tm * E * out_itemsize  # out tile (double-buffered)
            + tm * E * 4                 # f32 accumulator (scratch or carried)
            + tm * 512 * 6               # live fc1 sub-chunk (f32 + bf16 copy)
            + 2 * 8 * E * 4)             # replicated b2


def _shrink_tm(tm, E, out_itemsize, vmem_cap):
    while tm > 256 and _fixed_vmem(tm, E, out_itemsize) > vmem_cap // 2:
        tm //= 2
    return tm


def _row_tiling(M, tm):
    tm = max(16, _round_up(tm, 16))          # bf16 sublane packing: 16-row multiples
    M_pad = _round_up(max(M, 16), 16)
    tm_eff = min(tm, M_pad)
    M_pad = _round_up(M_pad, tm_eff)
    # Megacore: a single token tile leaves one v7x TensorCore idle -> split it
    # (only when each half stays a full-height >=128-row tile).
    if M_pad // tm_eff == 1 and tm_eff >= 256:
        tm_eff = _round_up(tm_eff // 2, 16)
        M_pad = _round_up(M_pad, tm_eff)
    return M_pad, tm_eff


def _hidden_tiling(E, H, tm, out_itemsize, vmem_cap, weight_bufs, tk_max=None):
    """Pick the hidden-chunk width tk from the VMEM budget; pad H to nk * tk.

    If both bf16 weights fit the budget this returns tk == H_pad (nk == 1),
    i.e. the weights stay VMEM-resident across all token tiles.
    """
    headroom = 6 << 20
    avail = vmem_cap - headroom - _fixed_vmem(tm, E, out_itemsize)
    per_lane = weight_bufs * 2 * E * 2 + 2 * 8 * 4   # W1 col + W2 row + b1 lane
    tk_cap = max(128, (max(avail, 0) // per_lane) // 128 * 128)
    if tk_max is not None:
        tk_cap = max(128, min(tk_cap, _round_up(tk_max, 128)))
    H128 = _round_up(H, 128)
    tk_cap = min(tk_cap, H128)
    nk = -(-H128 // tk_cap)                  # number of hidden chunks
    tk = _round_up(-(-H128 // nk), 128)      # lane-aligned chunk width
    H_pad = nk * tk                          # zero-padded hidden units are exact no-ops
    return tk, nk, H_pad


def _pick_ts(tk):
    for c in (512, 256, 128):
        if tk % c == 0:
            return c
    return tk


# ------------------------------ wrapper -------------------------------------


@functools.partial(jax.jit, static_argnames=("tm", "tk_max"))
def feed_forward(x, w1_t, b1, w2_t, b2, *, tm=None, tk_max=None):
    """relu(x @ w1_t + b1) @ w2_t + b2 with x: (..., E).

    w1_t = W1.T with shape (E, H); w2_t = W2.T with shape (H, E). Weights are
    expected (but not required) to already be bf16 (cast once at init).
    """
    orig_shape = x.shape
    out_dtype = x.dtype
    out_itemsize = jnp.dtype(out_dtype).itemsize
    E = orig_shape[-1]
    H = w1_t.shape[1]

    cfg = _tpu_defaults()
    tm_req = tm if tm is not None else cfg["tm"]
    tm_req = _shrink_tm(tm_req, E, out_itemsize, cfg["vmem_cap"])

    x2 = x.reshape(-1, E)
    M = x2.shape[0]
    M_pad, tm_eff = _row_tiling(M, tm_req)
    grid0 = M_pad // tm_eff

    tk, nk, H_pad = _hidden_tiling(E, H, tm_eff, out_itemsize, cfg["vmem_cap"],
                                   cfg["weight_bufs"], tk_max)
    ts = _pick_ts(tk)
    n_sub = tk // ts

    # Operand casts / padding (weight casts are no-ops when caller stores bf16).
    xb = x2.astype(jnp.bfloat16)
    if M_pad != M:
        xb = jnp.pad(xb, ((0, M_pad - M), (0, 0)))
    w1b = w1_t if w1_t.dtype == jnp.bfloat16 else w1_t.astype(jnp.bfloat16)
    w2b = w2_t if w2_t.dtype == jnp.bfloat16 else w2_t.astype(jnp.bfloat16)
    b1f = b1.astype(jnp.float32)
    if H_pad != H:
        w1b = jnp.pad(w1b, ((0, 0), (0, H_pad - H)))
        w2b = jnp.pad(w2b, ((0, H_pad - H), (0, 0)))
        b1f = jnp.pad(b1f, ((0, H_pad - H),))    # relu(0)=0 -> padded units are no-ops
    # Biases replicated to 8 sublanes -> clean full (8,128)-tile blocks.
    b1r = jnp.broadcast_to(b1f.reshape(1, H_pad), (8, H_pad))
    b2r = jnp.broadcast_to(b2.astype(jnp.float32).reshape(1, E), (8, E))

    weight_spec_kwargs = {}
    if cfg["gen"] == "v6" and nk > 1:
        # Deeper buffering hides streamed weight DMAs behind the MXU on v6e.
        weight_spec_kwargs = dict(pipeline_mode=pl.Buffered(3))

    in_specs = [
        pl.BlockSpec((tm_eff, E), lambda i, k: (i, 0)),                    # x tile
        pl.BlockSpec((E, tk), lambda i, k: (0, k), **weight_spec_kwargs),  # W1^T chunk
        pl.BlockSpec((8, tk), lambda i, k: (0, k)),                        # b1 chunk
        pl.BlockSpec((tk, E), lambda i, k: (k, 0), **weight_spec_kwargs),  # W2^T chunk
        pl.BlockSpec((8, E), lambda i, k: (0, 0)),                         # b2 (resident)
    ]
    out_spec = pl.BlockSpec((tm_eff, E), lambda i, k: (i, 0))

    if nk == 1:
        kernel = functools.partial(_ffn_kernel_resident, ts=ts, n_sub=n_sub)
        scratch_shapes = []
    else:
        kernel = functools.partial(_ffn_kernel_chunked, ts=ts, n_sub=n_sub)
        scratch_shapes = [pltpu.VMEM((tm_eff, E), jnp.float32)]

    # Cost estimate: weight bytes counted once when resident, re-streamed
    # (M_pad // tm) times otherwise.
    flops = 4 * M_pad * E * H_pad
    weight_bytes = 2 * E * H_pad * 2
    bytes_accessed = (M_pad * E * 2
                      + M_pad * E * out_itemsize
                      + weight_bytes * (1 if nk == 1 else grid0)
                      + 2 * 8 * (H_pad + E) * 4)
    cost = pl.CostEstimate(flops=flops, transcendentals=0,
                           bytes_accessed=bytes_accessed)

    out = pl.pallas_call(
        kernel,
        out_shape=jax.ShapeDtypeStruct((M_pad, E), out_dtype),
        grid=(grid0, nk),
        in_specs=in_specs,
        out_specs=out_spec,
        scratch_shapes=scratch_shapes,
        compiler_params=pltpu.CompilerParams(
            dimension_semantics=("parallel", "arbitrary"),
            vmem_limit_bytes=cfg["vmem_cap"]),
        cost_estimate=cost,
    )(xb, w1b, b1r, w2b, b2r)

    return out[:M].reshape(orig_shape)


# ------------------------------ init / demo ---------------------------------


def init_params(key, embed_size, hidden_dim):
    """nn.Linear-style init (uniform +-1/sqrt(fan_in)); weights stored
    pre-transposed and pre-cast to bf16 (cast once here, not per call)."""
    k1, k2, k3, k4 = jax.random.split(key, 4)
    bound1 = 1.0 / (embed_size ** 0.5)
    bound2 = 1.0 / (hidden_dim ** 0.5)
    w1_t = jax.random.uniform(k1, (embed_size, hidden_dim), jnp.float32,
                              minval=-bound1, maxval=bound1).astype(jnp.bfloat16)
    b1 = jax.random.uniform(k2, (hidden_dim,), jnp.float32,
                            minval=-bound1, maxval=bound1)
    w2_t = jax.random.uniform(k3, (hidden_dim, embed_size), jnp.float32,
                              minval=-bound2, maxval=bound2).astype(jnp.bfloat16)
    b2 = jax.random.uniform(k4, (embed_size,), jnp.float32,
                            minval=-bound2, maxval=bound2)
    return w1_t, b1, w2_t, b2


if __name__ == "__main__":
    # Module constants from the PyTorch spec; small token count for the test.
    embed_size, hidden_dim = 512, 2048
    batch, seq = 2, 8

    key = jax.random.PRNGKey(0)
    kx, kp = jax.random.split(key)
    x = jax.random.normal(kx, (batch, seq, embed_size), dtype=jnp.float32)
    w1_t, b1, w2_t, b2 = init_params(kp, embed_size, hidden_dim)

    out = feed_forward(x, w1_t, b1, w2_t, b2)
    out = jax.block_until_ready(out)

    # Pure-JAX reference with the same mixed precision
    # (bf16 operands, f32 accumulation, f32 bias/ReLU).
    xf = x.astype(jnp.bfloat16).astype(jnp.float32)
    w1f = w1_t.astype(jnp.float32)
    w2f = w2_t.astype(jnp.float32)
    h = jnp.maximum(xf @ w1f + b1, 0.0)
    ref = h.astype(jnp.bfloat16).astype(jnp.float32) @ w2f + b2

    assert out.shape == x.shape
    max_err = float(jnp.max(jnp.abs(out - ref)))
    assert jnp.allclose(out, ref, atol=2e-2, rtol=2e-2), max_err

    print("KERNEL_OK")
</pallas_src>

<mosaic_0001>
module attributes {stable_mosaic.version = 11 : i64} {
  func.func @_ffn_kernel_resident(%arg0: i32, %arg1: i32, %arg2: memref<16x512xbf16, #tpu.memory_space<vmem>>, %arg3: memref<512x2048xbf16, #tpu.memory_space<vmem>>, %arg4: memref<8x2048xf32, #tpu.memory_space<vmem>>, %arg5: memref<2048x512xbf16, #tpu.memory_space<vmem>>, %arg6: memref<8x512xf32, #tpu.memory_space<vmem>>, %arg7: memref<16x512xf32, #tpu.memory_space<vmem>>) attributes {dimension_semantics = [#tpu.dimension_semantics<parallel>, #tpu.dimension_semantics<arbitrary>], iteration_bounds = array<i64: 1, 1>, scalar_prefetch = 0 : i64, scratch_operands = 0 : i64, tpu.core_type = #tpu.core_type<tc>, window_params = [{transform_indices = @transform_0, window_bounds = array<i64: 16, 512>}, {transform_indices = @transform_1, window_bounds = array<i64: 512, 2048>}, {transform_indices = @transform_2, window_bounds = array<i64: 8, 2048>}, {transform_indices = @transform_3, window_bounds = array<i64: 2048, 512>}, {pipeline_mode = #tpu.pipeline_mode<synchronous>, transform_indices = @transform_4, window_bounds = array<i64: 8, 512>}, {transform_indices = @transform_5, window_bounds = array<i64: 16, 512>}]} {
    %c0 = arith.constant 0 : index
    %c0_0 = arith.constant 0 : index
    %0 = vector.load %arg2[%c0, %c0_0] : memref<16x512xbf16, #tpu.memory_space<vmem>>, vector<16x512xbf16>
    %c0_1 = arith.constant 0 : index
    %c0_2 = arith.constant 0 : index
    %1 = vector.load %arg3[%c0_1, %c0_2] : memref<512x2048xbf16, #tpu.memory_space<vmem>>, vector<512x512xbf16>
    %cst = arith.constant dense<0.000000e+00> : vector<16x512xf32>
    %2 = tpu.matmul %0, %1, %cst {dimension_numbers = #tpu.dot_dimension_numbers<[1], [0], [0], [1], [0, 0, 1, 1], [], []>} : vector<16x512xbf16>, vector<512x512xbf16>, vector<16x512xf32> -> vector<16x512xf32>
    %c0_3 = arith.constant 0 : index
    %c0_4 = arith.constant 0 : index
    %3 = vector.load %arg4[%c0_3, %c0_4] : memref<8x2048xf32, #tpu.memory_space<vmem>>, vector<1x512xf32>
    %4 = vector.broadcast %3 : vector<1x512xf32> to vector<16x512xf32>
    %5 = arith.addf %2, %4 : vector<16x512xf32>
    %cst_5 = arith.constant 0.000000e+00 : f32
    %6 = vector.broadcast %cst_5 : f32 to vector<16x512xf32>
    %7 = arith.maximumf %5, %6 : vector<16x512xf32>
    %8 = arith.truncf %7 : vector<16x512xf32> to vector<16x512xbf16>
    %c0_6 = arith.constant 0 : index
    %c0_7 = arith.constant 0 : index
    %9 = vector.load %arg5[%c0_6, %c0_7] : memref<2048x512xbf16, #tpu.memory_space<vmem>>, vector<512x512xbf16>
    %cst_8 = arith.constant dense<0.000000e+00> : vector<16x512xf32>
    %10 = tpu.matmul %8, %9, %cst_8 {dimension_numbers = #tpu.dot_dimension_numbers<[1], [0], [0], [1], [0, 0, 1, 1], [], []>} : vector<16x512xbf16>, vector<512x512xbf16>, vector<16x512xf32> -> vector<16x512xf32>
    %c0_9 = arith.constant 0 : index
    %c512 = arith.constant 512 : index
    %11 = vector.load %arg3[%c0_9, %c512] : memref<512x2048xbf16, #tpu.memory_space<vmem>>, vector<512x512xbf16>
    %cst_10 = arith.constant dense<0.000000e+00> : vector<16x512xf32>
    %12 = tpu.matmul %0, %11, %cst_10 {dimension_numbers = #tpu.dot_dimension_numbers<[1], [0], [0], [1], [0, 0, 1, 1], [], []>} : vector<16x512xbf16>, vector<512x512xbf16>, vector<16x512xf32> -> vector<16x512xf32>
    %c0_11 = arith.constant 0 : index
    %c512_12 = arith.constant 512 : index
    %13 = vector.load %arg4[%c0_11, %c512_12] : memref<8x2048xf32, #tpu.memory_space<vmem>>, vector<1x512xf32>
    %14 = vector.broadcast %13 : vector<1x512xf32> to vector<16x512xf32>
    %15 = arith.addf %12, %14 : vector<16x512xf32>
    %cst_13 = arith.constant 0.000000e+00 : f32
    %16 = vector.broadcast %cst_13 : f32 to vector<16x512xf32>
    %17 = arith.maximumf %15, %16 : vector<16x512xf32>
    %18 = arith.truncf %17 : vector<16x512xf32> to vector<16x512xbf16>
    %c512_14 = arith.constant 512 : index
    %c0_15 = arith.constant 0 : index
    %19 = vector.load %arg5[%c512_14, %c0_15] : memref<2048x512xbf16, #tpu.memory_space<vmem>>, vector<512x512xbf16>
    %cst_16 = arith.constant dense<0.000000e+00> : vector<16x512xf32>
    %20 = tpu.matmul %18, %19, %cst_16 {dimension_numbers = #tpu.dot_dimension_numbers<[1], [0], [0], [1], [0, 0, 1, 1], [], []>} : vector<16x512xbf16>, vector<512x512xbf16>, vector<16x512xf32> -> vector<16x512xf32>
    %21 = arith.addf %10, %20 : vector<16x512xf32>
    %c0_17 = arith.constant 0 : index
    %c1024 = arith.constant 1024 : index
    %22 = vector.load %arg3[%c0_17, %c1024] : memref<512x2048xbf16, #tpu.memory_space<vmem>>, vector<512x512xbf16>
    %cst_18 = arith.constant dense<0.000000e+00> : vector<16x512xf32>
    %23 = tpu.matmul %0, %22, %cst_18 {dimension_numbers = #tpu.dot_dimension_numbers<[1], [0], [0], [1], [0, 0, 1, 1], [], []>} : vector<16x512xbf16>, vector<512x512xbf16>, vector<16x512xf32> -> vector<16x512xf32>
    %c0_19 = arith.constant 0 : index
    %c1024_20 = arith.constant 1024 : index
    %24 = vector.load %arg4[%c0_19, %c1024_20] : memref<8x2048xf32, #tpu.memory_space<vmem>>, vector<1x512xf32>
    %25 = vector.broadcast %24 : vector<1x512xf32> to vector<16x512xf32>
    %26 = arith.addf %23, %25 : vector<16x512xf32>
    %cst_21 = arith.constant 0.000000e+00 : f32
    %27 = vector.broadcast %cst_21 : f32 to vector<16x512xf32>
    %28 = arith.maximumf %26, %27 : vector<16x512xf32>
    %29 = arith.truncf %28 : vector<16x512xf32> to vector<16x512xbf16>
    %c1024_22 = arith.constant 1024 : index
    %c0_23 = arith.constant 0 : index
    %30 = vector.load %arg5[%c1024_22, %c0_23] : memref<2048x512xbf16, #tpu.memory_space<vmem>>, vector<512x512xbf16>
    %cst_24 = arith.constant dense<0.000000e+00> : vector<16x512xf32>
    %31 = tpu.matmul %29, %30, %cst_24 {dimension_numbers = #tpu.dot_dimension_numbers<[1], [0], [0], [1], [0, 0, 1, 1], [], []>} : vector<16x512xbf16>, vector<512x512xbf16>, vector<16x512xf32> -> vector<16x512xf32>
    %32 = arith.addf %21, %31 : vector<16x512xf32>
    %c0_25 = arith.constant 0 : index
    %c1536 = arith.constant 1536 : index
    %33 = vector.load %arg3[%c0_25, %c1536] : memref<512x2048xbf16, #tpu.memory_space<vmem>>, vector<512x512xbf16>
    %cst_26 = arith.constant dense<0.000000e+00> : vector<16x512xf32>
    %34 = tpu.matmul %0, %33, %cst_26 {dimension_numbers = #tpu.dot_dimension_numbers<[1], [0], [0], [1], [0, 0, 1, 1], [], []>} : vector<16x512xbf16>, vector<512x512xbf16>, vector<16x512xf32> -> vector<16x512xf32>
    %c0_27 = arith.constant 0 : index
    %c1536_28 = arith.constant 1536 : index
    %35 = vector.load %arg4[%c0_27, %c1536_28] : memref<8x2048xf32, #tpu.memory_space<vmem>>, vector<1x512xf32>
    %36 = vector.broadcast %35 : vector<1x512xf32> to vector<16x512xf32>
    %37 = arith.addf %34, %36 : vector<16x512xf32>
    %cst_29 = arith.constant 0.000000e+00 : f32
    %38 = vector.broadcast %cst_29 : f32 to vector<16x512xf32>
    %39 = arith.maximumf %37, %38 : vector<16x512xf32>
    %40 = arith.truncf %39 : vector<16x512xf32> to vector<16x512xbf16>
    %c1536_30 = arith.constant 1536 : index
    %c0_31 = arith.constant 0 : index
    %41 = vector.load %arg5[%c1536_30, %c0_31] : memref<2048x512xbf16, #tpu.memory_space<vmem>>, vector<512x512xbf16>
    %cst_32 = arith.constant dense<0.000000e+00> : vector<16x512xf32>
    %42 = tpu.matmul %40, %41, %cst_32 {dimension_numbers = #tpu.dot_dimension_numbers<[1], [0], [0], [1], [0, 0, 1, 1], [], []>} : vector<16x512xbf16>, vector<512x512xbf16>, vector<16x512xf32> -> vector<16x512xf32>
    %43 = arith.addf %32, %42 : vector<16x512xf32>
    %c0_33 = arith.constant 0 : index
    %c0_34 = arith.constant 0 : index
    %44 = vector.load %arg6[%c0_33, %c0_34] : memref<8x512xf32, #tpu.memory_space<vmem>>, vector<1x512xf32>
    %45 = vector.broadcast %44 : vector<1x512xf32> to vector<16x512xf32>
    %46 = arith.addf %43, %45 : vector<16x512xf32>
    %c0_35 = arith.constant 0 : index
    %c0_36 = arith.constant 0 : index
    %47 = vector.load %arg7[%c0_35, %c0_36] : memref<16x512xf32, #tpu.memory_space<vmem>>, vector<16x512xf32>
    tpu.vector_store %arg7[%c0_35, %c0_36], %46 {strides = array<i32>} : memref<16x512xf32, #tpu.memory_space<vmem>>, vector<16x512xf32>,
    return
  }
  func.func @transform_0(%arg0: i32, %arg1: i32) -> (i32, i32) {
    %c0_i32 = arith.constant 0 : i32
    %c0_i32_0 = arith.constant 0 : i32
    return %arg0, %c0_i32 : i32, i32
  }
  func.func @transform_1(%arg0: i32, %arg1: i32) -> (i32, i32) {
    %c0_i32 = arith.constant 0 : i32
    %c0_i32_0 = arith.constant 0 : i32
    return %c0_i32, %arg1 : i32, i32
  }
  func.func @transform_2(%arg0: i32, %arg1: i32) -> (i32, i32) {
    %c0_i32 = arith.constant 0 : i32
    %c0_i32_0 = arith.constant 0 : i32
    return %c0_i32, %arg1 : i32, i32
  }
  func.func @transform_3(%arg0: i32, %arg1: i32) -> (i32, i32) {
    %c0_i32 = arith.constant 0 : i32
    %c0_i32_0 = arith.constant 0 : i32
    return %arg1, %c0_i32 : i32, i32
  }
  func.func @transform_4(%arg0: i32, %arg1: i32) -> (i32, i32) {
    %c0_i32 = arith.constant 0 : i32
    %c0_i32_0 = arith.constant 0 : i32
    %c0_i32_1 = arith.constant 0 : i32
    return %c0_i32, %c0_i32_0 : i32, i32
  }
  func.func @transform_5(%arg0: i32, %arg1: i32) -> (i32, i32) {
    %c0_i32 = arith.constant 0 : i32
    %c0_i32_0 = arith.constant 0 : i32
    return %arg0, %c0_i32 : i32, i32
  }
}

</mosaic_0001>

<llo_original>
// kernel: feed_forward.1
$region0: #{feed_forward.1}
  #allocation0 [shape = 'u32[]', space=smem, size = 0x4, offset = 0x4, fixed_abs, tag = 'smem constant byte address 0x4 - core index']
  #allocation1 [shape = 'u32[144,128]{1,0:T(1,128)}', space=vmem, size = 0x12000, scoped, tag = 'internal scratch']
  %s0 = inlined_call_operand.vmem [shape: bf16[16,512], index: 0, kind: input, shape index: {}]
  %s1 = inlined_call_operand.hbm [shape: bf16[512,2048], index: 1, kind: input, shape index: {}]
  %s2 = inlined_call_operand.vmem [shape: f32[8,2048], index: 2, kind: input, shape index: {}]
  %s3 = inlined_call_operand.hbm [shape: bf16[2048,512], index: 3, kind: input, shape index: {}]
  %s4 = inlined_call_operand.vmem [shape: f32[8,512], index: 4, kind: input, shape index: {}]
  %s5 = inlined_call_operand.hbm [shape: f32[16,512], index: 5, kind: output, shape index: {}]
  %s6 = sld [smem:[#allocation0]]
  $region38: #{feed_forward.1} parent=0
    _
  %s8 = ssub.s32 1, %s6
  %s9 = scalar_select 0, %s8, %s6
  $region1: #{feed_forward.1} parent=0
    #allocation2 [shape = 'u8[2097152]{0}', space=vmem, size = 0x200000, scoped, tag = 'input window, operand 1, single buffered']
    #allocation3 [shape = 's32[1]{0}', space=sflag, size = 0x4, scoped, tag = 'scoped memory for feed_forward.1']
    #allocation4 [shape = 's32[1]{0}', space=sflag, size = 0x4, scoped, tag = 'scoped memory for feed_forward.1']
    #allocation5 [shape = 'u8[2097152]{0}', space=vmem, size = 0x200000, scoped, tag = 'input window, operand 3, single buffered']
    #allocation6 [shape = 's32[1]{0}', space=sflag, size = 0x4, scoped, tag = 'scoped memory for feed_forward.1']
    #allocation7 [shape = 'u8[32768]{0}', space=vmem, size = 0x8000, scoped, tag = 'output window, operand 0, single buffered']
    %10 = vsyncpa [#allocation3], 0
    %11 = vsyncpa [#allocation6], 0
    %12 = vsyncpa [#allocation4], 0
    // Predicated region
    $region2: #{feed_forward.1} parent=1 // pred_check
      _
    $region3: #{feed_forward.1} parent=1 // pred_check_branch
      %14 = sbr.rel (0) target = $region5
    $region4: #{feed_forward.1} parent=1 // pred_region
      _
    $region5: #{feed_forward.1} parent=1 // pred_fallthru
      _
    // Predicated region
    $region6: #{feed_forward.1} parent=1 // pred_check
      _
    $region7: #{feed_forward.1} parent=1 // pred_check_branch
      %16 = sbr.rel (0) target = $region9
    $region8: #{feed_forward.1} parent=1 // pred_region
      %s18 = ssub.s32 65536, 65536
      %19 = vsyncadd [#allocation3], %s18
      %s20 = sshll.u32 [#allocation2], 4
      %s21 = int_to_ptr.vmem [resolvable:$true] %s20
      %26 = dma.hbm_to_vmem [thread:$0]  %s1, 65536, %s21, [#allocation3], 1024, 1024, 64
    $region9: #{feed_forward.1} parent=1 // pred_fallthru
      _
    // Predicated region
    $region10: #{feed_forward.1} parent=1 // pred_check
      _
    $region11: #{feed_forward.1} parent=1 // pred_check_branch
      %28 = sbr.rel (0) target = $region13
    $region12: #{feed_forward.1} parent=1 // pred_region
      _
    $region13: #{feed_forward.1} parent=1 // pred_fallthru
      _
    // Predicated region
    $region14: #{feed_forward.1} parent=1 // pred_check
      _
    $region15: #{feed_forward.1} parent=1 // pred_check_branch
      %30 = sbr.rel (0) target = $region17
    $region16: #{feed_forward.1} parent=1 // pred_region
      %s32 = ssub.s32 65536, 65536
      %33 = vsyncadd [#allocation6], %s32
      %s34 = sshll.u32 [#allocation5], 4
      %s35 = int_to_ptr.vmem [resolvable:$true] %s34
      %40 = dma.hbm_to_vmem [thread:$0]  %s3, 65536, %s35, [#allocation6], 256, 256, 16
    $region17: #{feed_forward.1} parent=1 // pred_fallthru
      _
    // Predicated region
    $region18: #{feed_forward.1} parent=1 // pred_check
      _
    $region19: #{feed_forward.1} parent=1 // pred_check_branch
      %42 = sbr.rel (0) target = $region21
    $region20: #{feed_forward.1} parent=1 // pred_region
      _
    $region21: #{feed_forward.1} parent=1 // pred_fallthru
      _
    // Predicated region
    $region22: #{feed_forward.1} parent=1 // pred_check
      _
    $region23: #{feed_forward.1} parent=1 // pred_check_branch
      %44 = sbr.rel (0) target = $region25
    $region24: #{feed_forward.1} parent=1 // pred_region
      %45 = dma.done [#allocation3], 65536
    $region25: #{feed_forward.1} parent=1 // pred_fallthru
      _
    // Predicated region
    $region26: #{feed_forward.1} parent=1 // pred_check
      _
    $region27: #{feed_forward.1} parent=1 // pred_check_branch
      %47 = sbr.rel (0) target = $region29
    $region28: #{feed_forward.1} parent=1 // pred_region
      %48 = dma.done [#allocation6], 65536
    $region29: #{feed_forward.1} parent=1 // pred_fallthru
      _
    %v49 = vld [vmem:[%s0] sm:$0xff]
    %v50 = vld [vmem:[%s0 + $0x8] sm:$0xff]
    %v51 = vld [vmem:[%s0 + $0x10] sm:$0xff]
    %v52 = vld [vmem:[%s0 + $0x18] sm:$0xff]
    %v53 = vld [vmem:[#allocation2] sm:$0xff]
    %v54 = vld [vmem:[#allocation2 + $0x8] sm:$0xff]
    %v55 = vld [vmem:[#allocation2 + $0x40] sm:$0xff]
    %v56 = vld [vmem:[#allocation2 + $0x48] sm:$0xff]
    %v57 = vld [vmem:[#allocation2 + $0x80] sm:$0xff]
    %v58 = vld [vmem:[#allocation2 + $0x88] sm:$0xff]
    %v59 = vld [vmem:[#allocation2 + $0xc0] sm:$0xff]
    %v60 = vld [vmem:[#allocation2 + $0xc8] sm:$0xff]
    %v61 = vld [vmem:[#allocation2 + $0x100] sm:$0xff]
    %v62 = vld [vmem:[#allocation2 + $0x108] sm:$0xff]
    %v63 = vld [vmem:[#allocation2 + $0x140] sm:$0xff]
    %v64 = vld [vmem:[#allocation2 + $0x148] sm:$0xff]
    %v65 = vld [vmem:[#allocation2 + $0x180] sm:$0xff]
    %v66 = vld [vmem:[#allocation2 + $0x188] sm:$0xff]
    %v67 = vld [vmem:[#allocation2 + $0x1c0] sm:$0xff]
    %v68 = vld [vmem:[#allocation2 + $0x1c8] sm:$0xff]
    %v69 = vld [vmem:[#allocation2 + $0x200] sm:$0xff]
    %v70 = vld [vmem:[#allocation2 + $0x208] sm:$0xff]
    %v71 = vld [vmem:[#allocation2 + $0x240] sm:$0xff]
    %v72 = vld [vmem:[#allocation2 + $0x248] sm:$0xff]
    %v73 = vld [vmem:[#allocation2 + $0x280] sm:$0xff]
    %v74 = vld [vmem:[#allocation2 + $0x288] sm:$0xff]
    %v75 = vld [vmem:[#allocation2 + $0x2c0] sm:$0xff]
    %v76 = vld [vmem:[#allocation2 + $0x2c8] sm:$0xff]
    %v77 = vld [vmem:[#allocation2 + $0x300] sm:$0xff]
    %v78 = vld [vmem:[#allocation2 + $0x308] sm:$0xff]
    %v79 = vld [vmem:[#allocation2 + $0x340] sm:$0xff]
    %v80 = vld [vmem:[#allocation2 + $0x348] sm:$0xff]
    %v81 = vld [vmem:[#allocation2 + $0x380] sm:$0xff]
    %v82 = vld [vmem:[#allocation2 + $0x388] sm:$0xff]
    %v83 = vld [vmem:[#allocation2 + $0x3c0] sm:$0xff]
    %v84 = vld [vmem:[#allocation2 + $0x3c8] sm:$0xff]
    %v85 = vld [vmem:[#allocation2 + $0x400] sm:$0xff]
    %v86 = vld [vmem:[#allocation2 + $0x408] sm:$0xff]
    %v87 = vld [vmem:[#allocation2 + $0x440] sm:$0xff]
    %v88 = vld [vmem:[#allocation2 + $0x448] sm:$0xff]
    %v89 = vld [vmem:[#allocation2 + $0x480] sm:$0xff]
    %v90 = vld [vmem:[#allocation2 + $0x488] sm:$0xff]
    %v91 = vld [vmem:[#allocation2 + $0x4c0] sm:$0xff]
    %v92 = vld [vmem:[#allocation2 + $0x4c8] sm:$0xff]
    %v93 = vld [vmem:[#allocation2 + $0x500] sm:$0xff]
    %v94 = vld [vmem:[#allocation2 + $0x508] sm:$0xff]
    %v95 = vld [vmem:[#allocation2 + $0x540] sm:$0xff]
    %v96 = vld [vmem:[#allocation2 + $0x548] sm:$0xff]
    %v97 = vld [vmem:[#allocation2 + $0x580] sm:$0xff]
    %v98 = vld [vmem:[#allocation2 + $0x588] sm:$0xff]
    %v99 = vld [vmem:[#allocation2 + $0x5c0] sm:$0xff]
    %v100 = vld [vmem:[#allocation2 + $0x5c8] sm:$0xff]
    %v101 = vld [vmem:[#allocation2 + $0x600] sm:$0xff]
    %v102 = vld [vmem:[#allocation2 + $0x608] sm:$0xff]
    %v103 = vld [vmem:[#allocation2 + $0x640] sm:$0xff]
    %v104 = vld [vmem:[#allocation2 + $0x648] sm:$0xff]
    %v105 = vld [vmem:[#allocation2 + $0x680] sm:$0xff]
    %v106 = vld [vmem:[#allocation2 + $0x688] sm:$0xff]
    %v107 = vld [vmem:[#allocation2 + $0x6c0] sm:$0xff]
    %v108 = vld [vmem:[#allocation2 + $0x6c8] sm:$0xff]
    %v109 = vld [vmem:[#allocation2 + $0x700] sm:$0xff]
    %v110 = vld [vmem:[#allocation2 + $0x708] sm:$0xff]
    %v111 = vld [vmem:[#allocation2 + $0x740] sm:$0xff]
    %v112 = vld [vmem:[#allocation2 + $0x748] sm:$0xff]
    %v113 = vld [vmem:[#allocation2 + $0x780] sm:$0xff]
    %v114 = vld [vmem:[#allocation2 + $0x788] sm:$0xff]
    %v115 = vld [vmem:[#allocation2 + $0x7c0] sm:$0xff]
    %v116 = vld [vmem:[#allocation2 + $0x7c8] sm:$0xff]
    %v117 = vld [vmem:[#allocation2 + $0x800] sm:$0xff]
    %v118 = vld [vmem:[#allocation2 + $0x808] sm:$0xff]
    %v119 = vld [vmem:[#allocation2 + $0x840] sm:$0xff]
    %v120 = vld [vmem:[#allocation2 + $0x848] sm:$0xff]
    %v121 = vld [vmem:[#allocation2 + $0x880] sm:$0xff]
    %v122 = vld [vmem:[#allocation2 + $0x888] sm:$0xff]
    %v123 = vld [vmem:[#allocation2 + $0x8c0] sm:$0xff]
    %v124 = vld [vmem:[#allocation2 + $0x8c8] sm:$0xff]
    %v125 = vld [vmem:[#allocation2 + $0x900] sm:$0xff]
    %v126 = vld [vmem:[#allocation2 + $0x908] sm:$0xff]
    %v127 = vld [vmem:[#allocation2 + $0x940] sm:$0xff]
    %v128 = vld [vmem:[#allocation2 + $0x948] sm:$0xff]
    %v129 = vld [vmem:[#allocation2 + $0x980] sm:$0xff]
    %v130 = vld [vmem:[#allocation2 + $0x988] sm:$0xff]
    %v131 = vld [vmem:[#allocation2 + $0x9c0] sm:$0xff]
    %v132 = vld [vmem:[#allocation2 + $0x9c8] sm:$0xff]
    %v133 = vld [vmem:[#allocation2 + $0xa00] sm:$0xff]
    %v134 = vld [vmem:[#allocation2 + $0xa08] sm:$0xff]
    %v135 = vld [vmem:[#allocation2 + $0xa40] sm:$0xff]
    %v136 = vld [vmem:[#allocation2 + $0xa48] sm:$0xff]
    %v137 = vld [vmem:[#allocation2 + $0xa80] sm:$0xff]
    %v138 = vld [vmem:[#allocation2 + $0xa88] sm:$0xff]
    %v139 = vld [vmem:[#allocation2 + $0xac0] sm:$0xff]
    %v140 = vld [vmem:[#allocation2 + $0xac8] sm:$0xff]
    %v141 = vld [vmem:[#allocation2 + $0xb00] sm:$0xff]
    %v142 = vld [vmem:[#allocation2 + $0xb08] sm:$0xff]
    %v143 = vld [vmem:[#allocation2 + $0xb40] sm:$0xff]
    %v144 = vld [vmem:[#allocation2 + $0xb48] sm:$0xff]
    %v145 = vld [vmem:[#allocation2 + $0xb80] sm:$0xff]
    %v146 = vld [vmem:[#allocation2 + $0xb88] sm:$0xff]
    %v147 = vld [vmem:[#allocation2 + $0xbc0] sm:$0xff]
    %v148 = vld [vmem:[#allocation2 + $0xbc8] sm:$0xff]
    %v149 = vld [vmem:[#allocation2 + $0xc00] sm:$0xff]
    %v150 = vld [vmem:[#allocation2 + $0xc08] sm:$0xff]
    %v151 = vld [vmem:[#allocation2 + $0xc40] sm:$0xff]
    %v152 = vld [vmem:[#allocation2 + $0xc48] sm:$0xff]
    %v153 = vld [vmem:[#allocation2 + $0xc80] sm:$0xff]
    %v154 = vld [vmem:[#allocation2 + $0xc88] sm:$0xff]
    %v155 = vld [vmem:[#allocation2 + $0xcc0] sm:$0xff]
    %v156 = vld [vmem:[#allocation2 + $0xcc8] sm:$0xff]
    %v157 = vld [vmem:[#allocation2 + $0xd00] sm:$0xff]
    %v158 = vld [vmem:[#allocation2 + $0xd08] sm:$0xff]
    %v159 = vld [vmem:[#allocation2 + $0xd40] sm:$0xff]
    %v160 = vld [vmem:[#allocation2 + $0xd48] sm:$0xff]
    %v161 = vld [vmem:[#allocation2 + $0xd80] sm:$0xff]
    %v162 = vld [vmem:[#allocation2 + $0xd88] sm:$0xff]
    %v163 = vld [vmem:[#allocation2 + $0xdc0] sm:$0xff]
    %v164 = vld [vmem:[#allocation2 + $0xdc8] sm:$0xff]
    %v165 = vld [vmem:[#allocation2 + $0xe00] sm:$0xff]
    %v166 = vld [vmem:[#allocation2 + $0xe08] sm:$0xff]
    %v167 = vld [vmem:[#allocation2 + $0xe40] sm:$0xff]
    %v168 = vld [vmem:[#allocation2 + $0xe48] sm:$0xff]
    %v169 = vld [vmem:[#allocation2 + $0xe80] sm:$0xff]
    %v170 = vld [vmem:[#allocation2 + $0xe88] sm:$0xff]
    %v171 = vld [vmem:[#allocation2 + $0xec0] sm:$0xff]
    %v172 = vld [vmem:[#allocation2 + $0xec8] sm:$0xff]
    %v173 = vld [vmem:[#allocation2 + $0xf00] sm:$0xff]
    %v174 = vld [vmem:[#allocation2 + $0xf08] sm:$0xff]
    %v175 = vld [vmem:[#allocation2 + $0xf40] sm:$0xff]
    %v176 = vld [vmem:[#allocation2 + $0xf48] sm:$0xff]
    %v177 = vld [vmem:[#allocation2 + $0xf80] sm:$0xff]
    %v178 = vld [vmem:[#allocation2 + $0xf88] sm:$0xff]
    %v179 = vld [vmem:[#allocation2 + $0xfc0] sm:$0xff]
    %v180 = vld [vmem:[#allocation2 + $0xfc8] sm:$0xff]
    %v181 = vld [vmem:[%s2] ss:$8 sm:$0xf]
    %v183 = vlaneseq
    %v184 = vshrl.u32 %v183, 7
    %v185 = vsub.s32 0, %v184
    %v186 = vrot.slane %v181, %v185
    %v187 = vlaneseq
    %v188 = vshrl.u32 %v187, 7
    %v189 = vsub.s32 1, %v188
    %v190 = vrot.slane %v181, %v189
    %v191 = vlaneseq
    %v192 = vshrl.u32 %v191, 7
    %v193 = vsub.s32 2, %v192
    %v194 = vrot.slane %v181, %v193
    %v195 = vlaneseq
    %v196 = vshrl.u32 %v195, 7
    %v197 = vsub.s32 3, %v196
    %v198 = vrot.slane %v181, %v197
    %v207 = vunpack.c.l.b16 %v49
    %v208 = vunpack.c.h.b16 %v49
    %v209 = vunpack.c.l.b16 %v50
    %v210 = vunpack.c.h.b16 %v50
    %v211 = vunpack.c.l.b16 %v51
    %v212 = vunpack.c.h.b16 %v51
    %v213 = vunpack.c.l.b16 %v52
    %v214 = vunpack.c.h.b16 %v52
    %v215 = vpack.c.b16 %v211, %v207
    %v216 = vpack.c.b16 %v212, %v208
    %v217 = vpack.c.b16 %v213, %v209
    %v218 = vpack.c.b16 %v214, %v210
    %v351 = vunpack.c.l.b16 %v53
    %v352 = vunpack.c.h.b16 %v53
    %v353 = vunpack.c.l.b16 %v54
    %v354 = vunpack.c.h.b16 %v54
    %v355 = vunpack.c.l.b16 %v55
    %v356 = vunpack.c.h.b16 %v55
    %v357 = vunpack.c.l.b16 %v56
    %v358 = vunpack.c.h.b16 %v56
    %v359 = vunpack.c.l.b16 %v57
    %v360 = vunpack.c.h.b16 %v57
    %v361 = vunpack.c.l.b16 %v58
    %v362 = vunpack.c.h.b16 %v58
    %v363 = vunpack.c.l.b16 %v59
    %v364 = vunpack.c.h.b16 %v59
    %v365 = vunpack.c.l.b16 %v60
    %v366 = vunpack.c.h.b16 %v60
    %v367 = vunpack.c.l.b16 %v61
    %v368 = vunpack.c.h.b16 %v61
    %v369 = vunpack.c.l.b16 %v62
    %v370 = vunpack.c.h.b16 %v62
    %v371 = vunpack.c.l.b16 %v63
    %v372 = vunpack.c.h.b16 %v63
    %v373 = vunpack.c.l.b16 %v64
    %v374 = vunpack.c.h.b16 %v64
    %v375 = vunpack.c.l.b16 %v65
    %v376 = vunpack.c.h.b16 %v65
    %v377 = vunpack.c.l.b16 %v66
    %v378 = vunpack.c.h.b16 %v66
    %v379 = vunpack.c.l.b16 %v67
    %v380 = vunpack.c.h.b16 %v67
    %v381 = vunpack.c.l.b16 %v68
    %v382 = vunpack.c.h.b16 %v68
    %v383 = vunpack.c.l.b16 %v69
    %v384 = vunpack.c.h.b16 %v69
    %v385 = vunpack.c.l.b16 %v70
    %v386 = vunpack.c.h.b16 %v70
    %v387 = vunpack.c.l.b16 %v71
    %v388 = vunpack.c.h.b16 %v71
    %v389 = vunpack.c.l.b16 %v72
    %v390 = vunpack.c.h.b16 %v72
    %v391 = vunpack.c.l.b16 %v73
    %v392 = vunpack.c.h.b16 %v73
    %v393 = vunpack.c.l.b16 %v74
    %v394 = vunpack.c.h.b16 %v74
    %v395 = vunpack.c.l.b16 %v75
    %v396 = vunpack.c.h.b16 %v75
    %v397 = vunpack.c.l.b16 %v76
    %v398 = vunpack.c.h.b16 %v76
    %v399 = vunpack.c.l.b16 %v77
    %v400 = vunpack.c.h.b16 %v77
    %v401 = vunpack.c.l.b16 %v78
    %v402 = vunpack.c.h.b16 %v78
    %v403 = vunpack.c.l.b16 %v79
    %v404 = vunpack.c.h.b16 %v79
    %v405 = vunpack.c.l.b16 %v80
    %v406 = vunpack.c.h.b16 %v80
    %v407 = vunpack.c.l.b16 %v81
    %v408 = vunpack.c.h.b16 %v81
    %v409 = vunpack.c.l.b16 %v82
    %v410 = vunpack.c.h.b16 %v82
    %v411 = vunpack.c.l.b16 %v83
    %v412 = vunpack.c.h.b16 %v83
    %v413 = vunpack.c.l.b16 %v84
    %v414 = vunpack.c.h.b16 %v84
    %v415 = vunpack.c.l.b16 %v85
    %v416 = vunpack.c.h.b16 %v85
    %v417 = vunpack.c.l.b16 %v86
    %v418 = vunpack.c.h.b16 %v86
    %v419 = vunpack.c.l.b16 %v87
    %v420 = vunpack.c.h.b16 %v87
    %v421 = vunpack.c.l.b16 %v88
    %v422 = vunpack.c.h.b16 %v88
    %v423 = vunpack.c.l.b16 %v89
    %v424 = vunpack.c.h.b16 %v89
    %v425 = vunpack.c.l.b16 %v90
    %v426 = vunpack.c.h.b16 %v90
    %v427 = vunpack.c.l.b16 %v91
    %v428 = vunpack.c.h.b16 %v91
    %v429 = vunpack.c.l.b16 %v92
    %v430 = vunpack.c.h.b16 %v92
    %v431 = vunpack.c.l.b16 %v93
    %v432 = vunpack.c.h.b16 %v93
    %v433 = vunpack.c.l.b16 %v94
    %v434 = vunpack.c.h.b16 %v94
    %v435 = vunpack.c.l.b16 %v95
    %v436 = vunpack.c.h.b16 %v95
    %v437 = vunpack.c.l.b16 %v96
    %v438 = vunpack.c.h.b16 %v96
    %v439 = vunpack.c.l.b16 %v97
    %v440 = vunpack.c.h.b16 %v97
    %v441 = vunpack.c.l.b16 %v98
    %v442 = vunpack.c.h.b16 %v98
    %v443 = vunpack.c.l.b16 %v99
    %v444 = vunpack.c.h.b16 %v99
    %v445 = vunpack.c.l.b16 %v100
    %v446 = vunpack.c.h.b16 %v100
    %v447 = vunpack.c.l.b16 %v101
    %v448 = vunpack.c.h.b16 %v101
    %v449 = vunpack.c.l.b16 %v102
    %v450 = vunpack.c.h.b16 %v102
    %v451 = vunpack.c.l.b16 %v103
    %v452 = vunpack.c.h.b16 %v103
    %v453 = vunpack.c.l.b16 %v104
    %v454 = vunpack.c.h.b16 %v104
    %v455 = vunpack.c.l.b16 %v105
    %v456 = vunpack.c.h.b16 %v105
    %v457 = vunpack.c.l.b16 %v106
    %v458 = vunpack.c.h.b16 %v106
    %v459 = vunpack.c.l.b16 %v107
    %v460 = vunpack.c.h.b16 %v107
    %v461 = vunpack.c.l.b16 %v108
    %v462 = vunpack.c.h.b16 %v108
    %v463 = vunpack.c.l.b16 %v109
    %v464 = vunpack.c.h.b16 %v109
    %v465 = vunpack.c.l.b16 %v110
    %v466 = vunpack.c.h.b16 %v110
    %v467 = vunpack.c.l.b16 %v111
    %v468 = vunpack.c.h.b16 %v111
    %v469 = vunpack.c.l.b16 %v112
    %v470 = vunpack.c.h.b16 %v112
    %v471 = vunpack.c.l.b16 %v113
    %v472 = vunpack.c.h.b16 %v113
    %v473 = vunpack.c.l.b16 %v114
    %v474 = vunpack.c.h.b16 %v114
    %v475 = vunpack.c.l.b16 %v115
    %v476 = vunpack.c.h.b16 %v115
    %v477 = vunpack.c.l.b16 %v116
    %v478 = vunpack.c.h.b16 %v116
    %v479 = vunpack.c.l.b16 %v117
    %v480 = vunpack.c.h.b16 %v117
    %v481 = vunpack.c.l.b16 %v118
    %v482 = vunpack.c.h.b16 %v118
    %v483 = vunpack.c.l.b16 %v119
    %v484 = vunpack.c.h.b16 %v119
    %v485 = vunpack.c.l.b16 %v120
    %v486 = vunpack.c.h.b16 %v120
    %v487 = vunpack.c.l.b16 %v121
    %v488 = vunpack.c.h.b16 %v121
    %v489 = vunpack.c.l.b16 %v122
    %v490 = vunpack.c.h.b16 %v122
    %v491 = vunpack.c.l.b16 %v123
    %v492 = vunpack.c.h.b16 %v123
    %v493 = vunpack.c.l.b16 %v124
    %v494 = vunpack.c.h.b16 %v124
    %v495 = vunpack.c.l.b16 %v125
    %v496 = vunpack.c.h.b16 %v125
    %v497 = vunpack.c.l.b16 %v126
    %v498 = vunpack.c.h.b16 %v126
    %v499 = vunpack.c.l.b16 %v127
    %v500 = vunpack.c.h.b16 %v127
    %v501 = vunpack.c.l.b16 %v128
    %v502 = vunpack.c.h.b16 %v128
    %v503 = vunpack.c.l.b16 %v129
    %v504 = vunpack.c.h.b16 %v129
    %v505 = vunpack.c.l.b16 %v130
    %v506 = vunpack.c.h.b16 %v130
    %v507 = vunpack.c.l.b16 %v131
    %v508 = vunpack.c.h.b16 %v131
    %v509 = vunpack.c.l.b16 %v132
    %v510 = vunpack.c.h.b16 %v132
    %v511 = vunpack.c.l.b16 %v133
    %v512 = vunpack.c.h.b16 %v133
    %v513 = vunpack.c.l.b16 %v134
    %v514 = vunpack.c.h.b16 %v134
    %v515 = vunpack.c.l.b16 %v135
    %v516 = vunpack.c.h.b16 %v135
    %v517 = vunpack.c.l.b16 %v136
    %v518 = vunpack.c.h.b16 %v136
    %v519 = vunpack.c.l.b16 %v137
    %v520 = vunpack.c.h.b16 %v137
    %v521 = vunpack.c.l.b16 %v138
    %v522 = vunpack.c.h.b16 %v138
    %v523 = vunpack.c.l.b16 %v139
    %v524 = vunpack.c.h.b16 %v139
    %v525 = vunpack.c.l.b16 %v140
    %v526 = vunpack.c.h.b16 %v140
    %v527 = vunpack.c.l.b16 %v141
    %v528 = vunpack.c.h.b16 %v141
    %v529 = vunpack.c.l.b16 %v142
    %v530 = vunpack.c.h.b16 %v142
    %v531 = vunpack.c.l.b16 %v143
    %v532 = vunpack.c.h.b16 %v143
    %v533 = vunpack.c.l.b16 %v144
    %v534 = vunpack.c.h.b16 %v144
    %v535 = vunpack.c.l.b16 %v145
    %v536 = vunpack.c.h.b16 %v145
    %v537 = vunpack.c.l.b16 %v146
    %v538 = vunpack.c.h.b16 %v146
    %v539 = vunpack.c.l.b16 %v147
    %v540 = vunpack.c.h.b16 %v147
    %v541 = vunpack.c.l.b16 %v148
    %v542 = vunpack.c.h.b16 %v148
    %v543 = vunpack.c.l.b16 %v149
    %v544 = vunpack.c.h.b16 %v149
    %v545 = vunpack.c.l.b16 %v150
    %v546 = vunpack.c.h.b16 %v150
    %v547 = vunpack.c.l.b16 %v151
    %v548 = vunpack.c.h.b16 %v151
    %v549 = vunpack.c.l.b16 %v152
    %v550 = vunpack.c.h.b16 %v152
    %v551 = vunpack.c.l.b16 %v153
    %v552 = vunpack.c.h.b16 %v153
    %v553 = vunpack.c.l.b16 %v154
    %v554 = vunpack.c.h.b16 %v154
    %v555 = vunpack.c.l.b16 %v155
    %v556 = vunpack.c.h.b16 %v155
    %v557 = vunpack.c.l.b16 %v156
    %v558 = vunpack.c.h.b16 %v156
    %v559 = vunpack.c.l.b16 %v157
    %v560 = vunpack.c.h.b16 %v157
    %v561 = vunpack.c.l.b16 %v158
    %v562 = vunpack.c.h.b16 %v158
    %v563 = vunpack.c.l.b16 %v159
    %v564 = vunpack.c.h.b16 %v159
    %v565 = vunpack.c.l.b16 %v160
    %v566 = vunpack.c.h.b16 %v160
    %v567 = vunpack.c.l.b16 %v161
    %v568 = vunpack.c.h.b16 %v161
    %v569 = vunpack.c.l.b16 %v162
    %v570 = vunpack.c.h.b16 %v162
    %v571 = vunpack.c.l.b16 %v163
    %v572 = vunpack.c.h.b16 %v163
    %v573 = vunpack.c.l.b16 %v164
    %v574 = vunpack.c.h.b16 %v164
    %v575 = vunpack.c.l.b16 %v165
    %v576 = vunpack.c.h.b16 %v165
    %v577 = vunpack.c.l.b16 %v166
    %v578 = vunpack.c.h.b16 %v166
    %v579 = vunpack.c.l.b16 %v167
    %v580 = vunpack.c.h.b16 %v167
    %v581 = vunpack.c.l.b16 %v168
    %v582 = vunpack.c.h.b16 %v168
    %v583 = vunpack.c.l.b16 %v169
    %v584 = vunpack.c.h.b16 %v169
    %v585 = vunpack.c.l.b16 %v170
    %v586 = vunpack.c.h.b16 %v170
    %v587 = vunpack.c.l.b16 %v171
    %v588 = vunpack.c.h.b16 %v171
    %v589 = vunpack.c.l.b16 %v172
    %v590 = vunpack.c.h.b16 %v172
    %v591 = vunpack.c.l.b16 %v173
    %v592 = vunpack.c.h.b16 %v173
    %v593 = vunpack.c.l.b16 %v174
    %v594 = vunpack.c.h.b16 %v174
    %v595 = vunpack.c.l.b16 %v175
    %v596 = vunpack.c.h.b16 %v175
    %v597 = vunpack.c.l.b16 %v176
    %v598 = vunpack.c.h.b16 %v176
    %v599 = vunpack.c.l.b16 %v177
    %v600 = vunpack.c.h.b16 %v177
    %v601 = vunpack.c.l.b16 %v178
    %v602 = vunpack.c.h.b16 %v178
    %v603 = vunpack.c.l.b16 %v179
    %v604 = vunpack.c.h.b16 %v179
    %v605 = vunpack.c.l.b16 %v180
    %v606 = vunpack.c.h.b16 %v180
    %v607 = vpack.c.b16 %v355, %v351
    %v608 = vpack.c.b16 %v356, %v352
    %v609 = vpack.c.b16 %v357, %v353
    %v610 = vpack.c.b16 %v358, %v354
    %v611 = vpack.c.b16 %v363, %v359
    %v612 = vpack.c.b16 %v364, %v360
    %v613 = vpack.c.b16 %v365, %v361
    %v614 = vpack.c.b16 %v366, %v362
    %v615 = vpack.c.b16 %v371, %v367
    %v616 = vpack.c.b16 %v372, %v368
    %v617 = vpack.c.b16 %v373, %v369
    %v618 = vpack.c.b16 %v374, %v370
    %v619 = vpack.c.b16 %v379, %v375
    %v620 = vpack.c.b16 %v380, %v376
    %v621 = vpack.c.b16 %v381, %v377
    %v622 = vpack.c.b16 %v382, %v378
    %v623 = vpack.c.b16 %v387, %v383
    %v624 = vpack.c.b16 %v388, %v384
    %v625 = vpack.c.b16 %v389, %v385
    %v626 = vpack.c.b16 %v390, %v386
    %v627 = vpack.c.b16 %v395, %v391
    %v628 = vpack.c.b16 %v396, %v392
    %v629 = vpack.c.b16 %v397, %v393
    %v630 = vpack.c.b16 %v398, %v394
    %v631 = vpack.c.b16 %v403, %v399
    %v632 = vpack.c.b16 %v404, %v400
    %v633 = vpack.c.b16 %v405, %v401
    %v634 = vpack.c.b16 %v406, %v402
    %v635 = vpack.c.b16 %v411, %v407
    %v636 = vpack.c.b16 %v412, %v408
    %v637 = vpack.c.b16 %v413, %v409
    %v638 = vpack.c.b16 %v414, %v410
    %v639 = vpack.c.b16 %v419, %v415
    %v640 = vpack.c.b16 %v420, %v416
    %v641 = vpack.c.b16 %v421, %v417
    %v642 = vpack.c.b16 %v422, %v418
    %v643 = vpack.c.b16 %v427, %v423
    %v644 = vpack.c.b16 %v428, %v424
    %v645 = vpack.c.b16 %v429, %v425
    %v646 = vpack.c.b16 %v430, %v426
    %v647 = vpack.c.b16 %v435, %v431
    %v648 = vpack.c.b16 %v436, %v432
    %v649 = vpack.c.b16 %v437, %v433
    %v650 = vpack.c.b16 %v438, %v434
    %v651 = vpack.c.b16 %v443, %v439
    %v652 = vpack.c.b16 %v444, %v440
    %v653 = vpack.c.b16 %v445, %v441
    %v654 = vpack.c.b16 %v446, %v442
    %v655 = vpack.c.b16 %v451, %v447
    %v656 = vpack.c.b16 %v452, %v448
    %v657 = vpack.c.b16 %v453, %v449
    %v658 = vpack.c.b16 %v454, %v450
    %v659 = vpack.c.b16 %v459, %v455
    %v660 = vpack.c.b16 %v460, %v456
    %v661 = vpack.c.b16 %v461, %v457
    %v662 = vpack.c.b16 %v462, %v458
    %v663 = vpack.c.b16 %v467, %v463
    %v664 = vpack.c.b16 %v468, %v464
    %v665 = vpack.c.b16 %v469, %v465
    %v666 = vpack.c.b16 %v470, %v466
    %v667 = vpack.c.b16 %v475, %v471
    %v668 = vpack.c.b16 %v476, %v472
    %v669 = vpack.c.b16 %v477, %v473
    %v670 = vpack.c.b16 %v478, %v474
    %v671 = vpack.c.b16 %v483, %v479
    %v672 = vpack.c.b16 %v484, %v480
    %v673 = vpack.c.b16 %v485, %v481
    %v674 = vpack.c.b16 %v486, %v482
    %v675 = vpack.c.b16 %v491, %v487
    %v676 = vpack.c.b16 %v492, %v488
    %v677 = vpack.c.b16 %v493, %v489
    %v678 = vpack.c.b16 %v494, %v490
    %v679 = vpack.c.b16 %v499, %v495
    %v680 = vpack.c.b16 %v500, %v496
    %v681 = vpack.c.b16 %v501, %v497
    %v682 = vpack.c.b16 %v502, %v498
    %v683 = vpack.c.b16 %v507, %v503
    %v684 = vpack.c.b16 %v508, %v504
    %v685 = vpack.c.b16 %v509, %v505
    %v686 = vpack.c.b16 %v510, %v506
    %v687 = vpack.c.b16 %v515, %v511
    %v688 = vpack.c.b16 %v516, %v512
    %v689 = vpack.c.b16 %v517, %v513
    %v690 = vpack.c.b16 %v518, %v514
    %v691 = vpack.c.b16 %v523, %v519
    %v692 = vpack.c.b16 %v524, %v520
    %v693 = vpack.c.b16 %v525, %v521
    %v694 = vpack.c.b16 %v526, %v522
    %v695 = vpack.c.b16 %v531, %v527
    %v696 = vpack.c.b16 %v532, %v528
    %v697 = vpack.c.b16 %v533, %v529
    %v698 = vpack.c.b16 %v534, %v530
    %v699 = vpack.c.b16 %v539, %v535
    %v700 = vpack.c.b16 %v540, %v536
    %v701 = vpack.c.b16 %v541, %v537
    %v702 = vpack.c.b16 %v542, %v538
    %v703 = vpack.c.b16 %v547, %v543
    %v704 = vpack.c.b16 %v548, %v544
    %v705 = vpack.c.b16 %v549, %v545
    %v706 = vpack.c.b16 %v550, %v546
    %v707 = vpack.c.b16 %v555, %v551
    %v708 = vpack.c.b16 %v556, %v552
    %v709 = vpack.c.b16 %v557, %v553
    %v710 = vpack.c.b16 %v558, %v554
    %v711 = vpack.c.b16 %v563, %v559
    %v712 = vpack.c.b16 %v564, %v560
    %v713 = vpack.c.b16 %v565, %v561
    %v714 = vpack.c.b16 %v566, %v562
    %v715 = vpack.c.b16 %v571, %v567
    %v716 = vpack.c.b16 %v572, %v568
    %v717 = vpack.c.b16 %v573, %v569
    %v718 = vpack.c.b16 %v574, %v570
    %v719 = vpack.c.b16 %v579, %v575
    %v720 = vpack.c.b16 %v580, %v576
    %v721 = vpack.c.b16 %v581, %v577
    %v722 = vpack.c.b16 %v582, %v578
    %v723 = vpack.c.b16 %v587, %v583
    %v724 = vpack.c.b16 %v588, %v584
    %v725 = vpack.c.b16 %v589, %v585
    %v726 = vpack.c.b16 %v590, %v586
    %v727 = vpack.c.b16 %v595, %v591
    %v728 = vpack.c.b16 %v596, %v592
    %v729 = vpack.c.b16 %v597, %v593
    %v730 = vpack.c.b16 %v598, %v594
    %v731 = vpack.c.b16 %v603, %v599
    %v732 = vpack.c.b16 %v604, %v600
    %v733 = vpack.c.b16 %v605, %v601
    %v734 = vpack.c.b16 %v606, %v602
    %863 = vmatprep.subr.bf16.mxu0 %v608
    %864 = vmatpush1.bf16.msra.mxu0 %v607
    %865 = vmatprep.subr.bf16.mxu0 %v612
    %866 = vmatpush1.bf16.msra.mxu0 %v611
    %867 = vmatprep.subr.bf16.mxu0 %v616
    %868 = vmatpush1.bf16.msra.mxu0 %v615
    %869 = vmatprep.subr.bf16.mxu0 %v620
    %870 = vmatpush1.bf16.msra.mxu0 %v619
    %871 = vmatprep.subr.bf16.mxu0 %v624
    %872 = vmatpush1.bf16.msra.mxu0 %v623
    %873 = vmatprep.subr.bf16.mxu0 %v628
    %874 = vmatpush1.bf16.msra.mxu0 %v627
    %875 = vmatprep.subr.bf16.mxu0 %v632
    %876 = vmatpush1.bf16.msra.mxu0 %v631
    %877 = vmatprep.subr.bf16.mxu0 %v636
    %878 = vmatpush1.bf16.msra.mxu0 %v635
    %879 = vmatprep.subr.bf16.mxu0 %v640
    %880 = vmatpush1.bf16.msra.mxu0 %v639
    %881 = vmatprep.subr.bf16.mxu0 %v644
    %882 = vmatpush1.bf16.msra.mxu0 %v643
    %883 = vmatprep.subr.bf16.mxu0 %v648
    %884 = vmatpush1.bf16.msra.mxu0 %v647
    %885 = vmatprep.subr.bf16.mxu0 %v652
    %886 = vmatpush1.bf16.msra.mxu0 %v651
    %887 = vmatprep.subr.bf16.mxu0 %v656
    %888 = vmatpush1.bf16.msra.mxu0 %v655
    %889 = vmatprep.subr.bf16.mxu0 %v660
    %890 = vmatpush1.bf16.msra.mxu0 %v659
    %891 = vmatprep.subr.bf16.mxu0 %v664
    %892 = vmatpush1.bf16.msra.mxu0 %v663
    %893 = vmatprep.subr.bf16.mxu0 %v668
    %894 = vmatpush1.bf16.msra.mxu0 %v667
    %895 = vmatprep.mubr.bf16.mxu0 %v216
    %896 = vmatmul.mubr.bf16.gmra.mrb[0].mxu0 %v215
    %v897 = vpop.f32.mrb[0].mxu0
    %v898 = vadd.f32 %v186, %v897
    %v899 = vpop.f32.mrb[0].mxu0
    %v900 = vadd.f32 %v190, %v899
    %v901 = vpop.f32.mrb[0].mxu0
    %v902 = vadd.f32 %v186, %v901
    %v903 = vpop.f32.mrb[0].mxu0
    %v904 = vadd.f32 %v190, %v903
    %905 = vdwg.mxu0
    %906 = vmatprep.subr.bf16.mxu0 %v672
    %907 = vmatpush1.bf16.msra.mxu0 %v671
    %908 = vmatprep.subr.bf16.mxu0 %v676
    %909 = vmatpush1.bf16.msra.mxu0 %v675
    %910 = vmatprep.subr.bf16.mxu0 %v680
    %911 = vmatpush1.bf16.msra.mxu0 %v679
    %912 = vmatprep.subr.bf16.mxu0 %v684
    %913 = vmatpush1.bf16.msra.mxu0 %v683
    %914 = vmatprep.subr.bf16.mxu0 %v688
    %915 = vmatpush1.bf16.msra.mxu0 %v687
    %916 = vmatprep.subr.bf16.mxu0 %v692
    %917 = vmatpush1.bf16.msra.mxu0 %v691
    %918 = vmatprep.subr.bf16.mxu0 %v696
    %919 = vmatpush1.bf16.msra.mxu0 %v695
    %920 = vmatprep.subr.bf16.mxu0 %v700
    %921 = vmatpush1.bf16.msra.mxu0 %v699
    %922 = vmatprep.subr.bf16.mxu0 %v704
    %923 = vmatpush1.bf16.msra.mxu0 %v703
    %924 = vmatprep.subr.bf16.mxu0 %v708
    %925 = vmatpush1.bf16.msra.mxu0 %v707
    %926 = vmatprep.subr.bf16.mxu0 %v712
    %927 = vmatpush1.bf16.msra.mxu0 %v711
    %928 = vmatprep.subr.bf16.mxu0 %v716
    %929 = vmatpush1.bf16.msra.mxu0 %v715
    %930 = vmatprep.subr.bf16.mxu0 %v720
    %931 = vmatpush1.bf16.msra.mxu0 %v719
    %932 = vmatprep.subr.bf16.mxu0 %v724
    %933 = vmatpush1.bf16.msra.mxu0 %v723
    %934 = vmatprep.subr.bf16.mxu0 %v728
    %935 = vmatpush1.bf16.msra.mxu0 %v727
    %936 = vmatprep.subr.bf16.mxu0 %v732
    %937 = vmatpush1.bf16.msra.mxu0 %v731
    %938 = vmatprep.mubr.bf16.mxu0 %v218
    %939 = vmatmul.mubr.bf16.gmra.mrb[0].mxu0 %v217
    %v940 = vpop.f32.mrb[0].mxu0
    %v941 = vadd.f32 %v898, %v940
    %v942 = vpop.f32.mrb[0].mxu0
    %v943 = vadd.f32 %v900, %v942
    %v944 = vpop.f32.mrb[0].mxu0
    %v945 = vadd.f32 %v902, %v944
    %v946 = vpop.f32.mrb[0].mxu0
    %v947 = vadd.f32 %v904, %v946
    %948 = vdwg.mxu0
    %949 = vmatprep.subr.bf16.mxu0 %v610
    %950 = vmatpush1.bf16.msra.mxu0 %v609
    %951 = vmatprep.subr.bf16.mxu0 %v614
    %952 = vmatpush1.bf16.msra.mxu0 %v613
    %953 = vmatprep.subr.bf16.mxu0 %v618
    %954 = vmatpush1.bf16.msra.mxu0 %v617
    %955 = vmatprep.subr.bf16.mxu0 %v622
    %956 = vmatpush1.bf16.msra.mxu0 %v621
    %957 = vmatprep.subr.bf16.mxu0 %v626
    %958 = vmatpush1.bf16.msra.mxu0 %v625
    %959 = vmatprep.subr.bf16.mxu0 %v630
    %960 = vmatpush1.bf16.msra.mxu0 %v629
    %961 = vmatprep.subr.bf16.mxu0 %v634
    %962 = vmatpush1.bf16.msra.mxu0 %v633
    %963 = vmatprep.subr.bf16.mxu0 %v638
    %964 = vmatpush1.bf16.msra.mxu0 %v637
    %965 = vmatprep.subr.bf16.mxu0 %v642
    %966 = vmatpush1.bf16.msra.mxu0 %v641
    %967 = vmatprep.subr.bf16.mxu0 %v646
    %968 = vmatpush1.bf16.msra.mxu0 %v645
    %969 = vmatprep.subr.bf16.mxu0 %v650
    %970 = vmatpush1.bf16.msra.mxu0 %v649
    %971 = vmatprep.subr.bf16.mxu0 %v654
    %972 = vmatpush1.bf16.msra.mxu0 %v653
    %973 = vmatprep.subr.bf16.mxu0 %v658
    %974 = vmatpush1.bf16.msra.mxu0 %v657
    %975 = vmatprep.subr.bf16.mxu0 %v662
    %976 = vmatpush1.bf16.msra.mxu0 %v661
    %977 = vmatprep.subr.bf16.mxu0 %v666
    %978 = vmatpush1.bf16.msra.mxu0 %v665
    %979 = vmatprep.subr.bf16.mxu0 %v670
    %980 = vmatpush1.bf16.msra.mxu0 %v669
    %981 = vmatprep.mubr.bf16.mxu0 %v216
    %982 = vmatmul.mubr.bf16.gmra.mrb[0].mxu0 %v215
    %v983 = vpop.f32.mrb[0].mxu0
    %v984 = vadd.f32 %v194, %v983
    %v985 = vpop.f32.mrb[0].mxu0
    %v986 = vadd.f32 %v198, %v985
    %v987 = vpop.f32.mrb[0].mxu0
    %v988 = vadd.f32 %v194, %v987
    %v989 = vpop.f32.mrb[0].mxu0
    %v990 = vadd.f32 %v198, %v989
    %991 = vdwg.mxu0
    %992 = vmatprep.subr.bf16.mxu0 %v674
    %993 = vmatpush1.bf16.msra.mxu0 %v673
    %994 = vmatprep.subr.bf16.mxu0 %v678
    %995 = vmatpush1.bf16.msra.mxu0 %v677
    %996 = vmatprep.subr.bf16.mxu0 %v682
    %997 = vmatpush1.bf16.msra.mxu0 %v681
    %998 = vmatprep.subr.bf16.mxu0 %v686
    %999 = vmatpush1.bf16.msra.mxu0 %v685
    %1000 = vmatprep.subr.bf16.mxu0 %v690
    %1001 = vmatpush1.bf16.msra.mxu0 %v689
    %1002 = vmatprep.subr.bf16.mxu0 %v694
    %1003 = vmatpush1.bf16.msra.mxu0 %v693
    %1004 = vmatprep.subr.bf16.mxu0 %v698
    %1005 = vmatpush1.bf16.msra.mxu0 %v697
    %1006 = vmatprep.subr.bf16.mxu0 %v702
    %1007 = vmatpush1.bf16.msra.mxu0 %v701
    %1008 = vmatprep.subr.bf16.mxu0 %v706
    %1009 = vmatpush1.bf16.msra.mxu0 %v705
    %1010 = vmatprep.subr.bf16.mxu0 %v710
    %1011 = vmatpush1.bf16.msra.mxu0 %v709
    %1012 = vmatprep.subr.bf16.mxu0 %v714
    %1013 = vmatpush1.bf16.msra.mxu0 %v713
    %1014 = vmatprep.subr.bf16.mxu0 %v718
    %1015 = vmatpush1.bf16.msra.mxu0 %v717
    %1016 = vmatprep.subr.bf16.mxu0 %v722
    %1017 = vmatpush1.bf16.msra.mxu0 %v721
    %1018 = vmatprep.subr.bf16.mxu0 %v726
    %1019 = vmatpush1.bf16.msra.mxu0 %v725
    %1020 = vmatprep.subr.bf16.mxu0 %v730
    %1021 = vmatpush1.bf16.msra.mxu0 %v729
    %1022 = vmatprep.subr.bf16.mxu0 %v734
    %1023 = vmatpush1.bf16.msra.mxu0 %v733
    %1024 = vmatprep.mubr.bf16.mxu0 %v218
    %1025 = vmatmul.mubr.bf16.gmra.mrb[0].mxu0 %v217
    %v1026 = vpop.f32.mrb[0].mxu0
    %v1027 = vadd.f32 %v984, %v1026
    %v1028 = vpop.f32.mrb[0].mxu0
    %v1029 = vadd.f32 %v986, %v1028
    %v1030 = vpop.f32.mrb[0].mxu0
    %v1031 = vadd.f32 %v988, %v1030
    %v1032 = vpop.f32.mrb[0].mxu0
    %v1033 = vadd.f32 %v990, %v1032
    %1034 = vdwg.mxu0
    %v1035 = vmax.f32 %v941, 0.0
    %v1036 = vmax.f32 %v943, 0.0
    %v1037 = vmax.f32 %v1027, 0.0
    %v1038 = vmax.f32 %v1029, 0.0
    %v1039 = vmax.f32 %v945, 0.0
    %v1040 = vmax.f32 %v947, 0.0
    %v1041 = vmax.f32 %v1031, 0.0
    %v1042 = vmax.f32 %v1033, 0.0
    %v1043 = vpack.c.bf16 %v1039, %v1035
    %v1044 = vpack.c.bf16 %v1040, %v1036
    %v1045 = vpack.c.bf16 %v1041, %v1037
    %v1046 = vpack.c.bf16 %v1042, %v1038
    %v1047 = vld [vmem:[#allocation5] sm:$0xff]
    %v1048 = vld [vmem:[#allocation5 + $0x8] sm:$0xff]
    %v1049 = vld [vmem:[#allocation5 + $0x10] sm:$0xff]
    %v1050 = vld [vmem:[#allocation5 + $0x18] sm:$0xff]
    %v1051 = vld [vmem:[#allocation5 + $0x20] sm:$0xff]
    %v1052 = vld [vmem:[#allocation5 + $0x28] sm:$0xff]
    %v1053 = vld [vmem:[#allocation5 + $0x30] sm:$0xff]
    %v1054 = vld [vmem:[#allocation5 + $0x38] sm:$0xff]
    %v1055 = vld [vmem:[#allocation5 + $0x40] sm:$0xff]
    %v1056 = vld [vmem:[#allocation5 + $0x48] sm:$0xff]
    %v1057 = vld [vmem:[#allocation5 + $0x50] sm:$0xff]
    %v1058 = vld [vmem:[#allocation5 + $0x58] sm:$0xff]
    %v1059 = vld [vmem:[#allocation5 + $0x60] sm:$0xff]
    %v1060 = vld [vmem:[#allocation5 + $0x68] sm:$0xff]
    %v1061 = vld [vmem:[#allocation5 + $0x70] sm:$0xff]
    %v1062 = vld [vmem:[#allocation5 + $0x78] sm:$0xff]
    %v1063 = vld [vmem:[#allocation5 + $0x80] sm:$0xff]
    %v1064 = vld [vmem:[#allocation5 + $0x88] sm:$0xff]
    %v1065 = vld [vmem:[#allocation5 + $0x90] sm:$0xff]
    %v1066 = vld [vmem:[#allocation5 + $0x98] sm:$0xff]
    %v1067 = vld [vmem:[#allocation5 + $0xa0] sm:$0xff]
    %v1068 = vld [vmem:[#allocation5 + $0xa8] sm:$0xff]
    %v1069 = vld [vmem:[#allocation5 + $0xb0] sm:$0xff]
    %v1070 = vld [vmem:[#allocation5 + $0xb8] sm:$0xff]
    %v1071 = vld [vmem:[#allocation5 + $0xc0] sm:$0xff]
    %v1072 = vld [vmem:[#allocation5 + $0xc8] sm:$0xff]
    %v1073 = vld [vmem:[#allocation5 + $0xd0] sm:$0xff]
    %v1074 = vld [vmem:[#allocation5 + $0xd8] sm:$0xff]
    %v1075 = vld [vmem:[#allocation5 + $0xe0] sm:$0xff]
    %v1076 = vld [vmem:[#allocation5 + $0xe8] sm:$0xff]
    %v1077 = vld [vmem:[#allocation5 + $0xf0] sm:$0xff]
    %v1078 = vld [vmem:[#allocation5 + $0xf8] sm:$0xff]
    %v1079 = vld [vmem:[#allocation5 + $0x100] sm:$0xff]
    %v1080 = vld [vmem:[#allocation5 + $0x108] sm:$0xff]
    %v1081 = vld [vmem:[#allocation5 + $0x110] sm:$0xff]
    %v1082 = vld [vmem:[#allocation5 + $0x118] sm:$0xff]
    %v1083 = vld [vmem:[#allocation5 + $0x120] sm:$0xff]
    %v1084 = vld [vmem:[#allocation5 + $0x128] sm:$0xff]
    %v1085 = vld [vmem:[#allocation5 + $0x130] sm:$0xff]
    %v1086 = vld [vmem:[#allocation5 + $0x138] sm:$0xff]
    %v1087 = vld [vmem:[#allocation5 + $0x140] sm:$0xff]
    %v1088 = vld [vmem:[#allocation5 + $0x148] sm:$0xff]
    %v1089 = vld [vmem:[#allocation5 + $0x150] sm:$0xff]
    %v1090 = vld [vmem:[#allocation5 + $0x158] sm:$0xff]
    %v1091 = vld [vmem:[#allocation5 + $0x160] sm:$0xff]
    %v1092 = vld [vmem:[#allocation5 + $0x168] sm:$0xff]
    %v1093 = vld [vmem:[#allocation5 + $0x170] sm:$0xff]
    %v1094 = vld [vmem:[#allocation5 + $0x178] sm:$0xff]
    %v1095 = vld [vmem:[#allocation5 + $0x180] sm:$0xff]
    %v1096 = vld [vmem:[#allocation5 + $0x188] sm:$0xff]
    %v1097 = vld [vmem:[#allocation5 + $0x190] sm:$0xff]
    %v1098 = vld [vmem:[#allocation5 + $0x198] sm:$0xff]
    %v1099 = vld [vmem:[#allocation5 + $0x1a0] sm:$0xff]
    %v1100 = vld [vmem:[#allocation5 + $0x1a8] sm:$0xff]
    %v1101 = vld [vmem:[#allocation5 + $0x1b0] sm:$0xff]
    %v1102 = vld [vmem:[#allocation5 + $0x1b8] sm:$0xff]
    %v1103 = vld [vmem:[#allocation5 + $0x1c0] sm:$0xff]
    %v1104 = vld [vmem:[#allocation5 + $0x1c8] sm:$0xff]
    %v1105 = vld [vmem:[#allocation5 + $0x1d0] sm:$0xff]
    %v1106 = vld [vmem:[#allocation5 + $0x1d8] sm:$0xff]
    %v1107 = vld [vmem:[#allocation5 + $0x1e0] sm:$0xff]
    %v1108 = vld [vmem:[#allocation5 + $0x1e8] sm:$0xff]
    %v1109 = vld [vmem:[#allocation5 + $0x1f0] sm:$0xff]
    %v1110 = vld [vmem:[#allocation5 + $0x1f8] sm:$0xff]
    %v1111 = vld [vmem:[#allocation5 + $0x200] sm:$0xff]
    %v1112 = vld [vmem:[#allocation5 + $0x208] sm:$0xff]
    %v1113 = vld [vmem:[#allocation5 + $0x210] sm:$0xff]
    %v1114 = vld [vmem:[#allocation5 + $0x218] sm:$0xff]
    %v1115 = vld [vmem:[#allocation5 + $0x220] sm:$0xff]
    %v1116 = vld [vmem:[#allocation5 + $0x228] sm:$0xff]
    %v1117 = vld [vmem:[#allocation5 + $0x230] sm:$0xff]
    %v1118 = vld [vmem:[#allocation5 + $0x238] sm:$0xff]
    %v1119 = vld [vmem:[#allocation5 + $0x240] sm:$0xff]
    %v1120 = vld [vmem:[#allocation5 + $0x248] sm:$0xff]
    %v1121 = vld [vmem:[#allocation5 + $0x250] sm:$0xff]
    %v1122 = vld [vmem:[#allocation5 + $0x258] sm:$0xff]
    %v1123 = vld [vmem:[#allocation5 + $0x260] sm:$0xff]
    %v1124 = vld [vmem:[#allocation5 + $0x268] sm:$0xff]
    %v1125 = vld [vmem:[#allocation5 + $0x270] sm:$0xff]
    %v1126 = vld [vmem:[#allocation5 + $0x278] sm:$0xff]
    %v1127 = vld [vmem:[#allocation5 + $0x280] sm:$0xff]
    %v1128 = vld [vmem:[#allocation5 + $0x288] sm:$0xff]
    %v1129 = vld [vmem:[#allocation5 + $0x290] sm:$0xff]
    %v1130 = vld [vmem:[#allocation5 + $0x298] sm:$0xff]
    %v1131 = vld [vmem:[#allocation5 + $0x2a0] sm:$0xff]
    %v1132 = vld [vmem:[#allocation5 + $0x2a8] sm:$0xff]
    %v1133 = vld [vmem:[#allocation5 + $0x2b0] sm:$0xff]
    %v1134 = vld [vmem:[#allocation5 + $0x2b8] sm:$0xff]
    %v1135 = vld [vmem:[#allocation5 + $0x2c0] sm:$0xff]
    %v1136 = vld [vmem:[#allocation5 + $0x2c8] sm:$0xff]
    %v1137 = vld [vmem:[#allocation5 + $0x2d0] sm:$0xff]
    %v1138 = vld [vmem:[#allocation5 + $0x2d8] sm:$0xff]
    %v1139 = vld [vmem:[#allocation5 + $0x2e0] sm:$0xff]
    %v1140 = vld [vmem:[#allocation5 + $0x2e8] sm:$0xff]
    %v1141 = vld [vmem:[#allocation5 + $0x2f0] sm:$0xff]
    %v1142 = vld [vmem:[#allocation5 + $0x2f8] sm:$0xff]
    %v1143 = vld [vmem:[#allocation5 + $0x300] sm:$0xff]
    %v1144 = vld [vmem:[#allocation5 + $0x308] sm:$0xff]
    %v1145 = vld [vmem:[#allocation5 + $0x310] sm:$0xff]
    %v1146 = vld [vmem:[#allocation5 + $0x318] sm:$0xff]
    %v1147 = vld [vmem:[#allocation5 + $0x320] sm:$0xff]
    %v1148 = vld [vmem:[#allocation5 + $0x328] sm:$0xff]
    %v1149 = vld [vmem:[#allocation5 + $0x330] sm:$0xff]
    %v1150 = vld [vmem:[#allocation5 + $0x338] sm:$0xff]
    %v1151 = vld [vmem:[#allocation5 + $0x340] sm:$0xff]
    %v1152 = vld [vmem:[#allocation5 + $0x348] sm:$0xff]
    %v1153 = vld [vmem:[#allocation5 + $0x350] sm:$0xff]
    %v1154 = vld [vmem:[#allocation5 + $0x358] sm:$0xff]
    %v1155 = vld [vmem:[#allocation5 + $0x360] sm:$0xff]
    %v1156 = vld [vmem:[#allocation5 + $0x368] sm:$0xff]
    %v1157 = vld [vmem:[#allocation5 + $0x370] sm:$0xff]
    %v1158 = vld [vmem:[#allocation5 + $0x378] sm:$0xff]
    %v1159 = vld [vmem:[#allocation5 + $0x380] sm:$0xff]
    %v1160 = vld [vmem:[#allocation5 + $0x388] sm:$0xff]
    %v1161 = vld [vmem:[#allocation5 + $0x390] sm:$0xff]
    %v1162 = vld [vmem:[#allocation5 + $0x398] sm:$0xff]
    %v1163 = vld [vmem:[#allocation5 + $0x3a0] sm:$0xff]
    %v1164 = vld [vmem:[#allocation5 + $0x3a8] sm:$0xff]
    %v1165 = vld [vmem:[#allocation5 + $0x3b0] sm:$0xff]
    %v1166 = vld [vmem:[#allocation5 + $0x3b8] sm:$0xff]
    %v1167 = vld [vmem:[#allocation5 + $0x3c0] sm:$0xff]
    %v1168 = vld [vmem:[#allocation5 + $0x3c8] sm:$0xff]
    %v1169 = vld [vmem:[#allocation5 + $0x3d0] sm:$0xff]
    %v1170 = vld [vmem:[#allocation5 + $0x3d8] sm:$0xff]
    %v1171 = vld [vmem:[#allocation5 + $0x3e0] sm:$0xff]
    %v1172 = vld [vmem:[#allocation5 + $0x3e8] sm:$0xff]
    %v1173 = vld [vmem:[#allocation5 + $0x3f0] sm:$0xff]
    %v1174 = vld [vmem:[#allocation5 + $0x3f8] sm:$0xff]
    %v1175 = vld [vmem:[#allocation2 + $0x10] sm:$0xff]
    %v1176 = vld [vmem:[#allocation2 + $0x18] sm:$0xff]
    %v1177 = vld [vmem:[#allocation2 + $0x50] sm:$0xff]
    %v1178 = vld [vmem:[#allocation2 + $0x58] sm:$0xff]
    %v1179 = vld [vmem:[#allocation2 + $0x90] sm:$0xff]
    %v1180 = vld [vmem:[#allocation2 + $0x98] sm:$0xff]
    %v1181 = vld [vmem:[#allocation2 + $0xd0] sm:$0xff]
    %v1182 = vld [vmem:[#allocation2 + $0xd8] sm:$0xff]
    %v1183 = vld [vmem:[#allocation2 + $0x110] sm:$0xff]
    %v1184 = vld [vmem:[#allocation2 + $0x118] sm:$0xff]
    %v1185 = vld [vmem:[#allocation2 + $0x150] sm:$0xff]
    %v1186 = vld [vmem:[#allocation2 + $0x158] sm:$0xff]
    %v1187 = vld [vmem:[#allocation2 + $0x190] sm:$0xff]
    %v1188 = vld [vmem:[#allocation2 + $0x198] sm:$0xff]
    %v1189 = vld [vmem:[#allocation2 + $0x1d0] sm:$0xff]
    %v1190 = vld [vmem:[#allocation2 + $0x1d8] sm:$0xff]
    %v1191 = vld [vmem:[#allocation2 + $0x210] sm:$0xff]
    %v1192 = vld [vmem:[#allocation2 + $0x218] sm:$0xff]
    %v1193 = vld [vmem:[#allocation2 + $0x250] sm:$0xff]
    %v1194 = vld [vmem:[#allocation2 + $0x258] sm:$0xff]
    %v1195 = vld [vmem:[#allocation2 + $0x290] sm:$0xff]
    %v1196 = vld [vmem:[#allocation2 + $0x298] sm:$0xff]
    %v1197 = vld [vmem:[#allocation2 + $0x2d0] sm:$0xff]
    %v1198 = vld [vmem:[#allocation2 + $0x2d8] sm:$0xff]
    %v1199 = vld [vmem:[#allocation2 + $0x310] sm:$0xff]
    %v1200 = vld [vmem:[#allocation2 + $0x318] sm:$0xff]
    %v1201 = vld [vmem:[#allocation2 + $0x350] sm:$0xff]
    %v1202 = vld [vmem:[#allocation2 + $0x358] sm:$0xff]
    %v1203 = vld [vmem:[#allocation2 + $0x390] sm:$0xff]
    %v1204 = vld [vmem:[#allocation2 + $0x398] sm:$0xff]
    %v1205 = vld [vmem:[#allocation2 + $0x3d0] sm:$0xff]
    %v1206 = vld [vmem:[#allocation2 + $0x3d8] sm:$0xff]
    %v1207 = vld [vmem:[#allocation2 + $0x410] sm:$0xff]
    %v1208 = vld [vmem:[#allocation2 + $0x418] sm:$0xff]
    %v1209 = vld [vmem:[#allocation2 + $0x450] sm:$0xff]
    %v1210 = vld [vmem:[#allocation2 + $0x458] sm:$0xff]
    %v1211 = vld [vmem:[#allocation2 + $0x490] sm:$0xff]
    %v1212 = vld [vmem:[#allocation2 + $0x498] sm:$0xff]
    %v1213 = vld [vmem:[#allocation2 + $0x4d0] sm:$0xff]
    %v1214 = vld [vmem:[#allocation2 + $0x4d8] sm:$0xff]
    %v1215 = vld [vmem:[#allocation2 + $0x510] sm:$0xff]
    %v1216 = vld [vmem:[#allocation2 + $0x518] sm:$0xff]
    %v1217 = vld [vmem:[#allocation2 + $0x550] sm:$0xff]
    %v1218 = vld [vmem:[#allocation2 + $0x558] sm:$0xff]
    %v1219 = vld [vmem:[#allocation2 + $0x590] sm:$0xff]
    %v1220 = vld [vmem:[#allocation2 + $0x598] sm:$0xff]
    %v1221 = vld [vmem:[#allocation2 + $0x5d0] sm:$0xff]
    %v1222 = vld [vmem:[#allocation2 + $0x5d8] sm:$0xff]
    %v1223 = vld [vmem:[#allocation2 + $0x610] sm:$0xff]
    %v1224 = vld [vmem:[#allocation2 + $0x618] sm:$0xff]
    %v1225 = vld [vmem:[#allocation2 + $0x650] sm:$0xff]
    %v1226 = vld [vmem:[#allocation2 + $0x658] sm:$0xff]
    %v1227 = vld [vmem:[#allocation2 + $0x690] sm:$0xff]
    %v1228 = vld [vmem:[#allocation2 + $0x698] sm:$0xff]
    %v1229 = vld [vmem:[#allocation2 + $0x6d0] sm:$0xff]
    %v1230 = vld [vmem:[#allocation2 + $0x6d8] sm:$0xff]
    %v1231 = vld [vmem:[#allocation2 + $0x710] sm:$0xff]
    %v1232 = vld [vmem:[#allocation2 + $0x718] sm:$0xff]
    %v1233 = vld [vmem:[#allocation2 + $0x750] sm:$0xff]
    %v1234 = vld [vmem:[#allocation2 + $0x758] sm:$0xff]
    %v1235 = vld [vmem:[#allocation2 + $0x790] sm:$0xff]
    %v1236 = vld [vmem:[#allocation2 + $0x798] sm:$0xff]
    %v1237 = vld [vmem:[#allocation2 + $0x7d0] sm:$0xff]
    %v1238 = vld [vmem:[#allocation2 + $0x7d8] sm:$0xff]
    %v1239 = vld [vmem:[#allocation2 + $0x810] sm:$0xff]
    %v1240 = vld [vmem:[#allocation2 + $0x818] sm:$0xff]
    %v1241 = vld [vmem:[#allocation2 + $0x850] sm:$0xff]
    %v1242 = vld [vmem:[#allocation2 + $0x858] sm:$0xff]
    %v1243 = vld [vmem:[#allocation2 + $0x890] sm:$0xff]
    %v1244 = vld [vmem:[#allocation2 + $0x898] sm:$0xff]
    %v1245 = vld [vmem:[#allocation2 + $0x8d0] sm:$0xff]
    %v1246 = vld [vmem:[#allocation2 + $0x8d8] sm:$0xff]
    %v1247 = vld [vmem:[#allocation2 + $0x910] sm:$0xff]
    %v1248 = vld [vmem:[#allocation2 + $0x918] sm:$0xff]
    %v1249 = vld [vmem:[#allocation2 + $0x950] sm:$0xff]
    %v1250 = vld [vmem:[#allocation2 + $0x958] sm:$0xff]
    %v1251 = vld [vmem:[#allocation2 + $0x990] sm:$0xff]
    %v1252 = vld [vmem:[#allocation2 + $0x998] sm:$0xff]
    %v1253 = vld [vmem:[#allocation2 + $0x9d0] sm:$0xff]
    %v1254 = vld [vmem:[#allocation2 + $0x9d8] sm:$0xff]
    %v1255 = vld [vmem:[#allocation2 + $0xa10] sm:$0xff]
    %v1256 = vld [vmem:[#allocation2 + $0xa18] sm:$0xff]
    %v1257 = vld [vmem:[#allocation2 + $0xa50] sm:$0xff]
    %v1258 = vld [vmem:[#allocation2 + $0xa58] sm:$0xff]
    %v1259 = vld [vmem:[#allocation2 + $0xa90] sm:$0xff]
    %v1260 = vld [vmem:[#allocation2 + $0xa98] sm:$0xff]
    %v1261 = vld [vmem:[#allocation2 + $0xad0] sm:$0xff]
    %v1262 = vld [vmem:[#allocation2 + $0xad8] sm:$0xff]
    %v1263 = vld [vmem:[#allocation2 + $0xb10] sm:$0xff]
    %v1264 = vld [vmem:[#allocation2 + $0xb18] sm:$0xff]
    %v1265 = vld [vmem:[#allocation2 + $0xb50] sm:$0xff]
    %v1266 = vld [vmem:[#allocation2 + $0xb58] sm:$0xff]
    %v1267 = vld [vmem:[#allocation2 + $0xb90] sm:$0xff]
    %v1268 = vld [vmem:[#allocation2 + $0xb98] sm:$0xff]
    %v1269 = vld [vmem:[#allocation2 + $0xbd0] sm:$0xff]
    %v1270 = vld [vmem:[#allocation2 + $0xbd8] sm:$0xff]
    %v1271 = vld [vmem:[#allocation2 + $0xc10] sm:$0xff]
    %v1272 = vld [vmem:[#allocation2 + $0xc18] sm:$0xff]
    %v1273 = vld [vmem:[#allocation2 + $0xc50] sm:$0xff]
    %v1274 = vld [vmem:[#allocation2 + $0xc58] sm:$0xff]
    %v1275 = vld [vmem:[#allocation2 + $0xc90] sm:$0xff]
    %v1276 = vld [vmem:[#allocation2 + $0xc98] sm:$0xff]
    %v1277 = vld [vmem:[#allocation2 + $0xcd0] sm:$0xff]
    %v1278 = vld [vmem:[#allocation2 + $0xcd8] sm:$0xff]
    %v1279 = vld [vmem:[#allocation2 + $0xd10] sm:$0xff]
    %v1280 = vld [vmem:[#allocation2 + $0xd18] sm:$0xff]
    %v1281 = vld [vmem:[#allocation2 + $0xd50] sm:$0xff]
    %v1282 = vld [vmem:[#allocation2 + $0xd58] sm:$0xff]
    %v1283 = vld [vmem:[#allocation2 + $0xd90] sm:$0xff]
    %v1284 = vld [vmem:[#allocation2 + $0xd98] sm:$0xff]
    %v1285 = vld [vmem:[#allocation2 + $0xdd0] sm:$0xff]
    %v1286 = vld [vmem:[#allocation2 + $0xdd8] sm:$0xff]
    %v1287 = vld [vmem:[#allocation2 + $0xe10] sm:$0xff]
    %v1288 = vld [vmem:[#allocation2 + $0xe18] sm:$0xff]
    %v1289 = vld [vmem:[#allocation2 + $0xe50] sm:$0xff]
    %v1290 = vld [vmem:[#allocation2 + $0xe58] sm:$0xff]
    %v1291 = vld [vmem:[#allocation2 + $0xe90] sm:$0xff]
    %v1292 = vld [vmem:[#allocation2 + $0xe98] sm:$0xff]
    %v1293 = vld [vmem:[#allocation2 + $0xed0] sm:$0xff]
    %v1294 = vld [vmem:[#allocation2 + $0xed8] sm:$0xff]
    %v1295 = vld [vmem:[#allocation2 + $0xf10] sm:$0xff]
    %v1296 = vld [vmem:[#allocation2 + $0xf18] sm:$0xff]
    %v1297 = vld [vmem:[#allocation2 + $0xf50] sm:$0xff]
    %v1298 = vld [vmem:[#allocation2 + $0xf58] sm:$0xff]
    %v1299 = vld [vmem:[#allocation2 + $0xf90] sm:$0xff]
    %v1300 = vld [vmem:[#allocation2 + $0xf98] sm:$0xff]
    %v1301 = vld [vmem:[#allocation2 + $0xfd0] sm:$0xff]
    %v1302 = vld [vmem:[#allocation2 + $0xfd8] sm:$0xff]
    %s1303 = scalar_lea.vmem %s2, 32
    %v1304 = vld [vmem:[%s1303] ss:$8 sm:$0xf]
    %v1306 = vlaneseq
    %v1307 = vshrl.u32 %v1306, 7
    %v1308 = vsub.s32 0, %v1307
    %v1309 = vrot.slane %v1304, %v1308
    %v1310 = vlaneseq
    %v1311 = vshrl.u32 %v1310, 7
    %v1312 = vsub.s32 1, %v1311
    %v1313 = vrot.slane %v1304, %v1312
    %v1314 = vlaneseq
    %v1315 = vshrl.u32 %v1314, 7
    %v1316 = vsub.s32 2, %v1315
    %v1317 = vrot.slane %v1304, %v1316
    %v1318 = vlaneseq
    %v1319 = vshrl.u32 %v1318, 7
    %v1320 = vsub.s32 3, %v1319
    %v1321 = vrot.slane %v1304, %v1320
    %v1454 = vunpack.c.l.b16 %v1175
    %v1455 = vunpack.c.h.b16 %v1175
    %v1456 = vunpack.c.l.b16 %v1176
    %v1457 = vunpack.c.h.b16 %v1176
    %v1458 = vunpack.c.l.b16 %v1177
    %v1459 = vunpack.c.h.b16 %v1177
    %v1460 = vunpack.c.l.b16 %v1178
    %v1461 = vunpack.c.h.b16 %v1178
    %v1462 = vunpack.c.l.b16 %v1179
    %v1463 = vunpack.c.h.b16 %v1179
    %v1464 = vunpack.c.l.b16 %v1180
    %v1465 = vunpack.c.h.b16 %v1180
    %v1466 = vunpack.c.l.b16 %v1181
    %v1467 = vunpack.c.h.b16 %v1181
    %v1468 = vunpack.c.l.b16 %v1182
    %v1469 = vunpack.c.h.b16 %v1182
    %v1470 = vunpack.c.l.b16 %v1183
    %v1471 = vunpack.c.h.b16 %v1183
    %v1472 = vunpack.c.l.b16 %v1184
    %v1473 = vunpack.c.h.b16 %v1184
    %v1474 = vunpack.c.l.b16 %v1185
    %v1475 = vunpack.c.h.b16 %v1185
    %v1476 = vunpack.c.l.b16 %v1186
    %v1477 = vunpack.c.h.b16 %v1186
    %v1478 = vunpack.c.l.b16 %v1187
    %v1479 = vunpack.c.h.b16 %v1187
    %v1480 = vunpack.c.l.b16 %v1188
    %v1481 = vunpack.c.h.b16 %v1188
    %v1482 = vunpack.c.l.b16 %v1189
    %v1483 = vunpack.c.h.b16 %v1189
    %v1484 = vunpack.c.l.b16 %v1190
    %v1485 = vunpack.c.h.b16 %v1190
    %v1486 = vunpack.c.l.b16 %v1191
    %v1487 = vunpack.c.h.b16 %v1191
    %v1488 = vunpack.c.l.b16 %v1192
    %v1489 = vunpack.c.h.b16 %v1192
    %v1490 = vunpack.c.l.b16 %v1193
    %v1491 = vunpack.c.h.b16 %v1193
    %v1492 = vunpack.c.l.b16 %v1194
    %v1493 = vunpack.c.h.b16 %v1194
    %v1494 = vunpack.c.l.b16 %v1195
    %v1495 = vunpack.c.h.b16 %v1195
    %v1496 = vunpack.c.l.b16 %v1196
    %v1497 = vunpack.c.h.b16 %v1196
    %v1498 = vunpack.c.l.b16 %v1197
    %v1499 = vunpack.c.h.b16 %v1197
    %v1500 = vunpack.c.l.b16 %v1198
    %v1501 = vunpack.c.h.b16 %v1198
    %v1502 = vunpack.c.l.b16 %v1199
    %v1503 = vunpack.c.h.b16 %v1199
    %v1504 = vunpack.c.l.b16 %v1200
    %v1505 = vunpack.c.h.b16 %v1200
    %v1506 = vunpack.c.l.b16 %v1201
    %v1507 = vunpack.c.h.b16 %v1201
    %v1508 = vunpack.c.l.b16 %v1202
    %v1509 = vunpack.c.h.b16 %v1202
    %v1510 = vunpack.c.l.b16 %v1203
    %v1511 = vunpack.c.h.b16 %v1203
    %v1512 = vunpack.c.l.b16 %v1204
    %v1513 = vunpack.c.h.b16 %v1204
    %v1514 = vunpack.c.l.b16 %v1205
    %v1515 = vunpack.c.h.b16 %v1205
    %v1516 = vunpack.c.l.b16 %v1206
    %v1517 = vunpack.c.h.b16 %v1206
    %v1518 = vunpack.c.l.b16 %v1207
    %v1519 = vunpack.c.h.b16 %v1207
    %v1520 = vunpack.c.l.b16 %v1208
    %v1521 = vunpack.c.h.b16 %v1208
    %v1522 = vunpack.c.l.b16 %v1209
    %v1523 = vunpack.c.h.b16 %v1209
    %v1524 = vunpack.c.l.b16 %v1210
    %v1525 = vunpack.c.h.b16 %v1210
    %v1526 = vunpack.c.l.b16 %v1211
    %v1527 = vunpack.c.h.b16 %v1211
    %v1528 = vunpack.c.l.b16 %v1212
    %v1529 = vunpack.c.h.b16 %v1212
    %v1530 = vunpack.c.l.b16 %v1213
    %v1531 = vunpack.c.h.b16 %v1213
    %v1532 = vunpack.c.l.b16 %v1214
    %v1533 = vunpack.c.h.b16 %v1214
    %v1534 = vunpack.c.l.b16 %v1215
    %v1535 = vunpack.c.h.b16 %v1215
    %v1536 = vunpack.c.l.b16 %v1216
    %v1537 = vunpack.c.h.b16 %v1216
    %v1538 = vunpack.c.l.b16 %v1217
    %v1539 = vunpack.c.h.b16 %v1217
    %v1540 = vunpack.c.l.b16 %v1218
    %v1541 = vunpack.c.h.b16 %v1218
    %v1542 = vunpack.c.l.b16 %v1219
    %v1543 = vunpack.c.h.b16 %v1219
    %v1544 = vunpack.c.l.b16 %v1220
    %v1545 = vunpack.c.h.b16 %v1220
    %v1546 = vunpack.c.l.b16 %v1221
    %v1547 = vunpack.c.h.b16 %v1221
    %v1548 = vunpack.c.l.b16 %v1222
    %v1549 = vunpack.c.h.b16 %v1222
    %v1550 = vunpack.c.l.b16 %v1223
    %v1551 = vunpack.c.h.b16 %v1223
    %v1552 = vunpack.c.l.b16 %v1224
    %v1553 = vunpack.c.h.b16 %v1224
    %v1554 = vunpack.c.l.b16 %v1225
    %v1555 = vunpack.c.h.b16 %v1225
    %v1556 = vunpack.c.l.b16 %v1226
    %v1557 = vunpack.c.h.b16 %v1226
    %v1558 = vunpack.c.l.b16 %v1227
    %v1559 = vunpack.c.h.b16 %v1227
    %v1560 = vunpack.c.l.b16 %v1228
    %v1561 = vunpack.c.h.b16 %v1228
    %v1562 = vunpack.c.l.b16 %v1229
    %v1563 = vunpack.c.h.b16 %v1229
    %v1564 = vunpack.c.l.b16 %v1230
    %v1565 = vunpack.c.h.b16 %v1230
    %v1566 = vunpack.c.l.b16 %v1231
    %v1567 = vunpack.c.h.b16 %v1231
    %v1568 = vunpack.c.l.b16 %v1232
    %v1569 = vunpack.c.h.b16 %v1232
    %v1570 = vunpack.c.l.b16 %v1233
    %v1571 = vunpack.c.h.b16 %v1233
    %v1572 = vunpack.c.l.b16 %v1234
    %v1573 = vunpack.c.h.b16 %v1234
    %v1574 = vunpack.c.l.b16 %v1235
    %v1575 = vunpack.c.h.b16 %v1235
    %v1576 = vunpack.c.l.b16 %v1236
    %v1577 = vunpack.c.h.b16 %v1236
    %v1578 = vunpack.c.l.b16 %v1237
    %v1579 = vunpack.c.h.b16 %v1237
    %v1580 = vunpack.c.l.b16 %v1238
    %v1581 = vunpack.c.h.b16 %v1238
    %v1582 = vunpack.c.l.b16 %v1239
    %v1583 = vunpack.c.h.b16 %v1239
    %v1584 = vunpack.c.l.b16 %v1240
    %v1585 = vunpack.c.h.b16 %v1240
    %v1586 = vunpack.c.l.b16 %v1241
    %v1587 = vunpack.c.h.b16 %v1241
    %v1588 = vunpack.c.l.b16 %v1242
    %v1589 = vunpack.c.h.b16 %v1242
    %v1590 = vunpack.c.l.b16 %v1243
    %v1591 = vunpack.c.h.b16 %v1243
    %v1592 = vunpack.c.l.b16 %v1244
    %v1593 = vunpack.c.h.b16 %v1244
    %v1594 = vunpack.c.l.b16 %v1245
    %v1595 = vunpack.c.h.b16 %v1245
    %v1596 = vunpack.c.l.b16 %v1246
    %v1597 = vunpack.c.h.b16 %v1246
    %v1598 = vunpack.c.l.b16 %v1247
    %v1599 = vunpack.c.h.b16 %v1247
    %v1600 = vunpack.c.l.b16 %v1248
    %v1601 = vunpack.c.h.b16 %v1248
    %v1602 = vunpack.c.l.b16 %v1249
    %v1603 = vunpack.c.h.b16 %v1249
    %v1604 = vunpack.c.l.b16 %v1250
    %v1605 = vunpack.c.h.b16 %v1250
    %v1606 = vunpack.c.l.b16 %v1251
    %v1607 = vunpack.c.h.b16 %v1251
    %v1608 = vunpack.c.l.b16 %v1252
    %v1609 = vunpack.c.h.b16 %v1252
    %v1610 = vunpack.c.l.b16 %v1253
    %v1611 = vunpack.c.h.b16 %v1253
    %v1612 = vunpack.c.l.b16 %v1254
    %v1613 = vunpack.c.h.b16 %v1254
    %v1614 = vunpack.c.l.b16 %v1255
    %v1615 = vunpack.c.h.b16 %v1255
    %v1616 = vunpack.c.l.b16 %v1256
    %v1617 = vunpack.c.h.b16 %v1256
    %v1618 = vunpack.c.l.b16 %v1257
    %v1619 = vunpack.c.h.b16 %v1257
    %v1620 = vunpack.c.l.b16 %v1258
    %v1621 = vunpack.c.h.b16 %v1258
    %v1622 = vunpack.c.l.b16 %v1259
    %v1623 = vunpack.c.h.b16 %v1259
    %v1624 = vunpack.c.l.b16 %v1260
    %v1625 = vunpack.c.h.b16 %v1260
    %v1626 = vunpack.c.l.b16 %v1261
    %v1627 = vunpack.c.h.b16 %v1261
    %v1628 = vunpack.c.l.b16 %v1262
    %v1629 = vunpack.c.h.b16 %v1262
    %v1630 = vunpack.c.l.b16 %v1263
    %v1631 = vunpack.c.h.b16 %v1263
    %v1632 = vunpack.c.l.b16 %v1264
    %v1633 = vunpack.c.h.b16 %v1264
    %v1634 = vunpack.c.l.b16 %v1265
    %v1635 = vunpack.c.h.b16 %v1265
    %v1636 = vunpack.c.l.b16 %v1266
    %v1637 = vunpack.c.h.b16 %v1266
    %v1638 = vunpack.c.l.b16 %v1267
    %v1639 = vunpack.c.h.b16 %v1267
    %v1640 = vunpack.c.l.b16 %v1268
    %v1641 = vunpack.c.h.b16 %v1268
    %v1642 = vunpack.c.l.b16 %v1269
    %v1643 = vunpack.c.h.b16 %v1269
    %v1644 = vunpack.c.l.b16 %v1270
    %v1645 = vunpack.c.h.b16 %v1270
    %v1646 = vunpack.c.l.b16 %v1271
    %v1647 = vunpack.c.h.b16 %v1271
    %v1648 = vunpack.c.l.b16 %v1272
    %v1649 = vunpack.c.h.b16 %v1272
    %v1650 = vunpack.c.l.b16 %v1273
    %v1651 = vunpack.c.h.b16 %v1273
    %v1652 = vunpack.c.l.b16 %v1274
    %v1653 = vunpack.c.h.b16 %v1274
    %v1654 = vunpack.c.l.b16 %v1275
    %v1655 = vunpack.c.h.b16 %v1275
    %v1656 = vunpack.c.l.b16 %v1276
    %v1657 = vunpack.c.h.b16 %v1276
    %v1658 = vunpack.c.l.b16 %v1277
    %v1659 = vunpack.c.h.b16 %v1277
    %v1660 = vunpack.c.l.b16 %v1278
    %v1661 = vunpack.c.h.b16 %v1278
    %v1662 = vunpack.c.l.b16 %v1279
    %v1663 = vunpack.c.h.b16 %v1279
    %v1664 = vunpack.c.l.b16 %v1280
    %v1665 = vunpack.c.h.b16 %v1280
    %v1666 = vunpack.c.l.b16 %v1281
    %v1667 = vunpack.c.h.b16 %v1281
    %v1668 = vunpack.c.l.b16 %v1282
    %v1669 = vunpack.c.h.b16 %v1282
    %v1670 = vunpack.c.l.b16 %v1283
    %v1671 = vunpack.c.h.b16 %v1283
    %v1672 = vunpack.c.l.b16 %v1284
    %v1673 = vunpack.c.h.b16 %v1284
    %v1674 = vunpack.c.l.b16 %v1285
    %v1675 = vunpack.c.h.b16 %v1285
    %v1676 = vunpack.c.l.b16 %v1286
    %v1677 = vunpack.c.h.b16 %v1286
    %v1678 = vunpack.c.l.b16 %v1287
    %v1679 = vunpack.c.h.b16 %v1287
    %v1680 = vunpack.c.l.b16 %v1288
    %v1681 = vunpack.c.h.b16 %v1288
    %v1682 = vunpack.c.l.b16 %v1289
    %v1683 = vunpack.c.h.b16 %v1289
    %v1684 = vunpack.c.l.b16 %v1290
    %v1685 = vunpack.c.h.b16 %v1290
    %v1686 = vunpack.c.l.b16 %v1291
    %v1687 = vunpack.c.h.b16 %v1291
    %v1688 = vunpack.c.l.b16 %v1292
    %v1689 = vunpack.c.h.b16 %v1292
    %v1690 = vunpack.c.l.b16 %v1293
    %v1691 = vunpack.c.h.b16 %v1293
    %v1692 = vunpack.c.l.b16 %v1294
    %v1693 = vunpack.c.h.b16 %v1294
    %v1694 = vunpack.c.l.b16 %v1295
    %v1695 = vunpack.c.h.b16 %v1295
    %v1696 = vunpack.c.l.b16 %v1296
    %v1697 = vunpack.c.h.b16 %v1296
    %v1698 = vunpack.c.l.b16 %v1297
    %v1699 = vunpack.c.h.b16 %v1297
    %v1700 = vunpack.c.l.b16 %v1298
    %v1701 = vunpack.c.h.b16 %v1298
    %v1702 = vunpack.c.l.b16 %v1299
    %v1703 = vunpack.c.h.b16 %v1299
    %v1704 = vunpack.c.l.b16 %v1300
    %v1705 = vunpack.c.h.b16 %v1300
    %v1706 = vunpack.c.l.b16 %v1301
    %v1707 = vunpack.c.h.b16 %v1301
    %v1708 = vunpack.c.l.b16 %v1302
    %v1709 = vunpack.c.h.b16 %v1302
    %v1710 = vpack.c.b16 %v1458, %v1454
    %v1711 = vpack.c.b16 %v1459, %v1455
    %v1712 = vpack.c.b16 %v1460, %v1456
    %v1713 = vpack.c.b16 %v1461, %v1457
    %v1714 = vpack.c.b16 %v1466, %v1462
    %v1715 = vpack.c.b16 %v1467, %v1463
    %v1716 = vpack.c.b16 %v1468, %v1464
    %v1717 = vpack.c.b16 %v1469, %v1465
    %v1718 = vpack.c.b16 %v1474, %v1470
    %v1719 = vpack.c.b16 %v1475, %v1471
    %v1720 = vpack.c.b16 %v1476, %v1472
    %v1721 = vpack.c.b16 %v1477, %v1473
    %v1722 = vpack.c.b16 %v1482, %v1478
    %v1723 = vpack.c.b16 %v1483, %v1479
    %v1724 = vpack.c.b16 %v1484, %v1480
    %v1725 = vpack.c.b16 %v1485, %v1481
    %v1726 = vpack.c.b16 %v1490, %v1486
    %v1727 = vpack.c.b16 %v1491, %v1487
    %v1728 = vpack.c.b16 %v1492, %v1488
    %v1729 = vpack.c.b16 %v1493, %v1489
    %v1730 = vpack.c.b16 %v1498, %v1494
    %v1731 = vpack.c.b16 %v1499, %v1495
    %v1732 = vpack.c.b16 %v1500, %v1496
    %v1733 = vpack.c.b16 %v1501, %v1497
    %v1734 = vpack.c.b16 %v1506, %v1502
    %v1735 = vpack.c.b16 %v1507, %v1503
    %v1736 = vpack.c.b16 %v1508, %v1504
    %v1737 = vpack.c.b16 %v1509, %v1505
    %v1738 = vpack.c.b16 %v1514, %v1510
    %v1739 = vpack.c.b16 %v1515, %v1511
    %v1740 = vpack.c.b16 %v1516, %v1512
    %v1741 = vpack.c.b16 %v1517, %v1513
    %v1742 = vpack.c.b16 %v1522, %v1518
    %v1743 = vpack.c.b16 %v1523, %v1519
    %v1744 = vpack.c.b16 %v1524, %v1520
    %v1745 = vpack.c.b16 %v1525, %v1521
    %v1746 = vpack.c.b16 %v1530, %v1526
    %v1747 = vpack.c.b16 %v1531, %v1527
    %v1748 = vpack.c.b16 %v1532, %v1528
    %v1749 = vpack.c.b16 %v1533, %v1529
    %v1750 = vpack.c.b16 %v1538, %v1534
    %v1751 = vpack.c.b16 %v1539, %v1535
    %v1752 = vpack.c.b16 %v1540, %v1536
    %v1753 = vpack.c.b16 %v1541, %v1537
    %v1754 = vpack.c.b16 %v1546, %v1542
    %v1755 = vpack.c.b16 %v1547, %v1543
    %v1756 = vpack.c.b16 %v1548, %v1544
    %v1757 = vpack.c.b16 %v1549, %v1545
    %v1758 = vpack.c.b16 %v1554, %v1550
    %v1759 = vpack.c.b16 %v1555, %v1551
    %v1760 = vpack.c.b16 %v1556, %v1552
    %v1761 = vpack.c.b16 %v1557, %v1553
    %v1762 = vpack.c.b16 %v1562, %v1558
    %v1763 = vpack.c.b16 %v1563, %v1559
    %v1764 = vpack.c.b16 %v1564, %v1560
    %v1765 = vpack.c.b16 %v1565, %v1561
    %v1766 = vpack.c.b16 %v1570, %v1566
    %v1767 = vpack.c.b16 %v1571, %v1567
    %v1768 = vpack.c.b16 %v1572, %v1568
    %v1769 = vpack.c.b16 %v1573, %v1569
    %v1770 = vpack.c.b16 %v1578, %v1574
    %v1771 = vpack.c.b16 %v1579, %v1575
    %v1772 = vpack.c.b16 %v1580, %v1576
    %v1773 = vpack.c.b16 %v1581, %v1577
    %v1774 = vpack.c.b16 %v1586, %v1582
    %v1775 = vpack.c.b16 %v1587, %v1583
    %v1776 = vpack.c.b16 %v1588, %v1584
    %v1777 = vpack.c.b16 %v1589, %v1585
    %v1778 = vpack.c.b16 %v1594, %v1590
    %v1779 = vpack.c.b16 %v1595, %v1591
    %v1780 = vpack.c.b16 %v1596, %v1592
    %v1781 = vpack.c.b16 %v1597, %v1593
    %v1782 = vpack.c.b16 %v1602, %v1598
    %v1783 = vpack.c.b16 %v1603, %v1599
    %v1784 = vpack.c.b16 %v1604, %v1600
    %v1785 = vpack.c.b16 %v1605, %v1601
    %v1786 = vpack.c.b16 %v1610, %v1606
    %v1787 = vpack.c.b16 %v1611, %v1607
    %v1788 = vpack.c.b16 %v1612, %v1608
    %v1789 = vpack.c.b16 %v1613, %v1609
    %v1790 = vpack.c.b16 %v1618, %v1614
    %v1791 = vpack.c.b16 %v1619, %v1615
    %v1792 = vpack.c.b16 %v1620, %v1616
    %v1793 = vpack.c.b16 %v1621, %v1617
    %v1794 = vpack.c.b16 %v1626, %v1622
    %v1795 = vpack.c.b16 %v1627, %v1623
    %v1796 = vpack.c.b16 %v1628, %v1624
    %v1797 = vpack.c.b16 %v1629, %v1625
    %v1798 = vpack.c.b16 %v1634, %v1630
    %v1799 = vpack.c.b16 %v1635, %v1631
    %v1800 = vpack.c.b16 %v1636, %v1632
    %v1801 = vpack.c.b16 %v1637, %v1633
    %v1802 = vpack.c.b16 %v1642, %v1638
    %v1803 = vpack.c.b16 %v1643, %v1639
    %v1804 = vpack.c.b16 %v1644, %v1640
    %v1805 = vpack.c.b16 %v1645, %v1641
    %v1806 = vpack.c.b16 %v1650, %v1646
    %v1807 = vpack.c.b16 %v1651, %v1647
    %v1808 = vpack.c.b16 %v1652, %v1648
    %v1809 = vpack.c.b16 %v1653, %v1649
    %v1810 = vpack.c.b16 %v1658, %v1654
    %v1811 = vpack.c.b16 %v1659, %v1655
    %v1812 = vpack.c.b16 %v1660, %v1656
    %v1813 = vpack.c.b16 %v1661, %v1657
    %v1814 = vpack.c.b16 %v1666, %v1662
    %v1815 = vpack.c.b16 %v1667, %v1663
    %v1816 = vpack.c.b16 %v1668, %v1664
    %v1817 = vpack.c.b16 %v1669, %v1665
    %v1818 = vpack.c.b16 %v1674, %v1670
    %v1819 = vpack.c.b16 %v1675, %v1671
    %v1820 = vpack.c.b16 %v1676, %v1672
    %v1821 = vpack.c.b16 %v1677, %v1673
    %v1822 = vpack.c.b16 %v1682, %v1678
    %v1823 = vpack.c.b16 %v1683, %v1679
    %v1824 = vpack.c.b16 %v1684, %v1680
    %v1825 = vpack.c.b16 %v1685, %v1681
    %v1826 = vpack.c.b16 %v1690, %v1686
    %v1827 = vpack.c.b16 %v1691, %v1687
    %v1828 = vpack.c.b16 %v1692, %v1688
    %v1829 = vpack.c.b16 %v1693, %v1689
    %v1830 = vpack.c.b16 %v1698, %v1694
    %v1831 = vpack.c.b16 %v1699, %v1695
    %v1832 = vpack.c.b16 %v1700, %v1696
    %v1833 = vpack.c.b16 %v1701, %v1697
    %v1834 = vpack.c.b16 %v1706, %v1702
    %v1835 = vpack.c.b16 %v1707, %v1703
    %v1836 = vpack.c.b16 %v1708, %v1704
    %v1837 = vpack.c.b16 %v1709, %v1705
    %1966 = vmatprep.subr.bf16.mxu0 %v1711
    %1967 = vmatpush1.bf16.msra.mxu0 %v1710
    %1968 = vmatprep.subr.bf16.mxu0 %v1715
    %1969 = vmatpush1.bf16.msra.mxu0 %v1714
    %1970 = vmatprep.subr.bf16.mxu0 %v1719
    %1971 = vmatpush1.bf16.msra.mxu0 %v1718
    %1972 = vmatprep.subr.bf16.mxu0 %v1723
    %1973 = vmatpush1.bf16.msra.mxu0 %v1722
    %1974 = vmatprep.subr.bf16.mxu0 %v1727
    %1975 = vmatpush1.bf16.msra.mxu0 %v1726
    %1976 = vmatprep.subr.bf16.mxu0 %v1731
    %1977 = vmatpush1.bf16.msra.mxu0 %v1730
    %1978 = vmatprep.subr.bf16.mxu0 %v1735
    %1979 = vmatpush1.bf16.msra.mxu0 %v1734
    %1980 = vmatprep.subr.bf16.mxu0 %v1739
    %1981 = vmatpush1.bf16.msra.mxu0 %v1738
    %1982 = vmatprep.subr.bf16.mxu0 %v1743
    %1983 = vmatpush1.bf16.msra.mxu0 %v1742
    %1984 = vmatprep.subr.bf16.mxu0 %v1747
    %1985 = vmatpush1.bf16.msra.mxu0 %v1746
    %1986 = vmatprep.subr.bf16.mxu0 %v1751
    %1987 = vmatpush1.bf16.msra.mxu0 %v1750
    %1988 = vmatprep.subr.bf16.mxu0 %v1755
    %1989 = vmatpush1.bf16.msra.mxu0 %v1754
    %1990 = vmatprep.subr.bf16.mxu0 %v1759
    %1991 = vmatpush1.bf16.msra.mxu0 %v1758
    %1992 = vmatprep.subr.bf16.mxu0 %v1763
    %1993 = vmatpush1.bf16.msra.mxu0 %v1762
    %1994 = vmatprep.subr.bf16.mxu0 %v1767
    %1995 = vmatpush1.bf16.msra.mxu0 %v1766
    %1996 = vmatprep.subr.bf16.mxu0 %v1771
    %1997 = vmatpush1.bf16.msra.mxu0 %v1770
    %1998 = vmatprep.mubr.bf16.mxu0 %v216
    %1999 = vmatmul.mubr.bf16.gmra.mrb[0].mxu0 %v215
    %v2000 = vpop.f32.mrb[0].mxu0
    %v2001 = vadd.f32 %v1309, %v2000
    %v2002 = vpop.f32.mrb[0].mxu0
    %v2003 = vadd.f32 %v1313, %v2002
    %v2004 = vpop.f32.mrb[0].mxu0
    %v2005 = vadd.f32 %v1309, %v2004
    %v2006 = vpop.f32.mrb[0].mxu0
    %v2007 = vadd.f32 %v1313, %v2006
    %2008 = vdwg.mxu0
    %2009 = vmatprep.subr.bf16.mxu0 %v1775
    %2010 = vmatpush1.bf16.msra.mxu0 %v1774
    %2011 = vmatprep.subr.bf16.mxu0 %v1779
    %2012 = vmatpush1.bf16.msra.mxu0 %v1778
    %2013 = vmatprep.subr.bf16.mxu0 %v1783
    %2014 = vmatpush1.bf16.msra.mxu0 %v1782
    %2015 = vmatprep.subr.bf16.mxu0 %v1787
    %2016 = vmatpush1.bf16.msra.mxu0 %v1786
    %2017 = vmatprep.subr.bf16.mxu0 %v1791
    %2018 = vmatpush1.bf16.msra.mxu0 %v1790
    %2019 = vmatprep.subr.bf16.mxu0 %v1795
    %2020 = vmatpush1.bf16.msra.mxu0 %v1794
    %2021 = vmatprep.subr.bf16.mxu0 %v1799
    %2022 = vmatpush1.bf16.msra.mxu0 %v1798
    %2023 = vmatprep.subr.bf16.mxu0 %v1803
    %2024 = vmatpush1.bf16.msra.mxu0 %v1802
    %2025 = vmatprep.subr.bf16.mxu0 %v1807
    %2026 = vmatpush1.bf16.msra.mxu0 %v1806
    %2027 = vmatprep.subr.bf16.mxu0 %v1811
    %2028 = vmatpush1.bf16.msra.mxu0 %v1810
    %2029 = vmatprep.subr.bf16.mxu0 %v1815
    %2030 = vmatpush1.bf16.msra.mxu0 %v1814
    %2031 = vmatprep.subr.bf16.mxu0 %v1819
    %2032 = vmatpush1.bf16.msra.mxu0 %v1818
    %2033 = vmatprep.subr.bf16.mxu0 %v1823
    %2034 = vmatpush1.bf16.msra.mxu0 %v1822
    %2035 = vmatprep.subr.bf16.mxu0 %v1827
    %2036 = vmatpush1.bf16.msra.mxu0 %v1826
    %2037 = vmatprep.subr.bf16.mxu0 %v1831
    %2038 = vmatpush1.bf16.msra.mxu0 %v1830
    %2039 = vmatprep.subr.bf16.mxu0 %v1835
    %2040 = vmatpush1.bf16.msra.mxu0 %v1834
    %2041 = vmatprep.mubr.bf16.mxu0 %v218
    %2042 = vmatmul.mubr.bf16.gmra.mrb[0].mxu0 %v217
    %v2043 = vpop.f32.mrb[0].mxu0
    %v2044 = vadd.f32 %v2001, %v2043
    %v2045 = vpop.f32.mrb[0].mxu0
    %v2046 = vadd.f32 %v2003, %v2045
    %v2047 = vpop.f32.mrb[0].mxu0
    %v2048 = vadd.f32 %v2005, %v2047
    %v2049 = vpop.f32.mrb[0].mxu0
    %v2050 = vadd.f32 %v2007, %v2049
    %2051 = vdwg.mxu0
    %2052 = vmatprep.subr.bf16.mxu0 %v1713
    %2053 = vmatpush1.bf16.msra.mxu0 %v1712
    %2054 = vmatprep.subr.bf16.mxu0 %v1717
    %2055 = vmatpush1.bf16.msra.mxu0 %v1716
    %2056 = vmatprep.subr.bf16.mxu0 %v1721
    %2057 = vmatpush1.bf16.msra.mxu0 %v1720
    %2058 = vmatprep.subr.bf16.mxu0 %v1725
    %2059 = vmatpush1.bf16.msra.mxu0 %v1724
    %2060 = vmatprep.subr.bf16.mxu0 %v1729
    %2061 = vmatpush1.bf16.msra.mxu0 %v1728
    %2062 = vmatprep.subr.bf16.mxu0 %v1733
    %2063 = vmatpush1.bf16.msra.mxu0 %v1732
    %2064 = vmatprep.subr.bf16.mxu0 %v1737
    %2065 = vmatpush1.bf16.msra.mxu0 %v1736
    %2066 = vmatprep.subr.bf16.mxu0 %v1741
    %2067 = vmatpush1.bf16.msra.mxu0 %v1740
    %2068 = vmatprep.subr.bf16.mxu0 %v1745
    %2069 = vmatpush1.bf16.msra.mxu0 %v1744
    %2070 = vmatprep.subr.bf16.mxu0 %v1749
    %2071 = vmatpush1.bf16.msra.mxu0 %v1748
    %2072 = vmatprep.subr.bf16.mxu0 %v1753
    %2073 = vmatpush1.bf16.msra.mxu0 %v1752
    %2074 = vmatprep.subr.bf16.mxu0 %v1757
    %2075 = vmatpush1.bf16.msra.mxu0 %v1756
    %2076 = vmatprep.subr.bf16.mxu0 %v1761
    %2077 = vmatpush1.bf16.msra.mxu0 %v1760
    %2078 = vmatprep.subr.bf16.mxu0 %v1765
    %2079 = vmatpush1.bf16.msra.mxu0 %v1764
    %2080 = vmatprep.subr.bf16.mxu0 %v1769
    %2081 = vmatpush1.bf16.msra.mxu0 %v1768
    %2082 = vmatprep.subr.bf16.mxu0 %v1773
    %2083 = vmatpush1.bf16.msra.mxu0 %v1772
    %2084 = vmatprep.mubr.bf16.mxu0 %v216
    %2085 = vmatmul.mubr.bf16.gmra.mrb[0].mxu0 %v215
    %v2086 = vpop.f32.mrb[0].mxu0
    %v2087 = vadd.f32 %v1317, %v2086
    %v2088 = vpop.f32.mrb[0].mxu0
    %v2089 = vadd.f32 %v1321, %v2088
    %v2090 = vpop.f32.mrb[0].mxu0
    %v2091 = vadd.f32 %v1317, %v2090
    %v2092 = vpop.f32.mrb[0].mxu0
    %v2093 = vadd.f32 %v1321, %v2092
    %2094 = vdwg.mxu0
    %2095 = vmatprep.subr.bf16.mxu0 %v1777
    %2096 = vmatpush1.bf16.msra.mxu0 %v1776
    %2097 = vmatprep.subr.bf16.mxu0 %v1781
    %2098 = vmatpush1.bf16.msra.mxu0 %v1780
    %2099 = vmatprep.subr.bf16.mxu0 %v1785
    %2100 = vmatpush1.bf16.msra.mxu0 %v1784
    %2101 = vmatprep.subr.bf16.mxu0 %v1789
    %2102 = vmatpush1.bf16.msra.mxu0 %v1788
    %2103 = vmatprep.subr.bf16.mxu0 %v1793
    %2104 = vmatpush1.bf16.msra.mxu0 %v1792
    %2105 = vmatprep.subr.bf16.mxu0 %v1797
    %2106 = vmatpush1.bf16.msra.mxu0 %v1796
    %2107 = vmatprep.subr.bf16.mxu0 %v1801
    %2108 = vmatpush1.bf16.msra.mxu0 %v1800
    %2109 = vmatprep.subr.bf16.mxu0 %v1805
    %2110 = vmatpush1.bf16.msra.mxu0 %v1804
    %2111 = vmatprep.subr.bf16.mxu0 %v1809
    %2112 = vmatpush1.bf16.msra.mxu0 %v1808
    %2113 = vmatprep.subr.bf16.mxu0 %v1813
    %2114 = vmatpush1.bf16.msra.mxu0 %v1812
    %2115 = vmatprep.subr.bf16.mxu0 %v1817
    %2116 = vmatpush1.bf16.msra.mxu0 %v1816
    %2117 = vmatprep.subr.bf16.mxu0 %v1821
    %2118 = vmatpush1.bf16.msra.mxu0 %v1820
    %2119 = vmatprep.subr.bf16.mxu0 %v1825
    %2120 = vmatpush1.bf16.msra.mxu0 %v1824
    %2121 = vmatprep.subr.bf16.mxu0 %v1829
    %2122 = vmatpush1.bf16.msra.mxu0 %v1828
    %2123 = vmatprep.subr.bf16.mxu0 %v1833
    %2124 = vmatpush1.bf16.msra.mxu0 %v1832
    %2125 = vmatprep.subr.bf16.mxu0 %v1837
    %2126 = vmatpush1.bf16.msra.mxu0 %v1836
    %2127 = vmatprep.mubr.bf16.mxu0 %v218
    %2128 = vmatmul.mubr.bf16.gmra.mrb[0].mxu0 %v217
    %v2129 = vpop.f32.mrb[0].mxu0
    %v2130 = vadd.f32 %v2087, %v2129
    %v2131 = vpop.f32.mrb[0].mxu0
    %v2132 = vadd.f32 %v2089, %v2131
    %v2133 = vpop.f32.mrb[0].mxu0
    %v2134 = vadd.f32 %v2091, %v2133
    %v2135 = vpop.f32.mrb[0].mxu0
    %v2136 = vadd.f32 %v2093, %v2135
    %2137 = vdwg.mxu0
    %v2138 = vmax.f32 %v2044, 0.0
    %v2139 = vmax.f32 %v2046, 0.0
    %v2140 = vmax.f32 %v2130, 0.0
    %v2141 = vmax.f32 %v2132, 0.0
    %v2142 = vmax.f32 %v2048, 0.0
    %v2143 = vmax.f32 %v2050, 0.0
    %v2144 = vmax.f32 %v2134, 0.0
    %v2145 = vmax.f32 %v2136, 0.0
    %v2146 = vpack.c.bf16 %v2142, %v2138
    %v2147 = vpack.c.bf16 %v2143, %v2139
    %v2148 = vpack.c.bf16 %v2144, %v2140
    %v2149 = vpack.c.bf16 %v2145, %v2141
    %v2150 = vld [vmem:[#allocation5 + $0x400] sm:$0xff]
    %v2151 = vld [vmem:[#allocation5 + $0x408] sm:$0xff]
    %v2152 = vld [vmem:[#allocation5 + $0x410] sm:$0xff]
    %v2153 = vld [vmem:[#allocation5 + $0x418] sm:$0xff]
    %v2154 = vld [vmem:[#allocation5 + $0x420] sm:$0xff]
    %v2155 = vld [vmem:[#allocation5 + $0x428] sm:$0xff]
    %v2156 = vld [vmem:[#allocation5 + $0x430] sm:$0xff]
    %v2157 = vld [vmem:[#allocation5 + $0x438] sm:$0xff]
    %v2158 = vld [vmem:[#allocation5 + $0x440] sm:$0xff]
    %v2159 = vld [vmem:[#allocation5 + $0x448] sm:$0xff]
    %v2160 = vld [vmem:[#allocation5 + $0x450] sm:$0xff]
    %v2161 = vld [vmem:[#allocation5 + $0x458] sm:$0xff]
    %v2162 = vld [vmem:[#allocation5 + $0x460] sm:$0xff]
    %v2163 = vld [vmem:[#allocation5 + $0x468] sm:$0xff]
    %v2164 = vld [vmem:[#allocation5 + $0x470] sm:$0xff]
    %v2165 = vld [vmem:[#allocation5 + $0x478] sm:$0xff]
    %v2166 = vld [vmem:[#allocation5 + $0x480] sm:$0xff]
    %v2167 = vld [vmem:[#allocation5 + $0x488] sm:$0xff]
    %v2168 = vld [vmem:[#allocation5 + $0x490] sm:$0xff]
    %v2169 = vld [vmem:[#allocation5 + $0x498] sm:$0xff]
    %v2170 = vld [vmem:[#allocation5 + $0x4a0] sm:$0xff]
    %v2171 = vld [vmem:[#allocation5 + $0x4a8] sm:$0xff]
    %v2172 = vld [vmem:[#allocation5 + $0x4b0] sm:$0xff]
    %v2173 = vld [vmem:[#allocation5 + $0x4b8] sm:$0xff]
    %v2174 = vld [vmem:[#allocation5 + $0x4c0] sm:$0xff]
    %v2175 = vld [vmem:[#allocation5 + $0x4c8] sm:$0xff]
    %v2176 = vld [vmem:[#allocation5 + $0x4d0] sm:$0xff]
    %v2177 = vld [vmem:[#allocation5 + $0x4d8] sm:$0xff]
    %v2178 = vld [vmem:[#allocation5 + $0x4e0] sm:$0xff]
    %v2179 = vld [vmem:[#allocation5 + $0x4e8] sm:$0xff]
    %v2180 = vld [vmem:[#allocation5 + $0x4f0] sm:$0xff]
    %v2181 = vld [vmem:[#allocation5 + $0x4f8] sm:$0xff]
    %v2182 = vld [vmem:[#allocation5 + $0x500] sm:$0xff]
    %v2183 = vld [vmem:[#allocation5 + $0x508] sm:$0xff]
    %v2184 = vld [vmem:[#allocation5 + $0x510] sm:$0xff]
    %v2185 = vld [vmem:[#allocation5 + $0x518] sm:$0xff]
    %v2186 = vld [vmem:[#allocation5 + $0x520] sm:$0xff]
    %v2187 = vld [vmem:[#allocation5 + $0x528] sm:$0xff]
    %v2188 = vld [vmem:[#allocation5 + $0x530] sm:$0xff]
    %v2189 = vld [vmem:[#allocation5 + $0x538] sm:$0xff]
    %v2190 = vld [vmem:[#allocation5 + $0x540] sm:$0xff]
    %v2191 = vld [vmem:[#allocation5 + $0x548] sm:$0xff]
    %v2192 = vld [vmem:[#allocation5 + $0x550] sm:$0xff]
    %v2193 = vld [vmem:[#allocation5 + $0x558] sm:$0xff]
    %v2194 = vld [vmem:[#allocation5 + $0x560] sm:$0xff]
    %v2195 = vld [vmem:[#allocation5 + $0x568] sm:$0xff]
    %v2196 = vld [vmem:[#allocation5 + $0x570] sm:$0xff]
    %v2197 = vld [vmem:[#allocation5 + $0x578] sm:$0xff]
    %v2198 = vld [vmem:[#allocation5 + $0x580] sm:$0xff]
    %v2199 = vld [vmem:[#allocation5 + $0x588] sm:$0xff]
    %v2200 = vld [vmem:[#allocation5 + $0x590] sm:$0xff]
    %v2201 = vld [vmem:[#allocation5 + $0x598] sm:$0xff]
    %v2202 = vld [vmem:[#allocation5 + $0x5a0] sm:$0xff]
    %v2203 = vld [vmem:[#allocation5 + $0x5a8] sm:$0xff]
    %v2204 = vld [vmem:[#allocation5 + $0x5b0] sm:$0xff]
    %v2205 = vld [vmem:[#allocation5 + $0x5b8] sm:$0xff]
    %v2206 = vld [vmem:[#allocation5 + $0x5c0] sm:$0xff]
    %v2207 = vld [vmem:[#allocation5 + $0x5c8] sm:$0xff]
    %v2208 = vld [vmem:[#allocation5 + $0x5d0] sm:$0xff]
    %v2209 = vld [vmem:[#allocation5 + $0x5d8] sm:$0xff]
    %v2210 = vld [vmem:[#allocation5 + $0x5e0] sm:$0xff]
    %v2211 = vld [vmem:[#allocation5 + $0x5e8] sm:$0xff]
    %v2212 = vld [vmem:[#allocation5 + $0x5f0] sm:$0xff]
    %v2213 = vld [vmem:[#allocation5 + $0x5f8] sm:$0xff]
    %v2214 = vld [vmem:[#allocation5 + $0x600] sm:$0xff]
    %v2215 = vld [vmem:[#allocation5 + $0x608] sm:$0xff]
    %v2216 = vld [vmem:[#allocation5 + $0x610] sm:$0xff]
    %v2217 = vld [vmem:[#allocation5 + $0x618] sm:$0xff]
    %v2218 = vld [vmem:[#allocation5 + $0x620] sm:$0xff]
    %v2219 = vld [vmem:[#allocation5 + $0x628] sm:$0xff]
    %v2220 = vld [vmem:[#allocation5 + $0x630] sm:$0xff]
    %v2221 = vld [vmem:[#allocation5 + $0x638] sm:$0xff]
    %v2222 = vld [vmem:[#allocation5 + $0x640] sm:$0xff]
    %v2223 = vld [vmem:[#allocation5 + $0x648] sm:$0xff]
    %v2224 = vld [vmem:[#allocation5 + $0x650] sm:$0xff]
    %v2225 = vld [vmem:[#allocation5 + $0x658] sm:$0xff]
    %v2226 = vld [vmem:[#allocation5 + $0x660] sm:$0xff]
    %v2227 = vld [vmem:[#allocation5 + $0x668] sm:$0xff]
    %v2228 = vld [vmem:[#allocation5 + $0x670] sm:$0xff]
    %v2229 = vld [vmem:[#allocation5 + $0x678] sm:$0xff]
    %v2230 = vld [vmem:[#allocation5 + $0x680] sm:$0xff]
    %v2231 = vld [vmem:[#allocation5 + $0x688] sm:$0xff]
    %v2232 = vld [vmem:[#allocation5 + $0x690] sm:$0xff]
    %v2233 = vld [vmem:[#allocation5 + $0x698] sm:$0xff]
    %v2234 = vld [vmem:[#allocation5 + $0x6a0] sm:$0xff]
    %v2235 = vld [vmem:[#allocation5 + $0x6a8] sm:$0xff]
    %v2236 = vld [vmem:[#allocation5 + $0x6b0] sm:$0xff]
    %v2237 = vld [vmem:[#allocation5 + $0x6b8] sm:$0xff]
    %v2238 = vld [vmem:[#allocation5 + $0x6c0] sm:$0xff]
    %v2239 = vld [vmem:[#allocation5 + $0x6c8] sm:$0xff]
    %v2240 = vld [vmem:[#allocation5 + $0x6d0] sm:$0xff]
    %v2241 = vld [vmem:[#allocation5 + $0x6d8] sm:$0xff]
    %v2242 = vld [vmem:[#allocation5 + $0x6e0] sm:$0xff]
    %v2243 = vld [vmem:[#allocation5 + $0x6e8] sm:$0xff]
    %v2244 = vld [vmem:[#allocation5 + $0x6f0] sm:$0xff]
    %v2245 = vld [vmem:[#allocation5 + $0x6f8] sm:$0xff]
    %v2246 = vld [vmem:[#allocation5 + $0x700] sm:$0xff]
    %v2247 = vld [vmem:[#allocation5 + $0x708] sm:$0xff]
    %v2248 = vld [vmem:[#allocation5 + $0x710] sm:$0xff]
    %v2249 = vld [vmem:[#allocation5 + $0x718] sm:$0xff]
    %v2250 = vld [vmem:[#allocation5 + $0x720] sm:$0xff]
    %v2251 = vld [vmem:[#allocation5 + $0x728] sm:$0xff]
    %v2252 = vld [vmem:[#allocation5 + $0x730] sm:$0xff]
    %v2253 = vld [vmem:[#allocation5 + $0x738] sm:$0xff]
    %v2254 = vld [vmem:[#allocation5 + $0x740] sm:$0xff]
    %v2255 = vld [vmem:[#allocation5 + $0x748] sm:$0xff]
    %v2256 = vld [vmem:[#allocation5 + $0x750] sm:$0xff]
    %v2257 = vld [vmem:[#allocation5 + $0x758] sm:$0xff]
    %v2258 = vld [vmem:[#allocation5 + $0x760] sm:$0xff]
    %v2259 = vld [vmem:[#allocation5 + $0x768] sm:$0xff]
    %v2260 = vld [vmem:[#allocation5 + $0x770] sm:$0xff]
    %v2261 = vld [vmem:[#allocation5 + $0x778] sm:$0xff]
    %v2262 = vld [vmem:[#allocation5 + $0x780] sm:$0xff]
    %v2263 = vld [vmem:[#allocation5 + $0x788] sm:$0xff]
    %v2264 = vld [vmem:[#allocation5 + $0x790] sm:$0xff]
    %v2265 = vld [vmem:[#allocation5 + $0x798] sm:$0xff]
    %v2266 = vld [vmem:[#allocation5 + $0x7a0] sm:$0xff]
    %v2267 = vld [vmem:[#allocation5 + $0x7a8] sm:$0xff]
    %v2268 = vld [vmem:[#allocation5 + $0x7b0] sm:$0xff]
    %v2269 = vld [vmem:[#allocation5 + $0x7b8] sm:$0xff]
    %v2270 = vld [vmem:[#allocation5 + $0x7c0] sm:$0xff]
    %v2271 = vld [vmem:[#allocation5 + $0x7c8] sm:$0xff]
    %v2272 = vld [vmem:[#allocation5 + $0x7d0] sm:$0xff]
    %v2273 = vld [vmem:[#allocation5 + $0x7d8] sm:$0xff]
    %v2274 = vld [vmem:[#allocation5 + $0x7e0] sm:$0xff]
    %v2275 = vld [vmem:[#allocation5 + $0x7e8] sm:$0xff]
    %v2276 = vld [vmem:[#allocation5 + $0x7f0] sm:$0xff]
    %v2277 = vld [vmem:[#allocation5 + $0x7f8] sm:$0xff]
    %v2406 = vunpack.c.l.b16 %v2150
    %v2407 = vunpack.c.h.b16 %v2150
    %v2408 = vunpack.c.l.b16 %v2151
    %v2409 = vunpack.c.h.b16 %v2151
    %v2410 = vunpack.c.l.b16 %v2152
    %v2411 = vunpack.c.h.b16 %v2152
    %v2412 = vunpack.c.l.b16 %v2153
    %v2413 = vunpack.c.h.b16 %v2153
    %v2414 = vunpack.c.l.b16 %v2154
    %v2415 = vunpack.c.h.b16 %v2154
    %v2416 = vunpack.c.l.b16 %v2155
    %v2417 = vunpack.c.h.b16 %v2155
    %v2418 = vunpack.c.l.b16 %v2156
    %v2419 = vunpack.c.h.b16 %v2156
    %v2420 = vunpack.c.l.b16 %v2157
    %v2421 = vunpack.c.h.b16 %v2157
    %v2422 = vunpack.c.l.b16 %v2158
    %v2423 = vunpack.c.h.b16 %v2158
    %v2424 = vunpack.c.l.b16 %v2159
    %v2425 = vunpack.c.h.b16 %v2159
    %v2426 = vunpack.c.l.b16 %v2160
    %v2427 = vunpack.c.h.b16 %v2160
    %v2428 = vunpack.c.l.b16 %v2161
    %v2429 = vunpack.c.h.b16 %v2161
    %v2430 = vunpack.c.l.b16 %v2162
    %v2431 = vunpack.c.h.b16 %v2162
    %v2432 = vunpack.c.l.b16 %v2163
    %v2433 = vunpack.c.h.b16 %v2163
    %v2434 = vunpack.c.l.b16 %v2164
    %v2435 = vunpack.c.h.b16 %v2164
    %v2436 = vunpack.c.l.b16 %v2165
    %v2437 = vunpack.c.h.b16 %v2165
    %v2438 = vunpack.c.l.b16 %v2166
    %v2439 = vunpack.c.h.b16 %v2166
    %v2440 = vunpack.c.l.b16 %v2167
    %v2441 = vunpack.c.h.b16 %v2167
    %v2442 = vunpack.c.l.b16 %v2168
    %v2443 = vunpack.c.h.b16 %v2168
    %v2444 = vunpack.c.l.b16 %v2169
    %v2445 = vunpack.c.h.b16 %v2169
    %v2446 = vunpack.c.l.b16 %v2170
    %v2447 = vunpack.c.h.b16 %v2170
    %v2448 = vunpack.c.l.b16 %v2171
    %v2449 = vunpack.c.h.b16 %v2171
    %v2450 = vunpack.c.l.b16 %v2172
    %v2451 = vunpack.c.h.b16 %v2172
    %v2452 = vunpack.c.l.b16 %v2173
    %v2453 = vunpack.c.h.b16 %v2173
    %v2454 = vunpack.c.l.b16 %v2174
    %v2455 = vunpack.c.h.b16 %v2174
    %v2456 = vunpack.c.l.b16 %v2175
    %v2457 = vunpack.c.h.b16 %v2175
    %v2458 = vunpack.c.l.b16 %v2176
    %v2459 = vunpack.c.h.b16 %v2176
    %v2460 = vunpack.c.l.b16 %v2177
    %v2461 = vunpack.c.h.b16 %v2177
    %v2462 = vunpack.c.l.b16 %v2178
    %v2463 = vunpack.c.h.b16 %v2178
    %v2464 = vunpack.c.l.b16 %v2179
    %v2465 = vunpack.c.h.b16 %v2179
    %v2466 = vunpack.c.l.b16 %v2180
    %v2467 = vunpack.c.h.b16 %v2180
    %v2468 = vunpack.c.l.b16 %v2181
    %v2469 = vunpack.c.h.b16 %v2181
    %v2470 = vunpack.c.l.b16 %v2182
    %v2471 = vunpack.c.h.b16 %v2182
    %v2472 = vunpack.c.l.b16 %v2183
    %v2473 = vunpack.c.h.b16 %v2183
    %v2474 = vunpack.c.l.b16 %v2184
    %v2475 = vunpack.c.h.b16 %v2184
    %v2476 = vunpack.c.l.b16 %v2185
    %v2477 = vunpack.c.h.b16 %v2185
    %v2478 = vunpack.c.l.b16 %v2186
    %v2479 = vunpack.c.h.b16 %v2186
    %v2480 = vunpack.c.l.b16 %v2187
    %v2481 = vunpack.c.h.b16 %v2187
    %v2482 = vunpack.c.l.b16 %v2188
    %v2483 = vunpack.c.h.b16 %v2188
    %v2484 = vunpack.c.l.b16 %v2189
    %v2485 = vunpack.c.h.b16 %v2189
    %v2486 = vunpack.c.l.b16 %v2190
    %v2487 = vunpack.c.h.b16 %v2190
    %v2488 = vunpack.c.l.b16 %v2191
    %v2489 = vunpack.c.h.b16 %v2191
    %v2490 = vunpack.c.l.b16 %v2192
    %v2491 = vunpack.c.h.b16 %v2192
    %v2492 = vunpack.c.l.b16 %v2193
    %v2493 = vunpack.c.h.b16 %v2193
    %v2494 = vunpack.c.l.b16 %v2194
    %v2495 = vunpack.c.h.b16 %v2194
    %v2496 = vunpack.c.l.b16 %v2195
    %v2497 = vunpack.c.h.b16 %v2195
    %v2498 = vunpack.c.l.b16 %v2196
    %v2499 = vunpack.c.h.b16 %v2196
    %v2500 = vunpack.c.l.b16 %v2197
    %v2501 = vunpack.c.h.b16 %v2197
    %v2502 = vunpack.c.l.b16 %v2198
    %v2503 = vunpack.c.h.b16 %v2198
    %v2504 = vunpack.c.l.b16 %v2199
    %v2505 = vunpack.c.h.b16 %v2199
    %v2506 = vunpack.c.l.b16 %v2200
    %v2507 = vunpack.c.h.b16 %v2200
    %v2508 = vunpack.c.l.b16 %v2201
    %v2509 = vunpack.c.h.b16 %v2201
    %v2510 = vunpack.c.l.b16 %v2202
    %v2511 = vunpack.c.h.b16 %v2202
    %v2512 = vunpack.c.l.b16 %v2203
    %v2513 = vunpack.c.h.b16 %v2203
    %v2514 = vunpack.c.l.b16 %v2204
    %v2515 = vunpack.c.h.b16 %v2204
    %v2516 = vunpack.c.l.b16 %v2205
    %v2517 = vunpack.c.h.b16 %v2205
    %v2518 = vunpack.c.l.b16 %v2206
    %v2519 = vunpack.c.h.b16 %v2206
    %v2520 = vunpack.c.l.b16 %v2207
    %v2521 = vunpack.c.h.b16 %v2207
    %v2522 = vunpack.c.l.b16 %v2208
    %v2523 = vunpack.c.h.b16 %v2208
    %v2524 = vunpack.c.l.b16 %v2209
    %v2525 = vunpack.c.h.b16 %v2209
    %v2526 = vunpack.c.l.b16 %v2210
    %v2527 = vunpack.c.h.b16 %v2210
    %v2528 = vunpack.c.l.b16 %v2211
    %v2529 = vunpack.c.h.b16 %v2211
    %v2530 = vunpack.c.l.b16 %v2212
    %v2531 = vunpack.c.h.b16 %v2212
    %v2532 = vunpack.c.l.b16 %v2213
    %v2533 = vunpack.c.h.b16 %v2213
    %v2534 = vunpack.c.l.b16 %v2214
    %v2535 = vunpack.c.h.b16 %v2214
    %v2536 = vunpack.c.l.b16 %v2215
    %v2537 = vunpack.c.h.b16 %v2215
    %v2538 = vunpack.c.l.b16 %v2216
    %v2539 = vunpack.c.h.b16 %v2216
    %v2540 = vunpack.c.l.b16 %v2217
    %v2541 = vunpack.c.h.b16 %v2217
    %v2542 = vunpack.c.l.b16 %v2218
    %v2543 = vunpack.c.h.b16 %v2218
    %v2544 = vunpack.c.l.b16 %v2219
    %v2545 = vunpack.c.h.b16 %v2219
    %v2546 = vunpack.c.l.b16 %v2220
    %v2547 = vunpack.c.h.b16 %v2220
    %v2548 = vunpack.c.l.b16 %v2221
    %v2549 = vunpack.c.h.b16 %v2221
    %v2550 = vunpack.c.l.b16 %v2222
    %v2551 = vunpack.c.h.b16 %v2222
    %v2552 = vunpack.c.l.b16 %v2223
    %v2553 = vunpack.c.h.b16 %v2223
    %v2554 = vunpack.c.l.b16 %v2224
    %v2555 = vunpack.c.h.b16 %v2224
    %v2556 = vunpack.c.l.b16 %v2225
    %v2557 = vunpack.c.h.b16 %v2225
    %v2558 = vunpack.c.l.b16 %v2226
    %v2559 = vunpack.c.h.b16 %v2226
    %v2560 = vunpack.c.l.b16 %v2227
    %v2561 = vunpack.c.h.b16 %v2227
    %v2562 = vunpack.c.l.b16 %v2228
    %v2563 = vunpack.c.h.b16 %v2228
    %v2564 = vunpack.c.l.b16 %v2229
    %v2565 = vunpack.c.h.b16 %v2229
    %v2566 = vunpack.c.l.b16 %v2230
    %v2567 = vunpack.c.h.b16 %v2230
    %v2568 = vunpack.c.l.b16 %v2231
    %v2569 = vunpack.c.h.b16 %v2231
    %v2570 = vunpack.c.l.b16 %v2232
    %v2571 = vunpack.c.h.b16 %v2232
    %v2572 = vunpack.c.l.b16 %v2233
    %v2573 = vunpack.c.h.b16 %v2233
    %v2574 = vunpack.c.l.b16 %v2234
    %v2575 = vunpack.c.h.b16 %v2234
    %v2576 = vunpack.c.l.b16 %v2235
    %v2577 = vunpack.c.h.b16 %v2235
    %v2578 = vunpack.c.l.b16 %v2236
    %v2579 = vunpack.c.h.b16 %v2236
    %v2580 = vunpack.c.l.b16 %v2237
    %v2581 = vunpack.c.h.b16 %v2237
    %v2582 = vunpack.c.l.b16 %v2238
    %v2583 = vunpack.c.h.b16 %v2238
    %v2584 = vunpack.c.l.b16 %v2239
    %v2585 = vunpack.c.h.b16 %v2239
    %v2586 = vunpack.c.l.b16 %v2240
    %v2587 = vunpack.c.h.b16 %v2240
    %v2588 = vunpack.c.l.b16 %v2241
    %v2589 = vunpack.c.h.b16 %v2241
    %v2590 = vunpack.c.l.b16 %v2242
    %v2591 = vunpack.c.h.b16 %v2242
    %v2592 = vunpack.c.l.b16 %v2243
    %v2593 = vunpack.c.h.b16 %v2243
    %v2594 = vunpack.c.l.b16 %v2244
    %v2595 = vunpack.c.h.b16 %v2244
    %v2596 = vunpack.c.l.b16 %v2245
    %v2597 = vunpack.c.h.b16 %v2245
    %v2598 = vunpack.c.l.b16 %v2246
    %v2599 = vunpack.c.h.b16 %v2246
    %v2600 = vunpack.c.l.b16 %v2247
    %v2601 = vunpack.c.h.b16 %v2247
    %v2602 = vunpack.c.l.b16 %v2248
    %v2603 = vunpack.c.h.b16 %v2248
    %v2604 = vunpack.c.l.b16 %v2249
    %v2605 = vunpack.c.h.b16 %v2249
    %v2606 = vunpack.c.l.b16 %v2250
    %v2607 = vunpack.c.h.b16 %v2250
    %v2608 = vunpack.c.l.b16 %v2251
    %v2609 = vunpack.c.h.b16 %v2251
    %v2610 = vunpack.c.l.b16 %v2252
    %v2611 = vunpack.c.h.b16 %v2252
    %v2612 = vunpack.c.l.b16 %v2253
    %v2613 = vunpack.c.h.b16 %v2253
    %v2614 = vunpack.c.l.b16 %v2254
    %v2615 = vunpack.c.h.b16 %v2254
    %v2616 = vunpack.c.l.b16 %v2255
    %v2617 = vunpack.c.h.b16 %v2255
    %v2618 = vunpack.c.l.b16 %v2256
    %v2619 = vunpack.c.h.b16 %v2256
    %v2620 = vunpack.c.l.b16 %v2257
    %v2621 = vunpack.c.h.b16 %v2257
    %v2622 = vunpack.c.l.b16 %v2258
    %v2623 = vunpack.c.h.b16 %v2258
    %v2624 = vunpack.c.l.b16 %v2259
    %v2625 = vunpack.c.h.b16 %v2259
    %v2626 = vunpack.c.l.b16 %v2260
    %v2627 = vunpack.c.h.b16 %v2260
    %v2628 = vunpack.c.l.b16 %v2261
    %v2629 = vunpack.c.h.b16 %v2261
    %v2630 = vunpack.c.l.b16 %v2262
    %v2631 = vunpack.c.h.b16 %v2262
    %v2632 = vunpack.c.l.b16 %v2263
    %v2633 = vunpack.c.h.b16 %v2263
    %v2634 = vunpack.c.l.b16 %v2264
    %v2635 = vunpack.c.h.b16 %v2264
    %v2636 = vunpack.c.l.b16 %v2265
    %v2637 = vunpack.c.h.b16 %v2265
    %v2638 = vunpack.c.l.b16 %v2266
    %v2639 = vunpack.c.h.b16 %v2266
    %v2640 = vunpack.c.l.b16 %v2267
    %v2641 = vunpack.c.h.b16 %v2267
    %v2642 = vunpack.c.l.b16 %v2268
    %v2643 = vunpack.c.h.b16 %v2268
    %v2644 = vunpack.c.l.b16 %v2269
    %v2645 = vunpack.c.h.b16 %v2269
    %v2646 = vunpack.c.l.b16 %v2270
    %v2647 = vunpack.c.h.b16 %v2270
    %v2648 = vunpack.c.l.b16 %v2271
    %v2649 = vunpack.c.h.b16 %v2271
    %v2650 = vunpack.c.l.b16 %v2272
    %v2651 = vunpack.c.h.b16 %v2272
    %v2652 = vunpack.c.l.b16 %v2273
    %v2653 = vunpack.c.h.b16 %v2273
    %v2654 = vunpack.c.l.b16 %v2274
    %v2655 = vunpack.c.h.b16 %v2274
    %v2656 = vunpack.c.l.b16 %v2275
    %v2657 = vunpack.c.h.b16 %v2275
    %v2658 = vunpack.c.l.b16 %v2276
    %v2659 = vunpack.c.h.b16 %v2276
    %v2660 = vunpack.c.l.b16 %v2277
    %v2661 = vunpack.c.h.b16 %v2277
    %v2662 = vpack.c.b16 %v2410, %v2406
    %v2663 = vpack.c.b16 %v2411, %v2407
    %v2664 = vpack.c.b16 %v2412, %v2408
    %v2665 = vpack.c.b16 %v2413, %v2409
    %v2666 = vpack.c.b16 %v2418, %v2414
    %v2667 = vpack.c.b16 %v2419, %v2415
    %v2668 = vpack.c.b16 %v2420, %v2416
    %v2669 = vpack.c.b16 %v2421, %v2417
    %v2670 = vpack.c.b16 %v2426, %v2422
    %v2671 = vpack.c.b16 %v2427, %v2423
    %v2672 = vpack.c.b16 %v2428, %v2424
    %v2673 = vpack.c.b16 %v2429, %v2425
    %v2674 = vpack.c.b16 %v2434, %v2430
    %v2675 = vpack.c.b16 %v2435, %v2431
    %v2676 = vpack.c.b16 %v2436, %v2432
    %v2677 = vpack.c.b16 %v2437, %v2433
    %v2678 = vpack.c.b16 %v2442, %v2438
    %v2679 = vpack.c.b16 %v2443, %v2439
    %v2680 = vpack.c.b16 %v2444, %v2440
    %v2681 = vpack.c.b16 %v2445, %v2441
    %v2682 = vpack.c.b16 %v2450, %v2446
    %v2683 = vpack.c.b16 %v2451, %v2447
    %v2684 = vpack.c.b16 %v2452, %v2448
    %v2685 = vpack.c.b16 %v2453, %v2449
    %v2686 = vpack.c.b16 %v2458, %v2454
    %v2687 = vpack.c.b16 %v2459, %v2455
    %v2688 = vpack.c.b16 %v2460, %v2456
    %v2689 = vpack.c.b16 %v2461, %v2457
    %v2690 = vpack.c.b16 %v2466, %v2462
    %v2691 = vpack.c.b16 %v2467, %v2463
    %v2692 = vpack.c.b16 %v2468, %v2464
    %v2693 = vpack.c.b16 %v2469, %v2465
    %v2694 = vpack.c.b16 %v2474, %v2470
    %v2695 = vpack.c.b16 %v2475, %v2471
    %v2696 = vpack.c.b16 %v2476, %v2472
    %v2697 = vpack.c.b16 %v2477, %v2473
    %v2698 = vpack.c.b16 %v2482, %v2478
    %v2699 = vpack.c.b16 %v2483, %v2479
    %v2700 = vpack.c.b16 %v2484, %v2480
    %v2701 = vpack.c.b16 %v2485, %v2481
    %v2702 = vpack.c.b16 %v2490, %v2486
    %v2703 = vpack.c.b16 %v2491, %v2487
    %v2704 = vpack.c.b16 %v2492, %v2488
    %v2705 = vpack.c.b16 %v2493, %v2489
    %v2706 = vpack.c.b16 %v2498, %v2494
    %v2707 = vpack.c.b16 %v2499, %v2495
    %v2708 = vpack.c.b16 %v2500, %v2496
    %v2709 = vpack.c.b16 %v2501, %v2497
    %v2710 = vpack.c.b16 %v2506, %v2502
    %v2711 = vpack.c.b16 %v2507, %v2503
    %v2712 = vpack.c.b16 %v2508, %v2504
    %v2713 = vpack.c.b16 %v2509, %v2505
    %v2714 = vpack.c.b16 %v2514, %v2510
    %v2715 = vpack.c.b16 %v2515, %v2511
    %v2716 = vpack.c.b16 %v2516, %v2512
    %v2717 = vpack.c.b16 %v2517, %v2513
    %v2718 = vpack.c.b16 %v2522, %v2518
    %v2719 = vpack.c.b16 %v2523, %v2519
    %v2720 = vpack.c.b16 %v2524, %v2520
    %v2721 = vpack.c.b16 %v2525, %v2521
    %v2722 = vpack.c.b16 %v2530, %v2526
    %v2723 = vpack.c.b16 %v2531, %v2527
    %v2724 = vpack.c.b16 %v2532, %v2528
    %v2725 = vpack.c.b16 %v2533, %v2529
    %v2726 = vpack.c.b16 %v2538, %v2534
    %v2727 = vpack.c.b16 %v2539, %v2535
    %v2728 = vpack.c.b16 %v2540, %v2536
    %v2729 = vpack.c.b16 %v2541, %v2537
    %v2730 = vpack.c.b16 %v2546, %v2542
    %v2731 = vpack.c.b16 %v2547, %v2543
    %v2732 = vpack.c.b16 %v2548, %v2544
    %v2733 = vpack.c.b16 %v2549, %v2545
    %v2734 = vpack.c.b16 %v2554, %v2550
    %v2735 = vpack.c.b16 %v2555, %v2551
    %v2736 = vpack.c.b16 %v2556, %v2552
    %v2737 = vpack.c.b16 %v2557, %v2553
    %v2738 = vpack.c.b16 %v2562, %v2558
    %v2739 = vpack.c.b16 %v2563, %v2559
    %v2740 = vpack.c.b16 %v2564, %v2560
    %v2741 = vpack.c.b16 %v2565, %v2561
    %v2742 = vpack.c.b16 %v2570, %v2566
    %v2743 = vpack.c.b16 %v2571, %v2567
    %v2744 = vpack.c.b16 %v2572, %v2568
    %v2745 = vpack.c.b16 %v2573, %v2569
    %v2746 = vpack.c.b16 %v2578, %v2574
    %v2747 = vpack.c.b16 %v2579, %v2575
    %v2748 = vpack.c.b16 %v2580, %v2576
    %v2749 = vpack.c.b16 %v2581, %v2577
    %v2750 = vpack.c.b16 %v2586, %v2582
    %v2751 = vpack.c.b16 %v2587, %v2583
    %v2752 = vpack.c.b16 %v2588, %v2584
    %v2753 = vpack.c.b16 %v2589, %v2585
    %v2754 = vpack.c.b16 %v2594, %v2590
    %v2755 = vpack.c.b16 %v2595, %v2591
    %v2756 = vpack.c.b16 %v2596, %v2592
    %v2757 = vpack.c.b16 %v2597, %v2593
    %v2758 = vpack.c.b16 %v2602, %v2598
    %v2759 = vpack.c.b16 %v2603, %v2599
    %v2760 = vpack.c.b16 %v2604, %v2600
    %v2761 = vpack.c.b16 %v2605, %v2601
    %v2762 = vpack.c.b16 %v2610, %v2606
    %v2763 = vpack.c.b16 %v2611, %v2607
    %v2764 = vpack.c.b16 %v2612, %v2608
    %v2765 = vpack.c.b16 %v2613, %v2609
    %v2766 = vpack.c.b16 %v2618, %v2614
    %v2767 = vpack.c.b16 %v2619, %v2615
    %v2768 = vpack.c.b16 %v2620, %v2616
    %v2769 = vpack.c.b16 %v2621, %v2617
    %v2770 = vpack.c.b16 %v2626, %v2622
    %v2771 = vpack.c.b16 %v2627, %v2623
    %v2772 = vpack.c.b16 %v2628, %v2624
    %v2773 = vpack.c.b16 %v2629, %v2625
    %v2774 = vpack.c.b16 %v2634, %v2630
    %v2775 = vpack.c.b16 %v2635, %v2631
    %v2776 = vpack.c.b16 %v2636, %v2632
    %v2777 = vpack.c.b16 %v2637, %v2633
    %v2778 = vpack.c.b16 %v2642, %v2638
    %v2779 = vpack.c.b16 %v2643, %v2639
    %v2780 = vpack.c.b16 %v2644, %v2640
    %v2781 = vpack.c.b16 %v2645, %v2641
    %v2782 = vpack.c.b16 %v2650, %v2646
    %v2783 = vpack.c.b16 %v2651, %v2647
    %v2784 = vpack.c.b16 %v2652, %v2648
    %v2785 = vpack.c.b16 %v2653, %v2649
    %v2786 = vpack.c.b16 %v2658, %v2654
    %v2787 = vpack.c.b16 %v2659, %v2655
    %v2788 = vpack.c.b16 %v2660, %v2656
    %v2789 = vpack.c.b16 %v2661, %v2657
    %2918 = vmatprep.subr.bf16.mxu0 %v2663
    %2919 = vmatpush1.bf16.msra.mxu0 %v2662
    %2920 = vmatprep.subr.bf16.mxu0 %v2667
    %2921 = vmatpush1.bf16.msra.mxu0 %v2666
    %2922 = vmatprep.subr.bf16.mxu0 %v2671
    %2923 = vmatpush1.bf16.msra.mxu0 %v2670
    %2924 = vmatprep.subr.bf16.mxu0 %v2675
    %2925 = vmatpush1.bf16.msra.mxu0 %v2674
    %2926 = vmatprep.subr.bf16.mxu0 %v2679
    %2927 = vmatpush1.bf16.msra.mxu0 %v2678
    %2928 = vmatprep.subr.bf16.mxu0 %v2683
    %2929 = vmatpush1.bf16.msra.mxu0 %v2682
    %2930 = vmatprep.subr.bf16.mxu0 %v2687
    %2931 = vmatpush1.bf16.msra.mxu0 %v2686
    %2932 = vmatprep.subr.bf16.mxu0 %v2691
    %2933 = vmatpush1.bf16.msra.mxu0 %v2690
    %2934 = vmatprep.subr.bf16.mxu0 %v2695
    %2935 = vmatpush1.bf16.msra.mxu0 %v2694
    %2936 = vmatprep.subr.bf16.mxu0 %v2699
    %2937 = vmatpush1.bf16.msra.mxu0 %v2698
    %2938 = vmatprep.subr.bf16.mxu0 %v2703
    %2939 = vmatpush1.bf16.msra.mxu0 %v2702
    %2940 = vmatprep.subr.bf16.mxu0 %v2707
    %2941 = vmatpush1.bf16.msra.mxu0 %v2706
    %2942 = vmatprep.subr.bf16.mxu0 %v2711
    %2943 = vmatpush1.bf16.msra.mxu0 %v2710
    %2944 = vmatprep.subr.bf16.mxu0 %v2715
    %2945 = vmatpush1.bf16.msra.mxu0 %v2714
    %2946 = vmatprep.subr.bf16.mxu0 %v2719
    %2947 = vmatpush1.bf16.msra.mxu0 %v2718
    %2948 = vmatprep.subr.bf16.mxu0 %v2723
    %2949 = vmatpush1.bf16.msra.mxu0 %v2722
    %2950 = vmatprep.mubr.bf16.mxu0 %v2147
    %2951 = vmatmul.mubr.bf16.gmra.mrb[0].mxu0 %v2146
    %v2952 = vpop.f32.mrb[0].mxu0
    %v2953 = vadd.f32 0.0, %v2952
    %v2954 = vpop.f32.mrb[0].mxu0
    %v2955 = vadd.f32 0.0, %v2954
    %v2956 = vpop.f32.mrb[0].mxu0
    %v2957 = vadd.f32 0.0, %v2956
    %v2958 = vpop.f32.mrb[0].mxu0
    %v2959 = vadd.f32 0.0, %v2958
    %2960 = vdwg.mxu0
    %2961 = vmatprep.subr.bf16.mxu0 %v2727
    %2962 = vmatpush1.bf16.msra.mxu0 %v2726
    %2963 = vmatprep.subr.bf16.mxu0 %v2731
    %2964 = vmatpush1.bf16.msra.mxu0 %v2730
    %2965 = vmatprep.subr.bf16.mxu0 %v2735
    %2966 = vmatpush1.bf16.msra.mxu0 %v2734
    %2967 = vmatprep.subr.bf16.mxu0 %v2739
    %2968 = vmatpush1.bf16.msra.mxu0 %v2738
    %2969 = vmatprep.subr.bf16.mxu0 %v2743
    %2970 = vmatpush1.bf16.msra.mxu0 %v2742
    %2971 = vmatprep.subr.bf16.mxu0 %v2747
    %2972 = vmatpush1.bf16.msra.mxu0 %v2746
    %2973 = vmatprep.subr.bf16.mxu0 %v2751
    %2974 = vmatpush1.bf16.msra.mxu0 %v2750
    %2975 = vmatprep.subr.bf16.mxu0 %v2755
    %2976 = vmatpush1.bf16.msra.mxu0 %v2754
    %2977 = vmatprep.subr.bf16.mxu0 %v2759
    %2978 = vmatpush1.bf16.msra.mxu0 %v2758
    %2979 = vmatprep.subr.bf16.mxu0 %v2763
    %2980 = vmatpush1.bf16.msra.mxu0 %v2762
    %2981 = vmatprep.subr.bf16.mxu0 %v2767
    %2982 = vmatpush1.bf16.msra.mxu0 %v2766
    %2983 = vmatprep.subr.bf16.mxu0 %v2771
    %2984 = vmatpush1.bf16.msra.mxu0 %v2770
    %2985 = vmatprep.subr.bf16.mxu0 %v2775
    %2986 = vmatpush1.bf16.msra.mxu0 %v2774
    %2987 = vmatprep.subr.bf16.mxu0 %v2779
    %2988 = vmatpush1.bf16.msra.mxu0 %v2778
    %2989 = vmatprep.subr.bf16.mxu0 %v2783
    %2990 = vmatpush1.bf16.msra.mxu0 %v2782
    %2991 = vmatprep.subr.bf16.mxu0 %v2787
    %2992 = vmatpush1.bf16.msra.mxu0 %v2786
    %2993 = vmatprep.mubr.bf16.mxu0 %v2149
    %2994 = vmatmul.mubr.bf16.gmra.mrb[0].mxu0 %v2148
    %v2995 = vpop.f32.mrb[0].mxu0
    %v2996 = vadd.f32 %v2953, %v2995
    %v2997 = vpop.f32.mrb[0].mxu0
    %v2998 = vadd.f32 %v2955, %v2997
    %v2999 = vpop.f32.mrb[0].mxu0
    %v3000 = vadd.f32 %v2957, %v2999
    %v3001 = vpop.f32.mrb[0].mxu0
    %v3002 = vadd.f32 %v2959, %v3001
    %3003 = vdwg.mxu0
    %3004 = vmatprep.subr.bf16.mxu0 %v2665
    %3005 = vmatpush1.bf16.msra.mxu0 %v2664
    %3006 = vmatprep.subr.bf16.mxu0 %v2669
    %3007 = vmatpush1.bf16.msra.mxu0 %v2668
    %3008 = vmatprep.subr.bf16.mxu0 %v2673
    %3009 = vmatpush1.bf16.msra.mxu0 %v2672
    %3010 = vmatprep.subr.bf16.mxu0 %v2677
    %3011 = vmatpush1.bf16.msra.mxu0 %v2676
    %3012 = vmatprep.subr.bf16.mxu0 %v2681
    %3013 = vmatpush1.bf16.msra.mxu0 %v2680
    %3014 = vmatprep.subr.bf16.mxu0 %v2685
    %3015 = vmatpush1.bf16.msra.mxu0 %v2684
    %3016 = vmatprep.subr.bf16.mxu0 %v2689
    %3017 = vmatpush1.bf16.msra.mxu0 %v2688
    %3018 = vmatprep.subr.bf16.mxu0 %v2693
    %3019 = vmatpush1.bf16.msra.mxu0 %v2692
    %3020 = vmatprep.subr.bf16.mxu0 %v2697
    %3021 = vmatpush1.bf16.msra.mxu0 %v2696
    %3022 = vmatprep.subr.bf16.mxu0 %v2701
    %3023 = vmatpush1.bf16.msra.mxu0 %v2700
    %3024 = vmatprep.subr.bf16.mxu0 %v2705
    %3025 = vmatpush1.bf16.msra.mxu0 %v2704
    %3026 = vmatprep.subr.bf16.mxu0 %v2709
    %3027 = vmatpush1.bf16.msra.mxu0 %v2708
    %3028 = vmatprep.subr.bf16.mxu0 %v2713
    %3029 = vmatpush1.bf16.msra.mxu0 %v2712
    %3030 = vmatprep.subr.bf16.mxu0 %v2717
    %3031 = vmatpush1.bf16.msra.mxu0 %v2716
    %3032 = vmatprep.subr.bf16.mxu0 %v2721
    %3033 = vmatpush1.bf16.msra.mxu0 %v2720
    %3034 = vmatprep.subr.bf16.mxu0 %v2725
    %3035 = vmatpush1.bf16.msra.mxu0 %v2724
    %3036 = vmatprep.mubr.bf16.mxu0 %v2147
    %3037 = vmatmul.mubr.bf16.gmra.mrb[0].mxu0 %v2146
    %v3038 = vpop.f32.mrb[0].mxu0
    %v3039 = vadd.f32 0.0, %v3038
    %v3040 = vpop.f32.mrb[0].mxu0
    %v3041 = vadd.f32 0.0, %v3040
    %v3042 = vpop.f32.mrb[0].mxu0
    %v3043 = vadd.f32 0.0, %v3042
    %v3044 = vpop.f32.mrb[0].mxu0
    %v3045 = vadd.f32 0.0, %v3044
    %3046 = vdwg.mxu0
    %3047 = vmatprep.subr.bf16.mxu0 %v2729
    %3048 = vmatpush1.bf16.msra.mxu0 %v2728
    %3049 = vmatprep.subr.bf16.mxu0 %v2733
    %3050 = vmatpush1.bf16.msra.mxu0 %v2732
    %3051 = vmatprep.subr.bf16.mxu0 %v2737
    %3052 = vmatpush1.bf16.msra.mxu0 %v2736
    %3053 = vmatprep.subr.bf16.mxu0 %v2741
    %3054 = vmatpush1.bf16.msra.mxu0 %v2740
    %3055 = vmatprep.subr.bf16.mxu0 %v2745
    %3056 = vmatpush1.bf16.msra.mxu0 %v2744
    %3057 = vmatprep.subr.bf16.mxu0 %v2749
    %3058 = vmatpush1.bf16.msra.mxu0 %v2748
    %3059 = vmatprep.subr.bf16.mxu0 %v2753
    %3060 = vmatpush1.bf16.msra.mxu0 %v2752
    %3061 = vmatprep.subr.bf16.mxu0 %v2757
    %3062 = vmatpush1.bf16.msra.mxu0 %v2756
    %3063 = vmatprep.subr.bf16.mxu0 %v2761
    %3064 = vmatpush1.bf16.msra.mxu0 %v2760
    %3065 = vmatprep.subr.bf16.mxu0 %v2765
    %3066 = vmatpush1.bf16.msra.mxu0 %v2764
    %3067 = vmatprep.subr.bf16.mxu0 %v2769
    %3068 = vmatpush1.bf16.msra.mxu0 %v2768
    %3069 = vmatprep.subr.bf16.mxu0 %v2773
    %3070 = vmatpush1.bf16.msra.mxu0 %v2772
    %3071 = vmatprep.subr.bf16.mxu0 %v2777
    %3072 = vmatpush1.bf16.msra.mxu0 %v2776
    %3073 = vmatprep.subr.bf16.mxu0 %v2781
    %3074 = vmatpush1.bf16.msra.mxu0 %v2780
    %3075 = vmatprep.subr.bf16.mxu0 %v2785
    %3076 = vmatpush1.bf16.msra.mxu0 %v2784
    %3077 = vmatprep.subr.bf16.mxu0 %v2789
    %3078 = vmatpush1.bf16.msra.mxu0 %v2788
    %3079 = vmatprep.mubr.bf16.mxu0 %v2149
    %3080 = vmatmul.mubr.bf16.gmra.mrb[0].mxu0 %v2148
    %v3081 = vpop.f32.mrb[0].mxu0
    %v3082 = vadd.f32 %v3039, %v3081
    %v3083 = vpop.f32.mrb[0].mxu0
    %v3084 = vadd.f32 %v3041, %v3083
    %v3085 = vpop.f32.mrb[0].mxu0
    %v3086 = vadd.f32 %v3043, %v3085
    %v3087 = vpop.f32.mrb[0].mxu0
    %v3088 = vadd.f32 %v3045, %v3087
    %3089 = vdwg.mxu0
    %v3218 = vunpack.c.l.b16 %v1047
    %v3219 = vunpack.c.h.b16 %v1047
    %v3220 = vunpack.c.l.b16 %v1048
    %v3221 = vunpack.c.h.b16 %v1048
    %v3222 = vunpack.c.l.b16 %v1049
    %v3223 = vunpack.c.h.b16 %v1049
    %v3224 = vunpack.c.l.b16 %v1050
    %v3225 = vunpack.c.h.b16 %v1050
    %v3226 = vunpack.c.l.b16 %v1051
    %v3227 = vunpack.c.h.b16 %v1051
    %v3228 = vunpack.c.l.b16 %v1052
    %v3229 = vunpack.c.h.b16 %v1052
    %v3230 = vunpack.c.l.b16 %v1053
    %v3231 = vunpack.c.h.b16 %v1053
    %v3232 = vunpack.c.l.b16 %v1054
    %v3233 = vunpack.c.h.b16 %v1054
    %v3234 = vunpack.c.l.b16 %v1055
    %v3235 = vunpack.c.h.b16 %v1055
    %v3236 = vunpack.c.l.b16 %v1056
    %v3237 = vunpack.c.h.b16 %v1056
    %v3238 = vunpack.c.l.b16 %v1057
    %v3239 = vunpack.c.h.b16 %v1057
    %v3240 = vunpack.c.l.b16 %v1058
    %v3241 = vunpack.c.h.b16 %v1058
    %v3242 = vunpack.c.l.b16 %v1059
    %v3243 = vunpack.c.h.b16 %v1059
    %v3244 = vunpack.c.l.b16 %v1060
    %v3245 = vunpack.c.h.b16 %v1060
    %v3246 = vunpack.c.l.b16 %v1061
    %v3247 = vunpack.c.h.b16 %v1061
    %v3248 = vunpack.c.l.b16 %v1062
    %v3249 = vunpack.c.h.b16 %v1062
    %v3250 = vunpack.c.l.b16 %v1063
    %v3251 = vunpack.c.h.b16 %v1063
    %v3252 = vunpack.c.l.b16 %v1064
    %v3253 = vunpack.c.h.b16 %v1064
    %v3254 = vunpack.c.l.b16 %v1065
    %v3255 = vunpack.c.h.b16 %v1065
    %v3256 = vunpack.c.l.b16 %v1066
    %v3257 = vunpack.c.h.b16 %v1066
    %v3258 = vunpack.c.l.b16 %v1067
    %v3259 = vunpack.c.h.b16 %v1067
    %v3260 = vunpack.c.l.b16 %v1068
    %v3261 = vunpack.c.h.b16 %v1068
    %v3262 = vunpack.c.l.b16 %v1069
    %v3263 = vunpack.c.h.b16 %v1069
    %v3264 = vunpack.c.l.b16 %v1070
    %v3265 = vunpack.c.h.b16 %v1070
    %v3266 = vunpack.c.l.b16 %v1071
    %v3267 = vunpack.c.h.b16 %v1071
    %v3268 = vunpack.c.l.b16 %v1072
    %v3269 = vunpack.c.h.b16 %v1072
    %v3270 = vunpack.c.l.b16 %v1073
    %v3271 = vunpack.c.h.b16 %v1073
    %v3272 = vunpack.c.l.b16 %v1074
    %v3273 = vunpack.c.h.b16 %v1074
    %v3274 = vunpack.c.l.b16 %v1075
    %v3275 = vunpack.c.h.b16 %v1075
    %v3276 = vunpack.c.l.b16 %v1076
    %v3277 = vunpack.c.h.b16 %v1076
    %v3278 = vunpack.c.l.b16 %v1077
    %v3279 = vunpack.c.h.b16 %v1077
    %v3280 = vunpack.c.l.b16 %v1078
    %v3281 = vunpack.c.h.b16 %v1078
    %v3282 = vunpack.c.l.b16 %v1079
    %v3283 = vunpack.c.h.b16 %v1079
    %v3284 = vunpack.c.l.b16 %v1080
    %v3285 = vunpack.c.h.b16 %v1080
    %v3286 = vunpack.c.l.b16 %v1081
    %v3287 = vunpack.c.h.b16 %v1081
    %v3288 = vunpack.c.l.b16 %v1082
    %v3289 = vunpack.c.h.b16 %v1082
    %v3290 = vunpack.c.l.b16 %v1083
    %v3291 = vunpack.c.h.b16 %v1083
    %v3292 = vunpack.c.l.b16 %v1084
    %v3293 = vunpack.c.h.b16 %v1084
    %v3294 = vunpack.c.l.b16 %v1085
    %v3295 = vunpack.c.h.b16 %v1085
    %v3296 = vunpack.c.l.b16 %v1086
    %v3297 = vunpack.c.h.b16 %v1086
    %v3298 = vunpack.c.l.b16 %v1087
    %v3299 = vunpack.c.h.b16 %v1087
    %v3300 = vunpack.c.l.b16 %v1088
    %v3301 = vunpack.c.h.b16 %v1088
    %v3302 = vunpack.c.l.b16 %v1089
    %v3303 = vunpack.c.h.b16 %v1089
    %v3304 = vunpack.c.l.b16 %v1090
    %v3305 = vunpack.c.h.b16 %v1090
    %v3306 = vunpack.c.l.b16 %v1091
    %v3307 = vunpack.c.h.b16 %v1091
    %v3308 = vunpack.c.l.b16 %v1092
    %v3309 = vunpack.c.h.b16 %v1092
    %v3310 = vunpack.c.l.b16 %v1093
    %v3311 = vunpack.c.h.b16 %v1093
    %v3312 = vunpack.c.l.b16 %v1094
    %v3313 = vunpack.c.h.b16 %v1094
    %v3314 = vunpack.c.l.b16 %v1095
    %v3315 = vunpack.c.h.b16 %v1095
    %v3316 = vunpack.c.l.b16 %v1096
    %v3317 = vunpack.c.h.b16 %v1096
    %v3318 = vunpack.c.l.b16 %v1097
    %v3319 = vunpack.c.h.b16 %v1097
    %v3320 = vunpack.c.l.b16 %v1098
    %v3321 = vunpack.c.h.b16 %v1098
    %v3322 = vunpack.c.l.b16 %v1099
    %v3323 = vunpack.c.h.b16 %v1099
    %v3324 = vunpack.c.l.b16 %v1100
    %v3325 = vunpack.c.h.b16 %v1100
    %v3326 = vunpack.c.l.b16 %v1101
    %v3327 = vunpack.c.h.b16 %v1101
    %v3328 = vunpack.c.l.b16 %v1102
    %v3329 = vunpack.c.h.b16 %v1102
    %v3330 = vunpack.c.l.b16 %v1103
    %v3331 = vunpack.c.h.b16 %v1103
    %v3332 = vunpack.c.l.b16 %v1104
    %v3333 = vunpack.c.h.b16 %v1104
    %v3334 = vunpack.c.l.b16 %v1105
    %v3335 = vunpack.c.h.b16 %v1105
    %v3336 = vunpack.c.l.b16 %v1106
    %v3337 = vunpack.c.h.b16 %v1106
    %v3338 = vunpack.c.l.b16 %v1107
    %v3339 = vunpack.c.h.b16 %v1107
    %v3340 = vunpack.c.l.b16 %v1108
    %v3341 = vunpack.c.h.b16 %v1108
    %v3342 = vunpack.c.l.b16 %v1109
    %v3343 = vunpack.c.h.b16 %v1109
    %v3344 = vunpack.c.l.b16 %v1110
    %v3345 = vunpack.c.h.b16 %v1110
    %v3346 = vunpack.c.l.b16 %v1111
    %v3347 = vunpack.c.h.b16 %v1111
    %v3348 = vunpack.c.l.b16 %v1112
    %v3349 = vunpack.c.h.b16 %v1112
    %v3350 = vunpack.c.l.b16 %v1113
    %v3351 = vunpack.c.h.b16 %v1113
    %v3352 = vunpack.c.l.b16 %v1114
    %v3353 = vunpack.c.h.b16 %v1114
    %v3354 = vunpack.c.l.b16 %v1115
    %v3355 = vunpack.c.h.b16 %v1115
    %v3356 = vunpack.c.l.b16 %v1116
    %v3357 = vunpack.c.h.b16 %v1116
    %v3358 = vunpack.c.l.b16 %v1117
    %v3359 = vunpack.c.h.b16 %v1117
    %v3360 = vunpack.c.l.b16 %v1118
    %v3361 = vunpack.c.h.b16 %v1118
    %v3362 = vunpack.c.l.b16 %v1119
    %v3363 = vunpack.c.h.b16 %v1119
    %v3364 = vunpack.c.l.b16 %v1120
    %v3365 = vunpack.c.h.b16 %v1120
    %v3366 = vunpack.c.l.b16 %v1121
    %v3367 = vunpack.c.h.b16 %v1121
    %v3368 = vunpack.c.l.b16 %v1122
    %v3369 = vunpack.c.h.b16 %v1122
    %v3370 = vunpack.c.l.b16 %v1123
    %v3371 = vunpack.c.h.b16 %v1123
    %v3372 = vunpack.c.l.b16 %v1124
    %v3373 = vunpack.c.h.b16 %v1124
    %v3374 = vunpack.c.l.b16 %v1125
    %v3375 = vunpack.c.h.b16 %v1125
    %v3376 = vunpack.c.l.b16 %v1126
    %v3377 = vunpack.c.h.b16 %v1126
    %v3378 = vunpack.c.l.b16 %v1127
    %v3379 = vunpack.c.h.b16 %v1127
    %v3380 = vunpack.c.l.b16 %v1128
    %v3381 = vunpack.c.h.b16 %v1128
    %v3382 = vunpack.c.l.b16 %v1129
    %v3383 = vunpack.c.h.b16 %v1129
    %v3384 = vunpack.c.l.b16 %v1130
    %v3385 = vunpack.c.h.b16 %v1130
    %v3386 = vunpack.c.l.b16 %v1131
    %v3387 = vunpack.c.h.b16 %v1131
    %v3388 = vunpack.c.l.b16 %v1132
    %v3389 = vunpack.c.h.b16 %v1132
    %v3390 = vunpack.c.l.b16 %v1133
    %v3391 = vunpack.c.h.b16 %v1133
    %v3392 = vunpack.c.l.b16 %v1134
    %v3393 = vunpack.c.h.b16 %v1134
    %v3394 = vunpack.c.l.b16 %v1135
    %v3395 = vunpack.c.h.b16 %v1135
    %v3396 = vunpack.c.l.b16 %v1136
    %v3397 = vunpack.c.h.b16 %v1136
    %v3398 = vunpack.c.l.b16 %v1137
    %v3399 = vunpack.c.h.b16 %v1137
    %v3400 = vunpack.c.l.b16 %v1138
    %v3401 = vunpack.c.h.b16 %v1138
    %v3402 = vunpack.c.l.b16 %v1139
    %v3403 = vunpack.c.h.b16 %v1139
    %v3404 = vunpack.c.l.b16 %v1140
    %v3405 = vunpack.c.h.b16 %v1140
    %v3406 = vunpack.c.l.b16 %v1141
    %v3407 = vunpack.c.h.b16 %v1141
    %v3408 = vunpack.c.l.b16 %v1142
    %v3409 = vunpack.c.h.b16 %v1142
    %v3410 = vunpack.c.l.b16 %v1143
    %v3411 = vunpack.c.h.b16 %v1143
    %v3412 = vunpack.c.l.b16 %v1144
    %v3413 = vunpack.c.h.b16 %v1144
    %v3414 = vunpack.c.l.b16 %v1145
    %v3415 = vunpack.c.h.b16 %v1145
    %v3416 = vunpack.c.l.b16 %v1146
    %v3417 = vunpack.c.h.b16 %v1146
    %v3418 = vunpack.c.l.b16 %v1147
    %v3419 = vunpack.c.h.b16 %v1147
    %v3420 = vunpack.c.l.b16 %v1148
    %v3421 = vunpack.c.h.b16 %v1148
    %v3422 = vunpack.c.l.b16 %v1149
    %v3423 = vunpack.c.h.b16 %v1149
    %v3424 = vunpack.c.l.b16 %v1150
    %v3425 = vunpack.c.h.b16 %v1150
    %v3426 = vunpack.c.l.b16 %v1151
    %v3427 = vunpack.c.h.b16 %v1151
    %v3428 = vunpack.c.l.b16 %v1152
    %v3429 = vunpack.c.h.b16 %v1152
    %v3430 = vunpack.c.l.b16 %v1153
    %v3431 = vunpack.c.h.b16 %v1153
    %v3432 = vunpack.c.l.b16 %v1154
    %v3433 = vunpack.c.h.b16 %v1154
    %v3434 = vunpack.c.l.b16 %v1155
    %v3435 = vunpack.c.h.b16 %v1155
    %v3436 = vunpack.c.l.b16 %v1156
    %v3437 = vunpack.c.h.b16 %v1156
    %v3438 = vunpack.c.l.b16 %v1157
    %v3439 = vunpack.c.h.b16 %v1157
    %v3440 = vunpack.c.l.b16 %v1158
    %v3441 = vunpack.c.h.b16 %v1158
    %v3442 = vunpack.c.l.b16 %v1159
    %v3443 = vunpack.c.h.b16 %v1159
    %v3444 = vunpack.c.l.b16 %v1160
    %v3445 = vunpack.c.h.b16 %v1160
    %v3446 = vunpack.c.l.b16 %v1161
    %v3447 = vunpack.c.h.b16 %v1161
    %v3448 = vunpack.c.l.b16 %v1162
    %v3449 = vunpack.c.h.b16 %v1162
    %v3450 = vunpack.c.l.b16 %v1163
    %v3451 = vunpack.c.h.b16 %v1163
    %v3452 = vunpack.c.l.b16 %v1164
    %v3453 = vunpack.c.h.b16 %v1164
    %v3454 = vunpack.c.l.b16 %v1165
    %v3455 = vunpack.c.h.b16 %v1165
    %v3456 = vunpack.c.l.b16 %v1166
    %v3457 = vunpack.c.h.b16 %v1166
    %v3458 = vunpack.c.l.b16 %v1167
    %v3459 = vunpack.c.h.b16 %v1167
    %v3460 = vunpack.c.l.b16 %v1168
    %v3461 = vunpack.c.h.b16 %v1168
    %v3462 = vunpack.c.l.b16 %v1169
    %v3463 = vunpack.c.h.b16 %v1169
    %v3464 = vunpack.c.l.b16 %v1170
    %v3465 = vunpack.c.h.b16 %v1170
    %v3466 = vunpack.c.l.b16 %v1171
    %v3467 = vunpack.c.h.b16 %v1171
    %v3468 = vunpack.c.l.b16 %v1172
    %v3469 = vunpack.c.h.b16 %v1172
    %v3470 = vunpack.c.l.b16 %v1173
    %v3471 = vunpack.c.h.b16 %v1173
    %v3472 = vunpack.c.l.b16 %v1174
    %v3473 = vunpack.c.h.b16 %v1174
    %v3474 = vpack.c.b16 %v3222, %v3218
    %v3475 = vpack.c.b16 %v3223, %v3219
    %v3476 = vpack.c.b16 %v3224, %v3220
    %v3477 = vpack.c.b16 %v3225, %v3221
    %v3478 = vpack.c.b16 %v3230, %v3226
    %v3479 = vpack.c.b16 %v3231, %v3227
    %v3480 = vpack.c.b16 %v3232, %v3228
    %v3481 = vpack.c.b16 %v3233, %v3229
    %v3482 = vpack.c.b16 %v3238, %v3234
    %v3483 = vpack.c.b16 %v3239, %v3235
    %v3484 = vpack.c.b16 %v3240, %v3236
    %v3485 = vpack.c.b16 %v3241, %v3237
    %v3486 = vpack.c.b16 %v3246, %v3242
    %v3487 = vpack.c.b16 %v3247, %v3243
    %v3488 = vpack.c.b16 %v3248, %v3244
    %v3489 = vpack.c.b16 %v3249, %v3245
    %v3490 = vpack.c.b16 %v3254, %v3250
    %v3491 = vpack.c.b16 %v3255, %v3251
    %v3492 = vpack.c.b16 %v3256, %v3252
    %v3493 = vpack.c.b16 %v3257, %v3253
    %v3494 = vpack.c.b16 %v3262, %v3258
    %v3495 = vpack.c.b16 %v3263, %v3259
    %v3496 = vpack.c.b16 %v3264, %v3260
    %v3497 = vpack.c.b16 %v3265, %v3261
    %v3498 = vpack.c.b16 %v3270, %v3266
    %v3499 = vpack.c.b16 %v3271, %v3267
    %v3500 = vpack.c.b16 %v3272, %v3268
    %v3501 = vpack.c.b16 %v3273, %v3269
    %v3502 = vpack.c.b16 %v3278, %v3274
    %v3503 = vpack.c.b16 %v3279, %v3275
    %v3504 = vpack.c.b16 %v3280, %v3276
    %v3505 = vpack.c.b16 %v3281, %v3277
    %v3506 = vpack.c.b16 %v3286, %v3282
    %v3507 = vpack.c.b16 %v3287, %v3283
    %v3508 = vpack.c.b16 %v3288, %v3284
    %v3509 = vpack.c.b16 %v3289, %v3285
    %v3510 = vpack.c.b16 %v3294, %v3290
    %v3511 = vpack.c.b16 %v3295, %v3291
    %v3512 = vpack.c.b16 %v3296, %v3292
    %v3513 = vpack.c.b16 %v3297, %v3293
    %v3514 = vpack.c.b16 %v3302, %v3298
    %v3515 = vpack.c.b16 %v3303, %v3299
    %v3516 = vpack.c.b16 %v3304, %v3300
    %v3517 = vpack.c.b16 %v3305, %v3301
    %v3518 = vpack.c.b16 %v3310, %v3306
    %v3519 = vpack.c.b16 %v3311, %v3307
    %v3520 = vpack.c.b16 %v3312, %v3308
    %v3521 = vpack.c.b16 %v3313, %v3309
    %v3522 = vpack.c.b16 %v3318, %v3314
    %v3523 = vpack.c.b16 %v3319, %v3315
    %v3524 = vpack.c.b16 %v3320, %v3316
    %v3525 = vpack.c.b16 %v3321, %v3317
    %v3526 = vpack.c.b16 %v3326, %v3322
    %v3527 = vpack.c.b16 %v3327, %v3323
    %v3528 = vpack.c.b16 %v3328, %v3324
    %v3529 = vpack.c.b16 %v3329, %v3325
    %v3530 = vpack.c.b16 %v3334, %v3330
    %v3531 = vpack.c.b16 %v3335, %v3331
    %v3532 = vpack.c.b16 %v3336, %v3332
    %v3533 = vpack.c.b16 %v3337, %v3333
    %v3534 = vpack.c.b16 %v3342, %v3338
    %v3535 = vpack.c.b16 %v3343, %v3339
    %v3536 = vpack.c.b16 %v3344, %v3340
    %v3537 = vpack.c.b16 %v3345, %v3341
    %v3538 = vpack.c.b16 %v3350, %v3346
    %v3539 = vpack.c.b16 %v3351, %v3347
    %v3540 = vpack.c.b16 %v3352, %v3348
    %v3541 = vpack.c.b16 %v3353, %v3349
    %v3542 = vpack.c.b16 %v3358, %v3354
    %v3543 = vpack.c.b16 %v3359, %v3355
    %v3544 = vpack.c.b16 %v3360, %v3356
    %v3545 = vpack.c.b16 %v3361, %v3357
    %v3546 = vpack.c.b16 %v3366, %v3362
    %v3547 = vpack.c.b16 %v3367, %v3363
    %v3548 = vpack.c.b16 %v3368, %v3364
    %v3549 = vpack.c.b16 %v3369, %v3365
    %v3550 = vpack.c.b16 %v3374, %v3370
    %v3551 = vpack.c.b16 %v3375, %v3371
    %v3552 = vpack.c.b16 %v3376, %v3372
    %v3553 = vpack.c.b16 %v3377, %v3373
    %v3554 = vpack.c.b16 %v3382, %v3378
    %v3555 = vpack.c.b16 %v3383, %v3379
    %v3556 = vpack.c.b16 %v3384, %v3380
    %v3557 = vpack.c.b16 %v3385, %v3381
    %v3558 = vpack.c.b16 %v3390, %v3386
    %v3559 = vpack.c.b16 %v3391, %v3387
    %v3560 = vpack.c.b16 %v3392, %v3388
    %v3561 = vpack.c.b16 %v3393, %v3389
    %v3562 = vpack.c.b16 %v3398, %v3394
    %v3563 = vpack.c.b16 %v3399, %v3395
    %v3564 = vpack.c.b16 %v3400, %v3396
    %v3565 = vpack.c.b16 %v3401, %v3397
    %v3566 = vpack.c.b16 %v3406, %v3402
    %v3567 = vpack.c.b16 %v3407, %v3403
    %v3568 = vpack.c.b16 %v3408, %v3404
    %v3569 = vpack.c.b16 %v3409, %v3405
    %v3570 = vpack.c.b16 %v3414, %v3410
    %v3571 = vpack.c.b16 %v3415, %v3411
    %v3572 = vpack.c.b16 %v3416, %v3412
    %v3573 = vpack.c.b16 %v3417, %v3413
    %v3574 = vpack.c.b16 %v3422, %v3418
    %v3575 = vpack.c.b16 %v3423, %v3419
    %v3576 = vpack.c.b16 %v3424, %v3420
    %v3577 = vpack.c.b16 %v3425, %v3421
    %v3578 = vpack.c.b16 %v3430, %v3426
    %v3579 = vpack.c.b16 %v3431, %v3427
    %v3580 = vpack.c.b16 %v3432, %v3428
    %v3581 = vpack.c.b16 %v3433, %v3429
    %v3582 = vpack.c.b16 %v3438, %v3434
    %v3583 = vpack.c.b16 %v3439, %v3435
    %v3584 = vpack.c.b16 %v3440, %v3436
    %v3585 = vpack.c.b16 %v3441, %v3437
    %v3586 = vpack.c.b16 %v3446, %v3442
    %v3587 = vpack.c.b16 %v3447, %v3443
    %v3588 = vpack.c.b16 %v3448, %v3444
    %v3589 = vpack.c.b16 %v3449, %v3445
    %v3590 = vpack.c.b16 %v3454, %v3450
    %v3591 = vpack.c.b16 %v3455, %v3451
    %v3592 = vpack.c.b16 %v3456, %v3452
    %v3593 = vpack.c.b16 %v3457, %v3453
    %v3594 = vpack.c.b16 %v3462, %v3458
    %v3595 = vpack.c.b16 %v3463, %v3459
    %v3596 = vpack.c.b16 %v3464, %v3460
    %v3597 = vpack.c.b16 %v3465, %v3461
    %v3598 = vpack.c.b16 %v3470, %v3466
    %v3599 = vpack.c.b16 %v3471, %v3467
    %v3600 = vpack.c.b16 %v3472, %v3468
    %v3601 = vpack.c.b16 %v3473, %v3469
    %3730 = vmatprep.subr.bf16.mxu0 %v3475
    %3731 = vmatpush1.bf16.msra.mxu0 %v3474
    %3732 = vmatprep.subr.bf16.mxu0 %v3479
    %3733 = vmatpush1.bf16.msra.mxu0 %v3478
    %3734 = vmatprep.subr.bf16.mxu0 %v3483
    %3735 = vmatpush1.bf16.msra.mxu0 %v3482
    %3736 = vmatprep.subr.bf16.mxu0 %v3487
    %3737 = vmatpush1.bf16.msra.mxu0 %v3486
    %3738 = vmatprep.subr.bf16.mxu0 %v3491
    %3739 = vmatpush1.bf16.msra.mxu0 %v3490
    %3740 = vmatprep.subr.bf16.mxu0 %v3495
    %3741 = vmatpush1.bf16.msra.mxu0 %v3494
    %3742 = vmatprep.subr.bf16.mxu0 %v3499
    %3743 = vmatpush1.bf16.msra.mxu0 %v3498
    %3744 = vmatprep.subr.bf16.mxu0 %v3503
    %3745 = vmatpush1.bf16.msra.mxu0 %v3502
    %3746 = vmatprep.subr.bf16.mxu0 %v3507
    %3747 = vmatpush1.bf16.msra.mxu0 %v3506
    %3748 = vmatprep.subr.bf16.mxu0 %v3511
    %3749 = vmatpush1.bf16.msra.mxu0 %v3510
    %3750 = vmatprep.subr.bf16.mxu0 %v3515
    %3751 = vmatpush1.bf16.msra.mxu0 %v3514
    %3752 = vmatprep.subr.bf16.mxu0 %v3519
    %3753 = vmatpush1.bf16.msra.mxu0 %v3518
    %3754 = vmatprep.subr.bf16.mxu0 %v3523
    %3755 = vmatpush1.bf16.msra.mxu0 %v3522
    %3756 = vmatprep.subr.bf16.mxu0 %v3527
    %3757 = vmatpush1.bf16.msra.mxu0 %v3526
    %3758 = vmatprep.subr.bf16.mxu0 %v3531
    %3759 = vmatpush1.bf16.msra.mxu0 %v3530
    %3760 = vmatprep.subr.bf16.mxu0 %v3535
    %3761 = vmatpush1.bf16.msra.mxu0 %v3534
    %3762 = vmatprep.mubr.bf16.mxu0 %v1044
    %3763 = vmatmul.mubr.bf16.gmra.mrb[0].mxu0 %v1043
    %v3764 = vpop.f32.mrb[0].mxu0
    %v3765 = vadd.f32 %v2996, %v3764
    %v3766 = vpop.f32.mrb[0].mxu0
    %v3767 = vadd.f32 %v2998, %v3766
    %v3768 = vpop.f32.mrb[0].mxu0
    %v3769 = vadd.f32 %v3000, %v3768
    %v3770 = vpop.f32.mrb[0].mxu0
    %v3771 = vadd.f32 %v3002, %v3770
    %3772 = vdwg.mxu0
    %3773 = vmatprep.subr.bf16.mxu0 %v3539
    %3774 = vmatpush1.bf16.msra.mxu0 %v3538
    %3775 = vmatprep.subr.bf16.mxu0 %v3543
    %3776 = vmatpush1.bf16.msra.mxu0 %v3542
    %3777 = vmatprep.subr.bf16.mxu0 %v3547
    %3778 = vmatpush1.bf16.msra.mxu0 %v3546
    %3779 = vmatprep.subr.bf16.mxu0 %v3551
    %3780 = vmatpush1.bf16.msra.mxu0 %v3550
    %3781 = vmatprep.subr.bf16.mxu0 %v3555
    %3782 = vmatpush1.bf16.msra.mxu0 %v3554
    %3783 = vmatprep.subr.bf16.mxu0 %v3559
    %3784 = vmatpush1.bf16.msra.mxu0 %v3558
    %3785 = vmatprep.subr.bf16.mxu0 %v3563
    %3786 = vmatpush1.bf16.msra.mxu0 %v3562
    %3787 = vmatprep.subr.bf16.mxu0 %v3567
    %3788 = vmatpush1.bf16.msra.mxu0 %v3566
    %3789 = vmatprep.subr.bf16.mxu0 %v3571
    %3790 = vmatpush1.bf16.msra.mxu0 %v3570
    %3791 = vmatprep.subr.bf16.mxu0 %v3575
    %3792 = vmatpush1.bf16.msra.mxu0 %v3574
    %3793 = vmatprep.subr.bf16.mxu0 %v3579
    %3794 = vmatpush1.bf16.msra.mxu0 %v3578
    %3795 = vmatprep.subr.bf16.mxu0 %v3583
    %3796 = vmatpush1.bf16.msra.mxu0 %v3582
    %3797 = vmatprep.subr.bf16.mxu0 %v3587
    %3798 = vmatpush1.bf16.msra.mxu0 %v3586
    %3799 = vmatprep.subr.bf16.mxu0 %v3591
    %3800 = vmatpush1.bf16.msra.mxu0 %v3590
    %3801 = vmatprep.subr.bf16.mxu0 %v3595
    %3802 = vmatpush1.bf16.msra.mxu0 %v3594
    %3803 = vmatprep.subr.bf16.mxu0 %v3599
    %3804 = vmatpush1.bf16.msra.mxu0 %v3598
    %3805 = vmatprep.mubr.bf16.mxu0 %v1046
    %3806 = vmatmul.mubr.bf16.gmra.mrb[0].mxu0 %v1045
    %v3807 = vpop.f32.mrb[0].mxu0
    %v3808 = vadd.f32 %v3765, %v3807
    %v3809 = vpop.f32.mrb[0].mxu0
    %v3810 = vadd.f32 %v3767, %v3809
    %v3811 = vpop.f32.mrb[0].mxu0
    %v3812 = vadd.f32 %v3769, %v3811
    %v3813 = vpop.f32.mrb[0].mxu0
    %v3814 = vadd.f32 %v3771, %v3813
    %3815 = vdwg.mxu0
    %3816 = vmatprep.subr.bf16.mxu0 %v3477
    %3817 = vmatpush1.bf16.msra.mxu0 %v3476
    %3818 = vmatprep.subr.bf16.mxu0 %v3481
    %3819 = vmatpush1.bf16.msra.mxu0 %v3480
    %3820 = vmatprep.subr.bf16.mxu0 %v3485
    %3821 = vmatpush1.bf16.msra.mxu0 %v3484
    %3822 = vmatprep.subr.bf16.mxu0 %v3489
    %3823 = vmatpush1.bf16.msra.mxu0 %v3488
    %3824 = vmatprep.subr.bf16.mxu0 %v3493
    %3825 = vmatpush1.bf16.msra.mxu0 %v3492
    %3826 = vmatprep.subr.bf16.mxu0 %v3497
    %3827 = vmatpush1.bf16.msra.mxu0 %v3496
    %3828 = vmatprep.subr.bf16.mxu0 %v3501
    %3829 = vmatpush1.bf16.msra.mxu0 %v3500
    %3830 = vmatprep.subr.bf16.mxu0 %v3505
    %3831 = vmatpush1.bf16.msra.mxu0 %v3504
    %3832 = vmatprep.subr.bf16.mxu0 %v3509
    %3833 = vmatpush1.bf16.msra.mxu0 %v3508
    %3834 = vmatprep.subr.bf16.mxu0 %v3513
    %3835 = vmatpush1.bf16.msra.mxu0 %v3512
    %3836 = vmatprep.subr.bf16.mxu0 %v3517
    %3837 = vmatpush1.bf16.msra.mxu0 %v3516
    %3838 = vmatprep.subr.bf16.mxu0 %v3521
    %3839 = vmatpush1.bf16.msra.mxu0 %v3520
    %3840 = vmatprep.subr.bf16.mxu0 %v3525
    %3841 = vmatpush1.bf16.msra.mxu0 %v3524
    %3842 = vmatprep.subr.bf16.mxu0 %v3529
    %3843 = vmatpush1.bf16.msra.mxu0 %v3528
    %3844 = vmatprep.subr.bf16.mxu0 %v3533
    %3845 = vmatpush1.bf16.msra.mxu0 %v3532
    %3846 = vmatprep.subr.bf16.mxu0 %v3537
    %3847 = vmatpush1.bf16.msra.mxu0 %v3536
    %3848 = vmatprep.mubr.bf16.mxu0 %v1044
    %3849 = vmatmul.mubr.bf16.gmra.mrb[0].mxu0 %v1043
    %v3850 = vpop.f32.mrb[0].mxu0
    %v3851 = vadd.f32 %v3082, %v3850
    %v3852 = vpop.f32.mrb[0].mxu0
    %v3853 = vadd.f32 %v3084, %v3852
    %v3854 = vpop.f32.mrb[0].mxu0
    %v3855 = vadd.f32 %v3086, %v3854
    %v3856 = vpop.f32.mrb[0].mxu0
    %v3857 = vadd.f32 %v3088, %v3856
    %3858 = vdwg.mxu0
    %3859 = vmatprep.subr.bf16.mxu0 %v3541
    %3860 = vmatpush1.bf16.msra.mxu0 %v3540
    %3861 = vmatprep.subr.bf16.mxu0 %v3545
    %3862 = vmatpush1.bf16.msra.mxu0 %v3544
    %3863 = vmatprep.subr.bf16.mxu0 %v3549
    %3864 = vmatpush1.bf16.msra.mxu0 %v3548
    %3865 = vmatprep.subr.bf16.mxu0 %v3553
    %3866 = vmatpush1.bf16.msra.mxu0 %v3552
    %3867 = vmatprep.subr.bf16.mxu0 %v3557
    %3868 = vmatpush1.bf16.msra.mxu0 %v3556
    %3869 = vmatprep.subr.bf16.mxu0 %v3561
    %3870 = vmatpush1.bf16.msra.mxu0 %v3560
    %3871 = vmatprep.subr.bf16.mxu0 %v3565
    %3872 = vmatpush1.bf16.msra.mxu0 %v3564
    %3873 = vmatprep.subr.bf16.mxu0 %v3569
    %3874 = vmatpush1.bf16.msra.mxu0 %v3568
    %3875 = vmatprep.subr.bf16.mxu0 %v3573
    %3876 = vmatpush1.bf16.msra.mxu0 %v3572
    %3877 = vmatprep.subr.bf16.mxu0 %v3577
    %3878 = vmatpush1.bf16.msra.mxu0 %v3576
    %3879 = vmatprep.subr.bf16.mxu0 %v3581
    %3880 = vmatpush1.bf16.msra.mxu0 %v3580
    %3881 = vmatprep.subr.bf16.mxu0 %v3585
    %3882 = vmatpush1.bf16.msra.mxu0 %v3584
    %3883 = vmatprep.subr.bf16.mxu0 %v3589
    %3884 = vmatpush1.bf16.msra.mxu0 %v3588
    %3885 = vmatprep.subr.bf16.mxu0 %v3593
    %3886 = vmatpush1.bf16.msra.mxu0 %v3592
    %3887 = vmatprep.subr.bf16.mxu0 %v3597
    %3888 = vmatpush1.bf16.msra.mxu0 %v3596
    %3889 = vmatprep.subr.bf16.mxu0 %v3601
    %3890 = vmatpush1.bf16.msra.mxu0 %v3600
    %3891 = vmatprep.mubr.bf16.mxu0 %v1046
    %3892 = vmatmul.mubr.bf16.gmra.mrb[0].mxu0 %v1045
    %v3893 = vpop.f32.mrb[0].mxu0
    %v3894 = vadd.f32 %v3851, %v3893
    %v3895 = vpop.f32.mrb[0].mxu0
    %v3896 = vadd.f32 %v3853, %v3895
    %v3897 = vpop.f32.mrb[0].mxu0
    %v3898 = vadd.f32 %v3855, %v3897
    %v3899 = vpop.f32.mrb[0].mxu0
    %v3900 = vadd.f32 %v3857, %v3899
    %3901 = vdwg.mxu0
    %v3902 = vld [vmem:[#allocation2 + $0x20] sm:$0xff]
    %v3903 = vld [vmem:[#allocation2 + $0x28] sm:$0xff]
    %v3904 = vld [vmem:[#allocation2 + $0x60] sm:$0xff]
    %v3905 = vld [vmem:[#allocation2 + $0x68] sm:$0xff]
    %v3906 = vld [vmem:[#allocation2 + $0xa0] sm:$0xff]
    %v3907 = vld [vmem:[#allocation2 + $0xa8] sm:$0xff]
    %v3908 = vld [vmem:[#allocation2 + $0xe0] sm:$0xff]
    %v3909 = vld [vmem:[#allocation2 + $0xe8] sm:$0xff]
    %v3910 = vld [vmem:[#allocation2 + $0x120] sm:$0xff]
    %v3911 = vld [vmem:[#allocation2 + $0x128] sm:$0xff]
    %v3912 = vld [vmem:[#allocation2 + $0x160] sm:$0xff]
    %v3913 = vld [vmem:[#allocation2 + $0x168] sm:$0xff]
    %v3914 = vld [vmem:[#allocation2 + $0x1a0] sm:$0xff]
    %v3915 = vld [vmem:[#allocation2 + $0x1a8] sm:$0xff]
    %v3916 = vld [vmem:[#allocation2 + $0x1e0] sm:$0xff]
    %v3917 = vld [vmem:[#allocation2 + $0x1e8] sm:$0xff]
    %v3918 = vld [vmem:[#allocation2 + $0x220] sm:$0xff]
    %v3919 = vld [vmem:[#allocation2 + $0x228] sm:$0xff]
    %v3920 = vld [vmem:[#allocation2 + $0x260] sm:$0xff]
    %v3921 = vld [vmem:[#allocation2 + $0x268] sm:$0xff]
    %v3922 = vld [vmem:[#allocation2 + $0x2a0] sm:$0xff]
    %v3923 = vld [vmem:[#allocation2 + $0x2a8] sm:$0xff]
    %v3924 = vld [vmem:[#allocation2 + $0x2e0] sm:$0xff]
    %v3925 = vld [vmem:[#allocation2 + $0x2e8] sm:$0xff]
    %v3926 = vld [vmem:[#allocation2 + $0x320] sm:$0xff]
    %v3927 = vld [vmem:[#allocation2 + $0x328] sm:$0xff]
    %v3928 = vld [vmem:[#allocation2 + $0x360] sm:$0xff]
    %v3929 = vld [vmem:[#allocation2 + $0x368] sm:$0xff]
    %v3930 = vld [vmem:[#allocation2 + $0x3a0] sm:$0xff]
    %v3931 = vld [vmem:[#allocation2 + $0x3a8] sm:$0xff]
    %v3932 = vld [vmem:[#allocation2 + $0x3e0] sm:$0xff]
    %v3933 = vld [vmem:[#allocation2 + $0x3e8] sm:$0xff]
    %v3934 = vld [vmem:[#allocation2 + $0x420] sm:$0xff]
    %v3935 = vld [vmem:[#allocation2 + $0x428] sm:$0xff]
    %v3936 = vld [vmem:[#allocation2 + $0x460] sm:$0xff]
    %v3937 = vld [vmem:[#allocation2 + $0x468] sm:$0xff]
    %v3938 = vld [vmem:[#allocation2 + $0x4a0] sm:$0xff]
    %v3939 = vld [vmem:[#allocation2 + $0x4a8] sm:$0xff]
    %v3940 = vld [vmem:[#allocation2 + $0x4e0] sm:$0xff]
    %v3941 = vld [vmem:[#allocation2 + $0x4e8] sm:$0xff]
    %v3942 = vld [vmem:[#allocation2 + $0x520] sm:$0xff]
    %v3943 = vld [vmem:[#allocation2 + $0x528] sm:$0xff]
    %v3944 = vld [vmem:[#allocation2 + $0x560] sm:$0xff]
    %v3945 = vld [vmem:[#allocation2 + $0x568] sm:$0xff]
    %v3946 = vld [vmem:[#allocation2 + $0x5a0] sm:$0xff]
    %v3947 = vld [vmem:[#allocation2 + $0x5a8] sm:$0xff]
    %v3948 = vld [vmem:[#allocation2 + $0x5e0] sm:$0xff]
    %v3949 = vld [vmem:[#allocation2 + $0x5e8] sm:$0xff]
    %v3950 = vld [vmem:[#allocation2 + $0x620] sm:$0xff]
    %v3951 = vld [vmem:[#allocation2 + $0x628] sm:$0xff]
    %v3952 = vld [vmem:[#allocation2 + $0x660] sm:$0xff]
    %v3953 = vld [vmem:[#allocation2 + $0x668] sm:$0xff]
    %v3954 = vld [vmem:[#allocation2 + $0x6a0] sm:$0xff]
    %v3955 = vld [vmem:[#allocation2 + $0x6a8] sm:$0xff]
    %v3956 = vld [vmem:[#allocation2 + $0x6e0] sm:$0xff]
    %v3957 = vld [vmem:[#allocation2 + $0x6e8] sm:$0xff]
    %v3958 = vld [vmem:[#allocation2 + $0x720] sm:$0xff]
    %v3959 = vld [vmem:[#allocation2 + $0x728] sm:$0xff]
    %v3960 = vld [vmem:[#allocation2 + $0x760] sm:$0xff]
    %v3961 = vld [vmem:[#allocation2 + $0x768] sm:$0xff]
    %v3962 = vld [vmem:[#allocation2 + $0x7a0] sm:$0xff]
    %v3963 = vld [vmem:[#allocation2 + $0x7a8] sm:$0xff]
    %v3964 = vld [vmem:[#allocation2 + $0x7e0] sm:$0xff]
    %v3965 = vld [vmem:[#allocation2 + $0x7e8] sm:$0xff]
    %v3966 = vld [vmem:[#allocation2 + $0x820] sm:$0xff]
    %v3967 = vld [vmem:[#allocation2 + $0x828] sm:$0xff]
    %v3968 = vld [vmem:[#allocation2 + $0x860] sm:$0xff]
    %v3969 = vld [vmem:[#allocation2 + $0x868] sm:$0xff]
    %v3970 = vld [vmem:[#allocation2 + $0x8a0] sm:$0xff]
    %v3971 = vld [vmem:[#allocation2 + $0x8a8] sm:$0xff]
    %v3972 = vld [vmem:[#allocation2 + $0x8e0] sm:$0xff]
    %v3973 = vld [vmem:[#allocation2 + $0x8e8] sm:$0xff]
    %v3974 = vld [vmem:[#allocation2 + $0x920] sm:$0xff]
    %v3975 = vld [vmem:[#allocation2 + $0x928] sm:$0xff]
    %v3976 = vld [vmem:[#allocation2 + $0x960] sm:$0xff]
    %v3977 = vld [vmem:[#allocation2 + $0x968] sm:$0xff]
    %v3978 = vld [vmem:[#allocation2 + $0x9a0] sm:$0xff]
    %v3979 = vld [vmem:[#allocation2 + $0x9a8] sm:$0xff]
    %v3980 = vld [vmem:[#allocation2 + $0x9e0] sm:$0xff]
    %v3981 = vld [vmem:[#allocation2 + $0x9e8] sm:$0xff]
    %v3982 = vld [vmem:[#allocation2 + $0xa20] sm:$0xff]
    %v3983 = vld [vmem:[#allocation2 + $0xa28] sm:$0xff]
    %v3984 = vld [vmem:[#allocation2 + $0xa60] sm:$0xff]
    %v3985 = vld [vmem:[#allocation2 + $0xa68] sm:$0xff]
    %v3986 = vld [vmem:[#allocation2 + $0xaa0] sm:$0xff]
    %v3987 = vld [vmem:[#allocation2 + $0xaa8] sm:$0xff]
    %v3988 = vld [vmem:[#allocation2 + $0xae0] sm:$0xff]
    %v3989 = vld [vmem:[#allocation2 + $0xae8] sm:$0xff]
    %v3990 = vld [vmem:[#allocation2 + $0xb20] sm:$0xff]
    %v3991 = vld [vmem:[#allocation2 + $0xb28] sm:$0xff]
    %v3992 = vld [vmem:[#allocation2 + $0xb60] sm:$0xff]
    %v3993 = vld [vmem:[#allocation2 + $0xb68] sm:$0xff]
    %v3994 = vld [vmem:[#allocation2 + $0xba0] sm:$0xff]
    %v3995 = vld [vmem:[#allocation2 + $0xba8] sm:$0xff]
    %v3996 = vld [vmem:[#allocation2 + $0xbe0] sm:$0xff]
    %v3997 = vld [vmem:[#allocation2 + $0xbe8] sm:$0xff]
    %v3998 = vld [vmem:[#allocation2 + $0xc20] sm:$0xff]
    %v3999 = vld [vmem:[#allocation2 + $0xc28] sm:$0xff]
    %v4000 = vld [vmem:[#allocation2 + $0xc60] sm:$0xff]
    %v4001 = vld [vmem:[#allocation2 + $0xc68] sm:$0xff]
    %v4002 = vld [vmem:[#allocation2 + $0xca0] sm:$0xff]
    %v4003 = vld [vmem:[#allocation2 + $0xca8] sm:$0xff]
    %v4004 = vld [vmem:[#allocation2 + $0xce0] sm:$0xff]
    %v4005 = vld [vmem:[#allocation2 + $0xce8] sm:$0xff]
    %v4006 = vld [vmem:[#allocation2 + $0xd20] sm:$0xff]
    %v4007 = vld [vmem:[#allocation2 + $0xd28] sm:$0xff]
    %v4008 = vld [vmem:[#allocation2 + $0xd60] sm:$0xff]
    %v4009 = vld [vmem:[#allocation2 + $0xd68] sm:$0xff]
    %v4010 = vld [vmem:[#allocation2 + $0xda0] sm:$0xff]
    %v4011 = vld [vmem:[#allocation2 + $0xda8] sm:$0xff]
    %v4012 = vld [vmem:[#allocation2 + $0xde0] sm:$0xff]
    %v4013 = vld [vmem:[#allocation2 + $0xde8] sm:$0xff]
    %v4014 = vld [vmem:[#allocation2 + $0xe20] sm:$0xff]
    %v4015 = vld [vmem:[#allocation2 + $0xe28] sm:$0xff]
    %v4016 = vld [vmem:[#allocation2 + $0xe60] sm:$0xff]
    %v4017 = vld [vmem:[#allocation2 + $0xe68] sm:$0xff]
    %v4018 = vld [vmem:[#allocation2 + $0xea0] sm:$0xff]
    %v4019 = vld [vmem:[#allocation2 + $0xea8] sm:$0xff]
    %v4020 = vld [vmem:[#allocation2 + $0xee0] sm:$0xff]
    %v4021 = vld [vmem:[#allocation2 + $0xee8] sm:$0xff]
    %v4022 = vld [vmem:[#allocation2 + $0xf20] sm:$0xff]
    %v4023 = vld [vmem:[#allocation2 + $0xf28] sm:$0xff]
    %v4024 = vld [vmem:[#allocation2 + $0xf60] sm:$0xff]
    %v4025 = vld [vmem:[#allocation2 + $0xf68] sm:$0xff]
    %v4026 = vld [vmem:[#allocation2 + $0xfa0] sm:$0xff]
    %v4027 = vld [vmem:[#allocation2 + $0xfa8] sm:$0xff]
    %v4028 = vld [vmem:[#allocation2 + $0xfe0] sm:$0xff]
    %v4029 = vld [vmem:[#allocation2 + $0xfe8] sm:$0xff]
    %s4030 = scalar_lea.vmem %s2, 64
    %v4031 = vld [vmem:[%s4030] ss:$8 sm:$0xf]
    %v4033 = vlaneseq
    %v4034 = vshrl.u32 %v4033, 7
    %v4035 = vsub.s32 0, %v4034
    %v4036 = vrot.slane %v4031, %v4035
    %v4037 = vlaneseq
    %v4038 = vshrl.u32 %v4037, 7
    %v4039 = vsub.s32 1, %v4038
    %v4040 = vrot.slane %v4031, %v4039
    %v4041 = vlaneseq
    %v4042 = vshrl.u32 %v4041, 7
    %v4043 = vsub.s32 2, %v4042
    %v4044 = vrot.slane %v4031, %v4043
    %v4045 = vlaneseq
    %v4046 = vshrl.u32 %v4045, 7
    %v4047 = vsub.s32 3, %v4046
    %v4048 = vrot.slane %v4031, %v4047
    %v4181 = vunpack.c.l.b16 %v3902
    %v4182 = vunpack.c.h.b16 %v3902
    %v4183 = vunpack.c.l.b16 %v3903
    %v4184 = vunpack.c.h.b16 %v3903
    %v4185 = vunpack.c.l.b16 %v3904
    %v4186 = vunpack.c.h.b16 %v3904
    %v4187 = vunpack.c.l.b16 %v3905
    %v4188 = vunpack.c.h.b16 %v3905
    %v4189 = vunpack.c.l.b16 %v3906
    %v4190 = vunpack.c.h.b16 %v3906
    %v4191 = vunpack.c.l.b16 %v3907
    %v4192 = vunpack.c.h.b16 %v3907
    %v4193 = vunpack.c.l.b16 %v3908
    %v4194 = vunpack.c.h.b16 %v3908
    %v4195 = vunpack.c.l.b16 %v3909
    %v4196 = vunpack.c.h.b16 %v3909
    %v4197 = vunpack.c.l.b16 %v3910
    %v4198 = vunpack.c.h.b16 %v3910
    %v4199 = vunpack.c.l.b16 %v3911
    %v4200 = vunpack.c.h.b16 %v3911
    %v4201 = vunpack.c.l.b16 %v3912
    %v4202 = vunpack.c.h.b16 %v3912
    %v4203 = vunpack.c.l.b16 %v3913
    %v4204 = vunpack.c.h.b16 %v3913
    %v4205 = vunpack.c.l.b16 %v3914
    %v4206 = vunpack.c.h.b16 %v3914
    %v4207 = vunpack.c.l.b16 %v3915
    %v4208 = vunpack.c.h.b16 %v3915
    %v4209 = vunpack.c.l.b16 %v3916
    %v4210 = vunpack.c.h.b16 %v3916
    %v4211 = vunpack.c.l.b16 %v3917
    %v4212 = vunpack.c.h.b16 %v3917
    %v4213 = vunpack.c.l.b16 %v3918
    %v4214 = vunpack.c.h.b16 %v3918
    %v4215 = vunpack.c.l.b16 %v3919
    %v4216 = vunpack.c.h.b16 %v3919
    %v4217 = vunpack.c.l.b16 %v3920
    %v4218 = vunpack.c.h.b16 %v3920
    %v4219 = vunpack.c.l.b16 %v3921
    %v4220 = vunpack.c.h.b16 %v3921
    %v4221 = vunpack.c.l.b16 %v3922
    %v4222 = vunpack.c.h.b16 %v3922
    %v4223 = vunpack.c.l.b16 %v3923
    %v4224 = vunpack.c.h.b16 %v3923
    %v4225 = vunpack.c.l.b16 %v3924
    %v4226 = vunpack.c.h.b16 %v3924
    %v4227 = vunpack.c.l.b16 %v3925
    %v4228 = vunpack.c.h.b16 %v3925
    %v4229 = vunpack.c.l.b16 %v3926
    %v4230 = vunpack.c.h.b16 %v3926
    %v4231 = vunpack.c.l.b16 %v3927
    %v4232 = vunpack.c.h.b16 %v3927
    %v4233 = vunpack.c.l.b16 %v3928
    %v4234 = vunpack.c.h.b16 %v3928
    %v4235 = vunpack.c.l.b16 %v3929
    %v4236 = vunpack.c.h.b16 %v3929
    %v4237 = vunpack.c.l.b16 %v3930
    %v4238 = vunpack.c.h.b16 %v3930
    %v4239 = vunpack.c.l.b16 %v3931
    %v4240 = vunpack.c.h.b16 %v3931
    %v4241 = vunpack.c.l.b16 %v3932
    %v4242 = vunpack.c.h.b16 %v3932
    %v4243 = vunpack.c.l.b16 %v3933
    %v4244 = vunpack.c.h.b16 %v3933
    %v4245 = vunpack.c.l.b16 %v3934
    %v4246 = vunpack.c.h.b16 %v3934
    %v4247 = vunpack.c.l.b16 %v3935
    %v4248 = vunpack.c.h.b16 %v3935
    %v4249 = vunpack.c.l.b16 %v3936
    %v4250 = vunpack.c.h.b16 %v3936
    %v4251 = vunpack.c.l.b16 %v3937
    %v4252 = vunpack.c.h.b16 %v3937
    %v4253 = vunpack.c.l.b16 %v3938
    %v4254 = vunpack.c.h.b16 %v3938
    %v4255 = vunpack.c.l.b16 %v3939
    %v4256 = vunpack.c.h.b16 %v3939
    %v4257 = vunpack.c.l.b16 %v3940
    %v4258 = vunpack.c.h.b16 %v3940
    %v4259 = vunpack.c.l.b16 %v3941
    %v4260 = vunpack.c.h.b16 %v3941
    %v4261 = vunpack.c.l.b16 %v3942
    %v4262 = vunpack.c.h.b16 %v3942
    %v4263 = vunpack.c.l.b16 %v3943
    %v4264 = vunpack.c.h.b16 %v3943
    %v4265 = vunpack.c.l.b16 %v3944
    %v4266 = vunpack.c.h.b16 %v3944
    %v4267 = vunpack.c.l.b16 %v3945
    %v4268 = vunpack.c.h.b16 %v3945
    %v4269 = vunpack.c.l.b16 %v3946
    %v4270 = vunpack.c.h.b16 %v3946
    %v4271 = vunpack.c.l.b16 %v3947
    %v4272 = vunpack.c.h.b16 %v3947
    %v4273 = vunpack.c.l.b16 %v3948
    %v4274 = vunpack.c.h.b16 %v3948
    %v4275 = vunpack.c.l.b16 %v3949
    %v4276 = vunpack.c.h.b16 %v3949
    %v4277 = vunpack.c.l.b16 %v3950
    %v4278 = vunpack.c.h.b16 %v3950
    %v4279 = vunpack.c.l.b16 %v3951
    %v4280 = vunpack.c.h.b16 %v3951
    %v4281 = vunpack.c.l.b16 %v3952
    %v4282 = vunpack.c.h.b16 %v3952
    %v4283 = vunpack.c.l.b16 %v3953
    %v4284 = vunpack.c.h.b16 %v3953
    %v4285 = vunpack.c.l.b16 %v3954
    %v4286 = vunpack.c.h.b16 %v3954
    %v4287 = vunpack.c.l.b16 %v3955
    %v4288 = vunpack.c.h.b16 %v3955
    %v4289 = vunpack.c.l.b16 %v3956
    %v4290 = vunpack.c.h.b16 %v3956
    %v4291 = vunpack.c.l.b16 %v3957
    %v4292 = vunpack.c.h.b16 %v3957
    %v4293 = vunpack.c.l.b16 %v3958
    %v4294 = vunpack.c.h.b16 %v3958
    %v4295 = vunpack.c.l.b16 %v3959
    %v4296 = vunpack.c.h.b16 %v3959
    %v4297 = vunpack.c.l.b16 %v3960
    %v4298 = vunpack.c.h.b16 %v3960
    %v4299 = vunpack.c.l.b16 %v3961
    %v4300 = vunpack.c.h.b16 %v3961
    %v4301 = vunpack.c.l.b16 %v3962
    %v4302 = vunpack.c.h.b16 %v3962
    %v4303 = vunpack.c.l.b16 %v3963
    %v4304 = vunpack.c.h.b16 %v3963
    %v4305 = vunpack.c.l.b16 %v3964
    %v4306 = vunpack.c.h.b16 %v3964
    %v4307 = vunpack.c.l.b16 %v3965
    %v4308 = vunpack.c.h.b16 %v3965
    %v4309 = vunpack.c.l.b16 %v3966
    %v4310 = vunpack.c.h.b16 %v3966
    %v4311 = vunpack.c.l.b16 %v3967
    %v4312 = vunpack.c.h.b16 %v3967
    %v4313 = vunpack.c.l.b16 %v3968
    %v4314 = vunpack.c.h.b16 %v3968
    %v4315 = vunpack.c.l.b16 %v3969
    %v4316 = vunpack.c.h.b16 %v3969
    %v4317 = vunpack.c.l.b16 %v3970
    %v4318 = vunpack.c.h.b16 %v3970
    %v4319 = vunpack.c.l.b16 %v3971
    %v4320 = vunpack.c.h.b16 %v3971
    %v4321 = vunpack.c.l.b16 %v3972
    %v4322 = vunpack.c.h.b16 %v3972
    %v4323 = vunpack.c.l.b16 %v3973
    %v4324 = vunpack.c.h.b16 %v3973
    %v4325 = vunpack.c.l.b16 %v3974
    %v4326 = vunpack.c.h.b16 %v3974
    %v4327 = vunpack.c.l.b16 %v3975
    %v4328 = vunpack.c.h.b16 %v3975
    %v4329 = vunpack.c.l.b16 %v3976
    %v4330 = vunpack.c.h.b16 %v3976
    %v4331 = vunpack.c.l.b16 %v3977
    %v4332 = vunpack.c.h.b16 %v3977
    %v4333 = vunpack.c.l.b16 %v3978
    %v4334 = vunpack.c.h.b16 %v3978
    %v4335 = vunpack.c.l.b16 %v3979
    %v4336 = vunpack.c.h.b16 %v3979
    %v4337 = vunpack.c.l.b16 %v3980
    %v4338 = vunpack.c.h.b16 %v3980
    %v4339 = vunpack.c.l.b16 %v3981
    %v4340 = vunpack.c.h.b16 %v3981
    %v4341 = vunpack.c.l.b16 %v3982
    %v4342 = vunpack.c.h.b16 %v3982
    %v4343 = vunpack.c.l.b16 %v3983
    %v4344 = vunpack.c.h.b16 %v3983
    %v4345 = vunpack.c.l.b16 %v3984
    %v4346 = vunpack.c.h.b16 %v3984
    %v4347 = vunpack.c.l.b16 %v3985
    %v4348 = vunpack.c.h.b16 %v3985
    %v4349 = vunpack.c.l.b16 %v3986
    %v4350 = vunpack.c.h.b16 %v3986
    %v4351 = vunpack.c.l.b16 %v3987
    %v4352 = vunpack.c.h.b16 %v3987
    %v4353 = vunpack.c.l.b16 %v3988
    %v4354 = vunpack.c.h.b16 %v3988
    %v4355 = vunpack.c.l.b16 %v3989
    %v4356 = vunpack.c.h.b16 %v3989
    %v4357 = vunpack.c.l.b16 %v3990
    %v4358 = vunpack.c.h.b16 %v3990
    %v4359 = vunpack.c.l.b16 %v3991
    %v4360 = vunpack.c.h.b16 %v3991
    %v4361 = vunpack.c.l.b16 %v3992
    %v4362 = vunpack.c.h.b16 %v3992
    %v4363 = vunpack.c.l.b16 %v3993
    %v4364 = vunpack.c.h.b16 %v3993
    %v4365 = vunpack.c.l.b16 %v3994
    %v4366 = vunpack.c.h.b16 %v3994
    %v4367 = vunpack.c.l.b16 %v3995
    %v4368 = vunpack.c.h.b16 %v3995
    %v4369 = vunpack.c.l.b16 %v3996
    %v4370 = vunpack.c.h.b16 %v3996
    %v4371 = vunpack.c.l.b16 %v3997
    %v4372 = vunpack.c.h.b16 %v3997
    %v4373 = vunpack.c.l.b16 %v3998
    %v4374 = vunpack.c.h.b16 %v3998
    %v4375 = vunpack.c.l.b16 %v3999
    %v4376 = vunpack.c.h.b16 %v3999
    %v4377 = vunpack.c.l.b16 %v4000
    %v4378 = vunpack.c.h.b16 %v4000
    %v4379 = vunpack.c.l.b16 %v4001
    %v4380 = vunpack.c.h.b16 %v4001
    %v4381 = vunpack.c.l.b16 %v4002
    %v4382 = vunpack.c.h.b16 %v4002
    %v4383 = vunpack.c.l.b16 %v4003
    %v4384 = vunpack.c.h.b16 %v4003
    %v4385 = vunpack.c.l.b16 %v4004
    %v4386 = vunpack.c.h.b16 %v4004
    %v4387 = vunpack.c.l.b16 %v4005
    %v4388 = vunpack.c.h.b16 %v4005
    %v4389 = vunpack.c.l.b16 %v4006
    %v4390 = vunpack.c.h.b16 %v4006
    %v4391 = vunpack.c.l.b16 %v4007
    %v4392 = vunpack.c.h.b16 %v4007
    %v4393 = vunpack.c.l.b16 %v4008
    %v4394 = vunpack.c.h.b16 %v4008
    %v4395 = vunpack.c.l.b16 %v4009
    %v4396 = vunpack.c.h.b16 %v4009
    %v4397 = vunpack.c.l.b16 %v4010
    %v4398 = vunpack.c.h.b16 %v4010
    %v4399 = vunpack.c.l.b16 %v4011
    %v4400 = vunpack.c.h.b16 %v4011
    %v4401 = vunpack.c.l.b16 %v4012
    %v4402 = vunpack.c.h.b16 %v4012
    %v4403 = vunpack.c.l.b16 %v4013
    %v4404 = vunpack.c.h.b16 %v4013
    %v4405 = vunpack.c.l.b16 %v4014
    %v4406 = vunpack.c.h.b16 %v4014
    %v4407 = vunpack.c.l.b16 %v4015
    %v4408 = vunpack.c.h.b16 %v4015
    %v4409 = vunpack.c.l.b16 %v4016
    %v4410 = vunpack.c.h.b16 %v4016
    %v4411 = vunpack.c.l.b16 %v4017
    %v4412 = vunpack.c.h.b16 %v4017
    %v4413 = vunpack.c.l.b16 %v4018
    %v4414 = vunpack.c.h.b16 %v4018
    %v4415 = vunpack.c.l.b16 %v4019
    %v4416 = vunpack.c.h.b16 %v4019
    %v4417 = vunpack.c.l.b16 %v4020
    %v4418 = vunpack.c.h.b16 %v4020
    %v4419 = vunpack.c.l.b16 %v4021
    %v4420 = vunpack.c.h.b16 %v4021
    %v4421 = vunpack.c.l.b16 %v4022
    %v4422 = vunpack.c.h.b16 %v4022
    %v4423 = vunpack.c.l.b16 %v4023
    %v4424 = vunpack.c.h.b16 %v4023
    %v4425 = vunpack.c.l.b16 %v4024
    %v4426 = vunpack.c.h.b16 %v4024
    %v4427 = vunpack.c.l.b16 %v4025
    %v4428 = vunpack.c.h.b16 %v4025
    %v4429 = vunpack.c.l.b16 %v4026
    %v4430 = vunpack.c.h.b16 %v4026
    %v4431 = vunpack.c.l.b16 %v4027
    %v4432 = vunpack.c.h.b16 %v4027
    %v4433 = vunpack.c.l.b16 %v4028
    %v4434 = vunpack.c.h.b16 %v4028
    %v4435 = vunpack.c.l.b16 %v4029
    %v4436 = vunpack.c.h.b16 %v4029
    %v4437 = vpack.c.b16 %v4185, %v4181
    %v4438 = vpack.c.b16 %v4186, %v4182
    %v4439 = vpack.c.b16 %v4187, %v4183
    %v4440 = vpack.c.b16 %v4188, %v4184
    %v4441 = vpack.c.b16 %v4193, %v4189
    %v4442 = vpack.c.b16 %v4194, %v4190
    %v4443 = vpack.c.b16 %v4195, %v4191
    %v4444 = vpack.c.b16 %v4196, %v4192
    %v4445 = vpack.c.b16 %v4201, %v4197
    %v4446 = vpack.c.b16 %v4202, %v4198
    %v4447 = vpack.c.b16 %v4203, %v4199
    %v4448 = vpack.c.b16 %v4204, %v4200
    %v4449 = vpack.c.b16 %v4209, %v4205
    %v4450 = vpack.c.b16 %v4210, %v4206
    %v4451 = vpack.c.b16 %v4211, %v4207
    %v4452 = vpack.c.b16 %v4212, %v4208
    %v4453 = vpack.c.b16 %v4217, %v4213
    %v4454 = vpack.c.b16 %v4218, %v4214
    %v4455 = vpack.c.b16 %v4219, %v4215
    %v4456 = vpack.c.b16 %v4220, %v4216
    %v4457 = vpack.c.b16 %v4225, %v4221
    %v4458 = vpack.c.b16 %v4226, %v4222
    %v4459 = vpack.c.b16 %v4227, %v4223
    %v4460 = vpack.c.b16 %v4228, %v4224
    %v4461 = vpack.c.b16 %v4233, %v4229
    %v4462 = vpack.c.b16 %v4234, %v4230
    %v4463 = vpack.c.b16 %v4235, %v4231
    %v4464 = vpack.c.b16 %v4236, %v4232
    %v4465 = vpack.c.b16 %v4241, %v4237
    %v4466 = vpack.c.b16 %v4242, %v4238
    %v4467 = vpack.c.b16 %v4243, %v4239
    %v4468 = vpack.c.b16 %v4244, %v4240
    %v4469 = vpack.c.b16 %v4249, %v4245
    %v4470 = vpack.c.b16 %v4250, %v4246
    %v4471 = vpack.c.b16 %v4251, %v4247
    %v4472 = vpack.c.b16 %v4252, %v4248
    %v4473 = vpack.c.b16 %v4257, %v4253
    %v4474 = vpack.c.b16 %v4258, %v4254
    %v4475 = vpack.c.b16 %v4259, %v4255
    %v4476 = vpack.c.b16 %v4260, %v4256
    %v4477 = vpack.c.b16 %v4265, %v4261
    %v4478 = vpack.c.b16 %v4266, %v4262
    %v4479 = vpack.c.b16 %v4267, %v4263
    %v4480 = vpack.c.b16 %v4268, %v4264
    %v4481 = vpack.c.b16 %v4273, %v4269
    %v4482 = vpack.c.b16 %v4274, %v4270
    %v4483 = vpack.c.b16 %v4275, %v4271
    %v4484 = vpack.c.b16 %v4276, %v4272
    %v4485 = vpack.c.b16 %v4281, %v4277
    %v4486 = vpack.c.b16 %v4282, %v4278
    %v4487 = vpack.c.b16 %v4283, %v4279
    %v4488 = vpack.c.b16 %v4284, %v4280
    %v4489 = vpack.c.b16 %v4289, %v4285
    %v4490 = vpack.c.b16 %v4290, %v4286
    %v4491 = vpack.c.b16 %v4291, %v4287
    %v4492 = vpack.c.b16 %v4292, %v4288
    %v4493 = vpack.c.b16 %v4297, %v4293
    %v4494 = vpack.c.b16 %v4298, %v4294
    %v4495 = vpack.c.b16 %v4299, %v4295
    %v4496 = vpack.c.b16 %v4300, %v4296
    %v4497 = vpack.c.b16 %v4305, %v4301
    %v4498 = vpack.c.b16 %v4306, %v4302
    %v4499 = vpack.c.b16 %v4307, %v4303
    %v4500 = vpack.c.b16 %v4308, %v4304
    %v4501 = vpack.c.b16 %v4313, %v4309
    %v4502 = vpack.c.b16 %v4314, %v4310
    %v4503 = vpack.c.b16 %v4315, %v4311
    %v4504 = vpack.c.b16 %v4316, %v4312
    %v4505 = vpack.c.b16 %v4321, %v4317
    %v4506 = vpack.c.b16 %v4322, %v4318
    %v4507 = vpack.c.b16 %v4323, %v4319
    %v4508 = vpack.c.b16 %v4324, %v4320
    %v4509 = vpack.c.b16 %v4329, %v4325
    %v4510 = vpack.c.b16 %v4330, %v4326
    %v4511 = vpack.c.b16 %v4331, %v4327
    %v4512 = vpack.c.b16 %v4332, %v4328
    %v4513 = vpack.c.b16 %v4337, %v4333
    %v4514 = vpack.c.b16 %v4338, %v4334
    %v4515 = vpack.c.b16 %v4339, %v4335
    %v4516 = vpack.c.b16 %v4340, %v4336
    %v4517 = vpack.c.b16 %v4345, %v4341
    %v4518 = vpack.c.b16 %v4346, %v4342
    %v4519 = vpack.c.b16 %v4347, %v4343
    %v4520 = vpack.c.b16 %v4348, %v4344
    %v4521 = vpack.c.b16 %v4353, %v4349
    %v4522 = vpack.c.b16 %v4354, %v4350
    %v4523 = vpack.c.b16 %v4355, %v4351
    %v4524 = vpack.c.b16 %v4356, %v4352
    %v4525 = vpack.c.b16 %v4361, %v4357
    %v4526 = vpack.c.b16 %v4362, %v4358
    %v4527 = vpack.c.b16 %v4363, %v4359
    %v4528 = vpack.c.b16 %v4364, %v4360
    %v4529 = vpack.c.b16 %v4369, %v4365
    %v4530 = vpack.c.b16 %v4370, %v4366
    %v4531 = vpack.c.b16 %v4371, %v4367
    %v4532 = vpack.c.b16 %v4372, %v4368
    %v4533 = vpack.c.b16 %v4377, %v4373
    %v4534 = vpack.c.b16 %v4378, %v4374
    %v4535 = vpack.c.b16 %v4379, %v4375
    %v4536 = vpack.c.b16 %v4380, %v4376
    %v4537 = vpack.c.b16 %v4385, %v4381
    %v4538 = vpack.c.b16 %v4386, %v4382
    %v4539 = vpack.c.b16 %v4387, %v4383
    %v4540 = vpack.c.b16 %v4388, %v4384
    %v4541 = vpack.c.b16 %v4393, %v4389
    %v4542 = vpack.c.b16 %v4394, %v4390
    %v4543 = vpack.c.b16 %v4395, %v4391
    %v4544 = vpack.c.b16 %v4396, %v4392
    %v4545 = vpack.c.b16 %v4401, %v4397
    %v4546 = vpack.c.b16 %v4402, %v4398
    %v4547 = vpack.c.b16 %v4403, %v4399
    %v4548 = vpack.c.b16 %v4404, %v4400
    %v4549 = vpack.c.b16 %v4409, %v4405
    %v4550 = vpack.c.b16 %v4410, %v4406
    %v4551 = vpack.c.b16 %v4411, %v4407
    %v4552 = vpack.c.b16 %v4412, %v4408
    %v4553 = vpack.c.b16 %v4417, %v4413
    %v4554 = vpack.c.b16 %v4418, %v4414
    %v4555 = vpack.c.b16 %v4419, %v4415
    %v4556 = vpack.c.b16 %v4420, %v4416
    %v4557 = vpack.c.b16 %v4425, %v4421
    %v4558 = vpack.c.b16 %v4426, %v4422
    %v4559 = vpack.c.b16 %v4427, %v4423
    %v4560 = vpack.c.b16 %v4428, %v4424
    %v4561 = vpack.c.b16 %v4433, %v4429
    %v4562 = vpack.c.b16 %v4434, %v4430
    %v4563 = vpack.c.b16 %v4435, %v4431
    %v4564 = vpack.c.b16 %v4436, %v4432
    %4693 = vmatprep.subr.bf16.mxu0 %v4438
    %4694 = vmatpush1.bf16.msra.mxu0 %v4437
    %4695 = vmatprep.subr.bf16.mxu0 %v4442
    %4696 = vmatpush1.bf16.msra.mxu0 %v4441
    %4697 = vmatprep.subr.bf16.mxu0 %v4446
    %4698 = vmatpush1.bf16.msra.mxu0 %v4445
    %4699 = vmatprep.subr.bf16.mxu0 %v4450
    %4700 = vmatpush1.bf16.msra.mxu0 %v4449
    %4701 = vmatprep.subr.bf16.mxu0 %v4454
    %4702 = vmatpush1.bf16.msra.mxu0 %v4453
    %4703 = vmatprep.subr.bf16.mxu0 %v4458
    %4704 = vmatpush1.bf16.msra.mxu0 %v4457
    %4705 = vmatprep.subr.bf16.mxu0 %v4462
    %4706 = vmatpush1.bf16.msra.mxu0 %v4461
    %4707 = vmatprep.subr.bf16.mxu0 %v4466
    %4708 = vmatpush1.bf16.msra.mxu0 %v4465
    %4709 = vmatprep.subr.bf16.mxu0 %v4470
    %4710 = vmatpush1.bf16.msra.mxu0 %v4469
    %4711 = vmatprep.subr.bf16.mxu0 %v4474
    %4712 = vmatpush1.bf16.msra.mxu0 %v4473
    %4713 = vmatprep.subr.bf16.mxu0 %v4478
    %4714 = vmatpush1.bf16.msra.mxu0 %v4477
    %4715 = vmatprep.subr.bf16.mxu0 %v4482
    %4716 = vmatpush1.bf16.msra.mxu0 %v4481
    %4717 = vmatprep.subr.bf16.mxu0 %v4486
    %4718 = vmatpush1.bf16.msra.mxu0 %v4485
    %4719 = vmatprep.subr.bf16.mxu0 %v4490
    %4720 = vmatpush1.bf16.msra.mxu0 %v4489
    %4721 = vmatprep.subr.bf16.mxu0 %v4494
    %4722 = vmatpush1.bf16.msra.mxu0 %v4493
    %4723 = vmatprep.subr.bf16.mxu0 %v4498
    %4724 = vmatpush1.bf16.msra.mxu0 %v4497
    %4725 = vmatprep.mubr.bf16.mxu0 %v216
    %4726 = vmatmul.mubr.bf16.gmra.mrb[0].mxu0 %v215
    %v4727 = vpop.f32.mrb[0].mxu0
    %v4728 = vadd.f32 %v4036, %v4727
    %v4729 = vpop.f32.mrb[0].mxu0
    %v4730 = vadd.f32 %v4040, %v4729
    %v4731 = vpop.f32.mrb[0].mxu0
    %v4732 = vadd.f32 %v4036, %v4731
    %v4733 = vpop.f32.mrb[0].mxu0
    %v4734 = vadd.f32 %v4040, %v4733
    %4735 = vdwg.mxu0
    %4736 = vmatprep.subr.bf16.mxu0 %v4502
    %4737 = vmatpush1.bf16.msra.mxu0 %v4501
    %4738 = vmatprep.subr.bf16.mxu0 %v4506
    %4739 = vmatpush1.bf16.msra.mxu0 %v4505
    %4740 = vmatprep.subr.bf16.mxu0 %v4510
    %4741 = vmatpush1.bf16.msra.mxu0 %v4509
    %4742 = vmatprep.subr.bf16.mxu0 %v4514
    %4743 = vmatpush1.bf16.msra.mxu0 %v4513
    %4744 = vmatprep.subr.bf16.mxu0 %v4518
    %4745 = vmatpush1.bf16.msra.mxu0 %v4517
    %4746 = vmatprep.subr.bf16.mxu0 %v4522
    %4747 = vmatpush1.bf16.msra.mxu0 %v4521
    %4748 = vmatprep.subr.bf16.mxu0 %v4526
    %4749 = vmatpush1.bf16.msra.mxu0 %v4525
    %4750 = vmatprep.subr.bf16.mxu0 %v4530
    %4751 = vmatpush1.bf16.msra.mxu0 %v4529
    %4752 = vmatprep.subr.bf16.mxu0 %v4534
    %4753 = vmatpush1.bf16.msra.mxu0 %v4533
    %4754 = vmatprep.subr.bf16.mxu0 %v4538
    %4755 = vmatpush1.bf16.msra.mxu0 %v4537
    %4756 = vmatprep.subr.bf16.mxu0 %v4542
    %4757 = vmatpush1.bf16.msra.mxu0 %v4541
    %4758 = vmatprep.subr.bf16.mxu0 %v4546
    %4759 = vmatpush1.bf16.msra.mxu0 %v4545
    %4760 = vmatprep.subr.bf16.mxu0 %v4550
    %4761 = vmatpush1.bf16.msra.mxu0 %v4549
    %4762 = vmatprep.subr.bf16.mxu0 %v4554
    %4763 = vmatpush1.bf16.msra.mxu0 %v4553
    %4764 = vmatprep.subr.bf16.mxu0 %v4558
    %4765 = vmatpush1.bf16.msra.mxu0 %v4557
    %4766 = vmatprep.subr.bf16.mxu0 %v4562
    %4767 = vmatpush1.bf16.msra.mxu0 %v4561
    %4768 = vmatprep.mubr.bf16.mxu0 %v218
    %4769 = vmatmul.mubr.bf16.gmra.mrb[0].mxu0 %v217
    %v4770 = vpop.f32.mrb[0].mxu0
    %v4771 = vadd.f32 %v4728, %v4770
    %v4772 = vpop.f32.mrb[0].mxu0
    %v4773 = vadd.f32 %v4730, %v4772
    %v4774 = vpop.f32.mrb[0].mxu0
    %v4775 = vadd.f32 %v4732, %v4774
    %v4776 = vpop.f32.mrb[0].mxu0
    %v4777 = vadd.f32 %v4734, %v4776
    %4778 = vdwg.mxu0
    %4779 = vmatprep.subr.bf16.mxu0 %v4440
    %4780 = vmatpush1.bf16.msra.mxu0 %v4439
    %4781 = vmatprep.subr.bf16.mxu0 %v4444
    %4782 = vmatpush1.bf16.msra.mxu0 %v4443
    %4783 = vmatprep.subr.bf16.mxu0 %v4448
    %4784 = vmatpush1.bf16.msra.mxu0 %v4447
    %4785 = vmatprep.subr.bf16.mxu0 %v4452
    %4786 = vmatpush1.bf16.msra.mxu0 %v4451
    %4787 = vmatprep.subr.bf16.mxu0 %v4456
    %4788 = vmatpush1.bf16.msra.mxu0 %v4455
    %4789 = vmatprep.subr.bf16.mxu0 %v4460
    %4790 = vmatpush1.bf16.msra.mxu0 %v4459
    %4791 = vmatprep.subr.bf16.mxu0 %v4464
    %4792 = vmatpush1.bf16.msra.mxu0 %v4463
    %4793 = vmatprep.subr.bf16.mxu0 %v4468
    %4794 = vmatpush1.bf16.msra.mxu0 %v4467
    %4795 = vmatprep.subr.bf16.mxu0 %v4472
    %4796 = vmatpush1.bf16.msra.mxu0 %v4471
    %4797 = vmatprep.subr.bf16.mxu0 %v4476
    %4798 = vmatpush1.bf16.msra.mxu0 %v4475
    %4799 = vmatprep.subr.bf16.mxu0 %v4480
    %4800 = vmatpush1.bf16.msra.mxu0 %v4479
    %4801 = vmatprep.subr.bf16.mxu0 %v4484
    %4802 = vmatpush1.bf16.msra.mxu0 %v4483
    %4803 = vmatprep.subr.bf16.mxu0 %v4488
    %4804 = vmatpush1.bf16.msra.mxu0 %v4487
    %4805 = vmatprep.subr.bf16.mxu0 %v4492
    %4806 = vmatpush1.bf16.msra.mxu0 %v4491
    %4807 = vmatprep.subr.bf16.mxu0 %v4496
    %4808 = vmatpush1.bf16.msra.mxu0 %v4495
    %4809 = vmatprep.subr.bf16.mxu0 %v4500
    %4810 = vmatpush1.bf16.msra.mxu0 %v4499
    %4811 = vmatprep.mubr.bf16.mxu0 %v216
    %4812 = vmatmul.mubr.bf16.gmra.mrb[0].mxu0 %v215
    %v4813 = vpop.f32.mrb[0].mxu0
    %v4814 = vadd.f32 %v4044, %v4813
    %v4815 = vpop.f32.mrb[0].mxu0
    %v4816 = vadd.f32 %v4048, %v4815
    %v4817 = vpop.f32.mrb[0].mxu0
    %v4818 = vadd.f32 %v4044, %v4817
    %v4819 = vpop.f32.mrb[0].mxu0
    %v4820 = vadd.f32 %v4048, %v4819
    %4821 = vdwg.mxu0
    %4822 = vmatprep.subr.bf16.mxu0 %v4504
    %4823 = vmatpush1.bf16.msra.mxu0 %v4503
    %4824 = vmatprep.subr.bf16.mxu0 %v4508
    %4825 = vmatpush1.bf16.msra.mxu0 %v4507
    %4826 = vmatprep.subr.bf16.mxu0 %v4512
    %4827 = vmatpush1.bf16.msra.mxu0 %v4511
    %4828 = vmatprep.subr.bf16.mxu0 %v4516
    %4829 = vmatpush1.bf16.msra.mxu0 %v4515
    %4830 = vmatprep.subr.bf16.mxu0 %v4520
    %4831 = vmatpush1.bf16.msra.mxu0 %v4519
    %4832 = vmatprep.subr.bf16.mxu0 %v4524
    %4833 = vmatpush1.bf16.msra.mxu0 %v4523
    %4834 = vmatprep.subr.bf16.mxu0 %v4528
    %4835 = vmatpush1.bf16.msra.mxu0 %v4527
    %4836 = vmatprep.subr.bf16.mxu0 %v4532
    %4837 = vmatpush1.bf16.msra.mxu0 %v4531
    %4838 = vmatprep.subr.bf16.mxu0 %v4536
    %4839 = vmatpush1.bf16.msra.mxu0 %v4535
    %4840 = vmatprep.subr.bf16.mxu0 %v4540
    %4841 = vmatpush1.bf16.msra.mxu0 %v4539
    %4842 = vmatprep.subr.bf16.mxu0 %v4544
    %4843 = vmatpush1.bf16.msra.mxu0 %v4543
    %4844 = vmatprep.subr.bf16.mxu0 %v4548
    %4845 = vmatpush1.bf16.msra.mxu0 %v4547
    %4846 = vmatprep.subr.bf16.mxu0 %v4552
    %4847 = vmatpush1.bf16.msra.mxu0 %v4551
    %4848 = vmatprep.subr.bf16.mxu0 %v4556
    %4849 = vmatpush1.bf16.msra.mxu0 %v4555
    %4850 = vmatprep.subr.bf16.mxu0 %v4560
    %4851 = vmatpush1.bf16.msra.mxu0 %v4559
    %4852 = vmatprep.subr.bf16.mxu0 %v4564
    %4853 = vmatpush1.bf16.msra.mxu0 %v4563
    %4854 = vmatprep.mubr.bf16.mxu0 %v218
    %4855 = vmatmul.mubr.bf16.gmra.mrb[0].mxu0 %v217
    %v4856 = vpop.f32.mrb[0].mxu0
    %v4857 = vadd.f32 %v4814, %v4856
    %v4858 = vpop.f32.mrb[0].mxu0
    %v4859 = vadd.f32 %v4816, %v4858
    %v4860 = vpop.f32.mrb[0].mxu0
    %v4861 = vadd.f32 %v4818, %v4860
    %v4862 = vpop.f32.mrb[0].mxu0
    %v4863 = vadd.f32 %v4820, %v4862
    %4864 = vdwg.mxu0
    %v4865 = vmax.f32 %v4771, 0.0
    %v4866 = vmax.f32 %v4773, 0.0
    %v4867 = vmax.f32 %v4857, 0.0
    %v4868 = vmax.f32 %v4859, 0.0
    %v4869 = vmax.f32 %v4775, 0.0
    %v4870 = vmax.f32 %v4777, 0.0
    %v4871 = vmax.f32 %v4861, 0.0
    %v4872 = vmax.f32 %v4863, 0.0
    %v4873 = vpack.c.bf16 %v4869, %v4865
    %v4874 = vpack.c.bf16 %v4870, %v4866
    %v4875 = vpack.c.bf16 %v4871, %v4867
    %v4876 = vpack.c.bf16 %v4872, %v4868
    %v4877 = vld [vmem:[#allocation5 + $0x800] sm:$0xff]
    %v4878 = vld [vmem:[#allocation5 + $0x808] sm:$0xff]
    %v4879 = vld [vmem:[#allocation5 + $0x810] sm:$0xff]
    %v4880 = vld [vmem:[#allocation5 + $0x818] sm:$0xff]
    %v4881 = vld [vmem:[#allocation5 + $0x820] sm:$0xff]
    %v4882 = vld [vmem:[#allocation5 + $0x828] sm:$0xff]
    %v4883 = vld [vmem:[#allocation5 + $0x830] sm:$0xff]
    %v4884 = vld [vmem:[#allocation5 + $0x838] sm:$0xff]
    %v4885 = vld [vmem:[#allocation5 + $0x840] sm:$0xff]
    %v4886 = vld [vmem:[#allocation5 + $0x848] sm:$0xff]
    %v4887 = vld [vmem:[#allocation5 + $0x850] sm:$0xff]
    %v4888 = vld [vmem:[#allocation5 + $0x858] sm:$0xff]
    %v4889 = vld [vmem:[#allocation5 + $0x860] sm:$0xff]
    %v4890 = vld [vmem:[#allocation5 + $0x868] sm:$0xff]
    %v4891 = vld [vmem:[#allocation5 + $0x870] sm:$0xff]
    %v4892 = vld [vmem:[#allocation5 + $0x878] sm:$0xff]
    %v4893 = vld [vmem:[#allocation5 + $0x880] sm:$0xff]
    %v4894 = vld [vmem:[#allocation5 + $0x888] sm:$0xff]
    %v4895 = vld [vmem:[#allocation5 + $0x890] sm:$0xff]
    %v4896 = vld [vmem:[#allocation5 + $0x898] sm:$0xff]
    %v4897 = vld [vmem:[#allocation5 + $0x8a0] sm:$0xff]
    %v4898 = vld [vmem:[#allocation5 + $0x8a8] sm:$0xff]
    %v4899 = vld [vmem:[#allocation5 + $0x8b0] sm:$0xff]
    %v4900 = vld [vmem:[#allocation5 + $0x8b8] sm:$0xff]
    %v4901 = vld [vmem:[#allocation5 + $0x8c0] sm:$0xff]
    %v4902 = vld [vmem:[#allocation5 + $0x8c8] sm:$0xff]
    %v4903 = vld [vmem:[#allocation5 + $0x8d0] sm:$0xff]
    %v4904 = vld [vmem:[#allocation5 + $0x8d8] sm:$0xff]
    %v4905 = vld [vmem:[#allocation5 + $0x8e0] sm:$0xff]
    %v4906 = vld [vmem:[#allocation5 + $0x8e8] sm:$0xff]
    %v4907 = vld [vmem:[#allocation5 + $0x8f0] sm:$0xff]
    %v4908 = vld [vmem:[#allocation5 + $0x8f8] sm:$0xff]
    %v4909 = vld [vmem:[#allocation5 + $0x900] sm:$0xff]
    %v4910 = vld [vmem:[#allocation5 + $0x908] sm:$0xff]
    %v4911 = vld [vmem:[#allocation5 + $0x910] sm:$0xff]
    %v4912 = vld [vmem:[#allocation5 + $0x918] sm:$0xff]
    %v4913 = vld [vmem:[#allocation5 + $0x920] sm:$0xff]
    %v4914 = vld [vmem:[#allocation5 + $0x928] sm:$0xff]
    %v4915 = vld [vmem:[#allocation5 + $0x930] sm:$0xff]
    %v4916 = vld [vmem:[#allocation5 + $0x938] sm:$0xff]
    %v4917 = vld [vmem:[#allocation5 + $0x940] sm:$0xff]
    %v4918 = vld [vmem:[#allocation5 + $0x948] sm:$0xff]
    %v4919 = vld [vmem:[#allocation5 + $0x950] sm:$0xff]
    %v4920 = vld [vmem:[#allocation5 + $0x958] sm:$0xff]
    %v4921 = vld [vmem:[#allocation5 + $0x960] sm:$0xff]
    %v4922 = vld [vmem:[#allocation5 + $0x968] sm:$0xff]
    %v4923 = vld [vmem:[#allocation5 + $0x970] sm:$0xff]
    %v4924 = vld [vmem:[#allocation5 + $0x978] sm:$0xff]
    %v4925 = vld [vmem:[#allocation5 + $0x980] sm:$0xff]
    %v4926 = vld [vmem:[#allocation5 + $0x988] sm:$0xff]
    %v4927 = vld [vmem:[#allocation5 + $0x990] sm:$0xff]
    %v4928 = vld [vmem:[#allocation5 + $0x998] sm:$0xff]
    %v4929 = vld [vmem:[#allocation5 + $0x9a0] sm:$0xff]
    %v4930 = vld [vmem:[#allocation5 + $0x9a8] sm:$0xff]
    %v4931 = vld [vmem:[#allocation5 + $0x9b0] sm:$0xff]
    %v4932 = vld [vmem:[#allocation5 + $0x9b8] sm:$0xff]
    %v4933 = vld [vmem:[#allocation5 + $0x9c0] sm:$0xff]
    %v4934 = vld [vmem:[#allocation5 + $0x9c8] sm:$0xff]
    %v4935 = vld [vmem:[#allocation5 + $0x9d0] sm:$0xff]
    %v4936 = vld [vmem:[#allocation5 + $0x9d8] sm:$0xff]
    %v4937 = vld [vmem:[#allocation5 + $0x9e0] sm:$0xff]
    %v4938 = vld [vmem:[#allocation5 + $0x9e8] sm:$0xff]
    %v4939 = vld [vmem:[#allocation5 + $0x9f0] sm:$0xff]
    %v4940 = vld [vmem:[#allocation5 + $0x9f8] sm:$0xff]
    %v4941 = vld [vmem:[#allocation5 + $0xa00] sm:$0xff]
    %v4942 = vld [vmem:[#allocation5 + $0xa08] sm:$0xff]
    %v4943 = vld [vmem:[#allocation5 + $0xa10] sm:$0xff]
    %v4944 = vld [vmem:[#allocation5 + $0xa18] sm:$0xff]
    %v4945 = vld [vmem:[#allocation5 + $0xa20] sm:$0xff]
    %v4946 = vld [vmem:[#allocation5 + $0xa28] sm:$0xff]
    %v4947 = vld [vmem:[#allocation5 + $0xa30] sm:$0xff]
    %v4948 = vld [vmem:[#allocation5 + $0xa38] sm:$0xff]
    %v4949 = vld [vmem:[#allocation5 + $0xa40] sm:$0xff]
    %v4950 = vld [vmem:[#allocation5 + $0xa48] sm:$0xff]
    %v4951 = vld [vmem:[#allocation5 + $0xa50] sm:$0xff]
    %v4952 = vld [vmem:[#allocation5 + $0xa58] sm:$0xff]
    %v4953 = vld [vmem:[#allocation5 + $0xa60] sm:$0xff]
    %v4954 = vld [vmem:[#allocation5 + $0xa68] sm:$0xff]
    %v4955 = vld [vmem:[#allocation5 + $0xa70] sm:$0xff]
    %v4956 = vld [vmem:[#allocation5 + $0xa78] sm:$0xff]
    %v4957 = vld [vmem:[#allocation5 + $0xa80] sm:$0xff]
    %v4958 = vld [vmem:[#allocation5 + $0xa88] sm:$0xff]
    %v4959 = vld [vmem:[#allocation5 + $0xa90] sm:$0xff]
    %v4960 = vld [vmem:[#allocation5 + $0xa98] sm:$0xff]
    %v4961 = vld [vmem:[#allocation5 + $0xaa0] sm:$0xff]
    %v4962 = vld [vmem:[#allocation5 + $0xaa8] sm:$0xff]
    %v4963 = vld [vmem:[#allocation5 + $0xab0] sm:$0xff]
    %v4964 = vld [vmem:[#allocation5 + $0xab8] sm:$0xff]
    %v4965 = vld [vmem:[#allocation5 + $0xac0] sm:$0xff]
    %v4966 = vld [vmem:[#allocation5 + $0xac8] sm:$0xff]
    %v4967 = vld [vmem:[#allocation5 + $0xad0] sm:$0xff]
    %v4968 = vld [vmem:[#allocation5 + $0xad8] sm:$0xff]
    %v4969 = vld [vmem:[#allocation5 + $0xae0] sm:$0xff]
    %v4970 = vld [vmem:[#allocation5 + $0xae8] sm:$0xff]
    %v4971 = vld [vmem:[#allocation5 + $0xaf0] sm:$0xff]
    %v4972 = vld [vmem:[#allocation5 + $0xaf8] sm:$0xff]
    %v4973 = vld [vmem:[#allocation5 + $0xb00] sm:$0xff]
    %v4974 = vld [vmem:[#allocation5 + $0xb08] sm:$0xff]
    %v4975 = vld [vmem:[#allocation5 + $0xb10] sm:$0xff]
    %v4976 = vld [vmem:[#allocation5 + $0xb18] sm:$0xff]
    %v4977 = vld [vmem:[#allocation5 + $0xb20] sm:$0xff]
    %v4978 = vld [vmem:[#allocation5 + $0xb28] sm:$0xff]
    %v4979 = vld [vmem:[#allocation5 + $0xb30] sm:$0xff]
    %v4980 = vld [vmem:[#allocation5 + $0xb38] sm:$0xff]
    %v4981 = vld [vmem:[#allocation5 + $0xb40] sm:$0xff]
    %v4982 = vld [vmem:[#allocation5 + $0xb48] sm:$0xff]
    %v4983 = vld [vmem:[#allocation5 + $0xb50] sm:$0xff]
    %v4984 = vld [vmem:[#allocation5 + $0xb58] sm:$0xff]
    %v4985 = vld [vmem:[#allocation5 + $0xb60] sm:$0xff]
    %v4986 = vld [vmem:[#allocation5 + $0xb68] sm:$0xff]
    %v4987 = vld [vmem:[#allocation5 + $0xb70] sm:$0xff]
    %v4988 = vld [vmem:[#allocation5 + $0xb78] sm:$0xff]
    %v4989 = vld [vmem:[#allocation5 + $0xb80] sm:$0xff]
    %v4990 = vld [vmem:[#allocation5 + $0xb88] sm:$0xff]
    %v4991 = vld [vmem:[#allocation5 + $0xb90] sm:$0xff]
    %v4992 = vld [vmem:[#allocation5 + $0xb98] sm:$0xff]
    %v4993 = vld [vmem:[#allocation5 + $0xba0] sm:$0xff]
    %v4994 = vld [vmem:[#allocation5 + $0xba8] sm:$0xff]
    %v4995 = vld [vmem:[#allocation5 + $0xbb0] sm:$0xff]
    %v4996 = vld [vmem:[#allocation5 + $0xbb8] sm:$0xff]
    %v4997 = vld [vmem:[#allocation5 + $0xbc0] sm:$0xff]
    %v4998 = vld [vmem:[#allocation5 + $0xbc8] sm:$0xff]
    %v4999 = vld [vmem:[#allocation5 + $0xbd0] sm:$0xff]
    %v5000 = vld [vmem:[#allocation5 + $0xbd8] sm:$0xff]
    %v5001 = vld [vmem:[#allocation5 + $0xbe0] sm:$0xff]
    %v5002 = vld [vmem:[#allocation5 + $0xbe8] sm:$0xff]
    %v5003 = vld [vmem:[#allocation5 + $0xbf0] sm:$0xff]
    %v5004 = vld [vmem:[#allocation5 + $0xbf8] sm:$0xff]
    %v5133 = vunpack.c.l.b16 %v4877
    %v5134 = vunpack.c.h.b16 %v4877
    %v5135 = vunpack.c.l.b16 %v4878
    %v5136 = vunpack.c.h.b16 %v4878
    %v5137 = vunpack.c.l.b16 %v4879
    %v5138 = vunpack.c.h.b16 %v4879
    %v5139 = vunpack.c.l.b16 %v4880
    %v5140 = vunpack.c.h.b16 %v4880
    %v5141 = vunpack.c.l.b16 %v4881
    %v5142 = vunpack.c.h.b16 %v4881
    %v5143 = vunpack.c.l.b16 %v4882
    %v5144 = vunpack.c.h.b16 %v4882
    %v5145 = vunpack.c.l.b16 %v4883
    %v5146 = vunpack.c.h.b16 %v4883
    %v5147 = vunpack.c.l.b16 %v4884
    %v5148 = vunpack.c.h.b16 %v4884
    %v5149 = vunpack.c.l.b16 %v4885
    %v5150 = vunpack.c.h.b16 %v4885
    %v5151 = vunpack.c.l.b16 %v4886
    %v5152 = vunpack.c.h.b16 %v4886
    %v5153 = vunpack.c.l.b16 %v4887
    %v5154 = vunpack.c.h.b16 %v4887
    %v5155 = vunpack.c.l.b16 %v4888
    %v5156 = vunpack.c.h.b16 %v4888
    %v5157 = vunpack.c.l.b16 %v4889
    %v5158 = vunpack.c.h.b16 %v4889
    %v5159 = vunpack.c.l.b16 %v4890
    %v5160 = vunpack.c.h.b16 %v4890
    %v5161 = vunpack.c.l.b16 %v4891
    %v5162 = vunpack.c.h.b16 %v4891
    %v5163 = vunpack.c.l.b16 %v4892
    %v5164 = vunpack.c.h.b16 %v4892
    %v5165 = vunpack.c.l.b16 %v4893
    %v5166 = vunpack.c.h.b16 %v4893
    %v5167 = vunpack.c.l.b16 %v4894
    %v5168 = vunpack.c.h.b16 %v4894
    %v5169 = vunpack.c.l.b16 %v4895
    %v5170 = vunpack.c.h.b16 %v4895
    %v5171 = vunpack.c.l.b16 %v4896
    %v5172 = vunpack.c.h.b16 %v4896
    %v5173 = vunpack.c.l.b16 %v4897
    %v5174 = vunpack.c.h.b16 %v4897
    %v5175 = vunpack.c.l.b16 %v4898
    %v5176 = vunpack.c.h.b16 %v4898
    %v5177 = vunpack.c.l.b16 %v4899
    %v5178 = vunpack.c.h.b16 %v4899
    %v5179 = vunpack.c.l.b16 %v4900
    %v5180 = vunpack.c.h.b16 %v4900
    %v5181 = vunpack.c.l.b16 %v4901
    %v5182 = vunpack.c.h.b16 %v4901
    %v5183 = vunpack.c.l.b16 %v4902
    %v5184 = vunpack.c.h.b16 %v4902
    %v5185 = vunpack.c.l.b16 %v4903
    %v5186 = vunpack.c.h.b16 %v4903
    %v5187 = vunpack.c.l.b16 %v4904
    %v5188 = vunpack.c.h.b16 %v4904
    %v5189 = vunpack.c.l.b16 %v4905
    %v5190 = vunpack.c.h.b16 %v4905
    %v5191 = vunpack.c.l.b16 %v4906
    %v5192 = vunpack.c.h.b16 %v4906
    %v5193 = vunpack.c.l.b16 %v4907
    %v5194 = vunpack.c.h.b16 %v4907
    %v5195 = vunpack.c.l.b16 %v4908
    %v5196 = vunpack.c.h.b16 %v4908
    %v5197 = vunpack.c.l.b16 %v4909
    %v5198 = vunpack.c.h.b16 %v4909
    %v5199 = vunpack.c.l.b16 %v4910
    %v5200 = vunpack.c.h.b16 %v4910
    %v5201 = vunpack.c.l.b16 %v4911
    %v5202 = vunpack.c.h.b16 %v4911
    %v5203 = vunpack.c.l.b16 %v4912
    %v5204 = vunpack.c.h.b16 %v4912
    %v5205 = vunpack.c.l.b16 %v4913
    %v5206 = vunpack.c.h.b16 %v4913
    %v5207 = vunpack.c.l.b16 %v4914
    %v5208 = vunpack.c.h.b16 %v4914
    %v5209 = vunpack.c.l.b16 %v4915
    %v5210 = vunpack.c.h.b16 %v4915
    %v5211 = vunpack.c.l.b16 %v4916
    %v5212 = vunpack.c.h.b16 %v4916
    %v5213 = vunpack.c.l.b16 %v4917
    %v5214 = vunpack.c.h.b16 %v4917
    %v5215 = vunpack.c.l.b16 %v4918
    %v5216 = vunpack.c.h.b16 %v4918
    %v5217 = vunpack.c.l.b16 %v4919
    %v5218 = vunpack.c.h.b16 %v4919
    %v5219 = vunpack.c.l.b16 %v4920
    %v5220 = vunpack.c.h.b16 %v4920
    %v5221 = vunpack.c.l.b16 %v4921
    %v5222 = vunpack.c.h.b16 %v4921
    %v5223 = vunpack.c.l.b16 %v4922
    %v5224 = vunpack.c.h.b16 %v4922
    %v5225 = vunpack.c.l.b16 %v4923
    %v5226 = vunpack.c.h.b16 %v4923
    %v5227 = vunpack.c.l.b16 %v4924
    %v5228 = vunpack.c.h.b16 %v4924
    %v5229 = vunpack.c.l.b16 %v4925
    %v5230 = vunpack.c.h.b16 %v4925
    %v5231 = vunpack.c.l.b16 %v4926
    %v5232 = vunpack.c.h.b16 %v4926
    %v5233 = vunpack.c.l.b16 %v4927
    %v5234 = vunpack.c.h.b16 %v4927
    %v5235 = vunpack.c.l.b16 %v4928
    %v5236 = vunpack.c.h.b16 %v4928
    %v5237 = vunpack.c.l.b16 %v4929
    %v5238 = vunpack.c.h.b16 %v4929
    %v5239 = vunpack.c.l.b16 %v4930
    %v5240 = vunpack.c.h.b16 %v4930
    %v5241 = vunpack.c.l.b16 %v4931
    %v5242 = vunpack.c.h.b16 %v4931
    %v5243 = vunpack.c.l.b16 %v4932
    %v5244 = vunpack.c.h.b16 %v4932
    %v5245 = vunpack.c.l.b16 %v4933
    %v5246 = vunpack.c.h.b16 %v4933
    %v5247 = vunpack.c.l.b16 %v4934
    %v5248 = vunpack.c.h.b16 %v4934
    %v5249 = vunpack.c.l.b16 %v4935
    %v5250 = vunpack.c.h.b16 %v4935
    %v5251 = vunpack.c.l.b16 %v4936
    %v5252 = vunpack.c.h.b16 %v4936
    %v5253 = vunpack.c.l.b16 %v4937
    %v5254 = vunpack.c.h.b16 %v4937
    %v5255 = vunpack.c.l.b16 %v4938
    %v5256 = vunpack.c.h.b16 %v4938
    %v5257 = vunpack.c.l.b16 %v4939
    %v5258 = vunpack.c.h.b16 %v4939
    %v5259 = vunpack.c.l.b16 %v4940
    %v5260 = vunpack.c.h.b16 %v4940
    %v5261 = vunpack.c.l.b16 %v4941
    %v5262 = vunpack.c.h.b16 %v4941
    %v5263 = vunpack.c.l.b16 %v4942
    %v5264 = vunpack.c.h.b16 %v4942
    %v5265 = vunpack.c.l.b16 %v4943
    %v5266 = vunpack.c.h.b16 %v4943
    %v5267 = vunpack.c.l.b16 %v4944
    %v5268 = vunpack.c.h.b16 %v4944
    %v5269 = vunpack.c.l.b16 %v4945
    %v5270 = vunpack.c.h.b16 %v4945
    %v5271 = vunpack.c.l.b16 %v4946
    %v5272 = vunpack.c.h.b16 %v4946
    %v5273 = vunpack.c.l.b16 %v4947
    %v5274 = vunpack.c.h.b16 %v4947
    %v5275 = vunpack.c.l.b16 %v4948
    %v5276 = vunpack.c.h.b16 %v4948
    %v5277 = vunpack.c.l.b16 %v4949
    %v5278 = vunpack.c.h.b16 %v4949
    %v5279 = vunpack.c.l.b16 %v4950
    %v5280 = vunpack.c.h.b16 %v4950
    %v5281 = vunpack.c.l.b16 %v4951
    %v5282 = vunpack.c.h.b16 %v4951
    %v5283 = vunpack.c.l.b16 %v4952
    %v5284 = vunpack.c.h.b16 %v4952
    %v5285 = vunpack.c.l.b16 %v4953
    %v5286 = vunpack.c.h.b16 %v4953
    %v5287 = vunpack.c.l.b16 %v4954
    %v5288 = vunpack.c.h.b16 %v4954
    %v5289 = vunpack.c.l.b16 %v4955
    %v5290 = vunpack.c.h.b16 %v4955
    %v5291 = vunpack.c.l.b16 %v4956
    %v5292 = vunpack.c.h.b16 %v4956
    %v5293 = vunpack.c.l.b16 %v4957
    %v5294 = vunpack.c.h.b16 %v4957
    %v5295 = vunpack.c.l.b16 %v4958
    %v5296 = vunpack.c.h.b16 %v4958
    %v5297 = vunpack.c.l.b16 %v4959
    %v5298 = vunpack.c.h.b16 %v4959
    %v5299 = vunpack.c.l.b16 %v4960
    %v5300 = vunpack.c.h.b16 %v4960
    %v5301 = vunpack.c.l.b16 %v4961
    %v5302 = vunpack.c.h.b16 %v4961
    %v5303 = vunpack.c.l.b16 %v4962
    %v5304 = vunpack.c.h.b16 %v4962
    %v5305 = vunpack.c.l.b16 %v4963
    %v5306 = vunpack.c.h.b16 %v4963
    %v5307 = vunpack.c.l.b16 %v4964
    %v5308 = vunpack.c.h.b16 %v4964
    %v5309 = vunpack.c.l.b16 %v4965
    %v5310 = vunpack.c.h.b16 %v4965
    %v5311 = vunpack.c.l.b16 %v4966
    %v5312 = vunpack.c.h.b16 %v4966
    %v5313 = vunpack.c.l.b16 %v4967
    %v5314 = vunpack.c.h.b16 %v4967
    %v5315 = vunpack.c.l.b16 %v4968
    %v5316 = vunpack.c.h.b16 %v4968
    %v5317 = vunpack.c.l.b16 %v4969
    %v5318 = vunpack.c.h.b16 %v4969
    %v5319 = vunpack.c.l.b16 %v4970
    %v5320 = vunpack.c.h.b16 %v4970
    %v5321 = vunpack.c.l.b16 %v4971
    %v5322 = vunpack.c.h.b16 %v4971
    %v5323 = vunpack.c.l.b16 %v4972
    %v5324 = vunpack.c.h.b16 %v4972
    %v5325 = vunpack.c.l.b16 %v4973
    %v5326 = vunpack.c.h.b16 %v4973
    %v5327 = vunpack.c.l.b16 %v4974
    %v5328 = vunpack.c.h.b16 %v4974
    %v5329 = vunpack.c.l.b16 %v4975
    %v5330 = vunpack.c.h.b16 %v4975
    %v5331 = vunpack.c.l.b16 %v4976
    %v5332 = vunpack.c.h.b16 %v4976
    %v5333 = vunpack.c.l.b16 %v4977
    %v5334 = vunpack.c.h.b16 %v4977
    %v5335 = vunpack.c.l.b16 %v4978
    %v5336 = vunpack.c.h.b16 %v4978
    %v5337 = vunpack.c.l.b16 %v4979
    %v5338 = vunpack.c.h.b16 %v4979
    %v5339 = vunpack.c.l.b16 %v4980
    %v5340 = vunpack.c.h.b16 %v4980
    %v5341 = vunpack.c.l.b16 %v4981
    %v5342 = vunpack.c.h.b16 %v4981
    %v5343 = vunpack.c.l.b16 %v4982
    %v5344 = vunpack.c.h.b16 %v4982
    %v5345 = vunpack.c.l.b16 %v4983
    %v5346 = vunpack.c.h.b16 %v4983
    %v5347 = vunpack.c.l.b16 %v4984
    %v5348 = vunpack.c.h.b16 %v4984
    %v5349 = vunpack.c.l.b16 %v4985
    %v5350 = vunpack.c.h.b16 %v4985
    %v5351 = vunpack.c.l.b16 %v4986
    %v5352 = vunpack.c.h.b16 %v4986
    %v5353 = vunpack.c.l.b16 %v4987
    %v5354 = vunpack.c.h.b16 %v4987
    %v5355 = vunpack.c.l.b16 %v4988
    %v5356 = vunpack.c.h.b16 %v4988
    %v5357 = vunpack.c.l.b16 %v4989
    %v5358 = vunpack.c.h.b16 %v4989
    %v5359 = vunpack.c.l.b16 %v4990
    %v5360 = vunpack.c.h.b16 %v4990
    %v5361 = vunpack.c.l.b16 %v4991
    %v5362 = vunpack.c.h.b16 %v4991
    %v5363 = vunpack.c.l.b16 %v4992
    %v5364 = vunpack.c.h.b16 %v4992
    %v5365 = vunpack.c.l.b16 %v4993
    %v5366 = vunpack.c.h.b16 %v4993
    %v5367 = vunpack.c.l.b16 %v4994
    %v5368 = vunpack.c.h.b16 %v4994
    %v5369 = vunpack.c.l.b16 %v4995
    %v5370 = vunpack.c.h.b16 %v4995
    %v5371 = vunpack.c.l.b16 %v4996
    %v5372 = vunpack.c.h.b16 %v4996
    %v5373 = vunpack.c.l.b16 %v4997
    %v5374 = vunpack.c.h.b16 %v4997
    %v5375 = vunpack.c.l.b16 %v4998
    %v5376 = vunpack.c.h.b16 %v4998
    %v5377 = vunpack.c.l.b16 %v4999
    %v5378 = vunpack.c.h.b16 %v4999
    %v5379 = vunpack.c.l.b16 %v5000
    %v5380 = vunpack.c.h.b16 %v5000
    %v5381 = vunpack.c.l.b16 %v5001
    %v5382 = vunpack.c.h.b16 %v5001
    %v5383 = vunpack.c.l.b16 %v5002
    %v5384 = vunpack.c.h.b16 %v5002
    %v5385 = vunpack.c.l.b16 %v5003
    %v5386 = vunpack.c.h.b16 %v5003
    %v5387 = vunpack.c.l.b16 %v5004
    %v5388 = vunpack.c.h.b16 %v5004
    %v5389 = vpack.c.b16 %v5137, %v5133
    %v5390 = vpack.c.b16 %v5138, %v5134
    %v5391 = vpack.c.b16 %v5139, %v5135
    %v5392 = vpack.c.b16 %v5140, %v5136
    %v5393 = vpack.c.b16 %v5145, %v5141
    %v5394 = vpack.c.b16 %v5146, %v5142
    %v5395 = vpack.c.b16 %v5147, %v5143
    %v5396 = vpack.c.b16 %v5148, %v5144
    %v5397 = vpack.c.b16 %v5153, %v5149
    %v5398 = vpack.c.b16 %v5154, %v5150
    %v5399 = vpack.c.b16 %v5155, %v5151
    %v5400 = vpack.c.b16 %v5156, %v5152
    %v5401 = vpack.c.b16 %v5161, %v5157
    %v5402 = vpack.c.b16 %v5162, %v5158
    %v5403 = vpack.c.b16 %v5163, %v5159
    %v5404 = vpack.c.b16 %v5164, %v5160
    %v5405 = vpack.c.b16 %v5169, %v5165
    %v5406 = vpack.c.b16 %v5170, %v5166
    %v5407 = vpack.c.b16 %v5171, %v5167
    %v5408 = vpack.c.b16 %v5172, %v5168
    %v5409 = vpack.c.b16 %v5177, %v5173
    %v5410 = vpack.c.b16 %v5178, %v5174
    %v5411 = vpack.c.b16 %v5179, %v5175
    %v5412 = vpack.c.b16 %v5180, %v5176
    %v5413 = vpack.c.b16 %v5185, %v5181
    %v5414 = vpack.c.b16 %v5186, %v5182
    %v5415 = vpack.c.b16 %v5187, %v5183
    %v5416 = vpack.c.b16 %v5188, %v5184
    %v5417 = vpack.c.b16 %v5193, %v5189
    %v5418 = vpack.c.b16 %v5194, %v5190
    %v5419 = vpack.c.b16 %v5195, %v5191
    %v5420 = vpack.c.b16 %v5196, %v5192
    %v5421 = vpack.c.b16 %v5201, %v5197
    %v5422 = vpack.c.b16 %v5202, %v5198
    %v5423 = vpack.c.b16 %v5203, %v5199
    %v5424 = vpack.c.b16 %v5204, %v5200
    %v5425 = vpack.c.b16 %v5209, %v5205
    %v5426 = vpack.c.b16 %v5210, %v5206
    %v5427 = vpack.c.b16 %v5211, %v5207
    %v5428 = vpack.c.b16 %v5212, %v5208
    %v5429 = vpack.c.b16 %v5217, %v5213
    %v5430 = vpack.c.b16 %v5218, %v5214
    %v5431 = vpack.c.b16 %v5219, %v5215
    %v5432 = vpack.c.b16 %v5220, %v5216
    %v5433 = vpack.c.b16 %v5225, %v5221
    %v5434 = vpack.c.b16 %v5226, %v5222
    %v5435 = vpack.c.b16 %v5227, %v5223
    %v5436 = vpack.c.b16 %v5228, %v5224
    %v5437 = vpack.c.b16 %v5233, %v5229
    %v5438 = vpack.c.b16 %v5234, %v5230
    %v5439 = vpack.c.b16 %v5235, %v5231
    %v5440 = vpack.c.b16 %v5236, %v5232
    %v5441 = vpack.c.b16 %v5241, %v5237
    %v5442 = vpack.c.b16 %v5242, %v5238
    %v5443 = vpack.c.b16 %v5243, %v5239
    %v5444 = vpack.c.b16 %v5244, %v5240
    %v5445 = vpack.c.b16 %v5249, %v5245
    %v5446 = vpack.c.b16 %v5250, %v5246
    %v5447 = vpack.c.b16 %v5251, %v5247
    %v5448 = vpack.c.b16 %v5252, %v5248
    %v5449 = vpack.c.b16 %v5257, %v5253
    %v5450 = vpack.c.b16 %v5258, %v5254
    %v5451 = vpack.c.b16 %v5259, %v5255
    %v5452 = vpack.c.b16 %v5260, %v5256
    %v5453 = vpack.c.b16 %v5265, %v5261
    %v5454 = vpack.c.b16 %v5266, %v5262
    %v5455 = vpack.c.b16 %v5267, %v5263
    %v5456 = vpack.c.b16 %v5268, %v5264
    %v5457 = vpack.c.b16 %v5273, %v5269
    %v5458 = vpack.c.b16 %v5274, %v5270
    %v5459 = vpack.c.b16 %v5275, %v5271
    %v5460 = vpack.c.b16 %v5276, %v5272
    %v5461 = vpack.c.b16 %v5281, %v5277
    %v5462 = vpack.c.b16 %v5282, %v5278
    %v5463 = vpack.c.b16 %v5283, %v5279
    %v5464 = vpack.c.b16 %v5284, %v5280
    %v5465 = vpack.c.b16 %v5289, %v5285
    %v5466 = vpack.c.b16 %v5290, %v5286
    %v5467 = vpack.c.b16 %v5291, %v5287
    %v5468 = vpack.c.b16 %v5292, %v5288
    %v5469 = vpack.c.b16 %v5297, %v5293
    %v5470 = vpack.c.b16 %v5298, %v5294
    %v5471 = vpack.c.b16 %v5299, %v5295
    %v5472 = vpack.c.b16 %v5300, %v5296
    %v5473 = vpack.c.b16 %v5305, %v5301
    %v5474 = vpack.c.b16 %v5306, %v5302
    %v5475 = vpack.c.b16 %v5307, %v5303
    %v5476 = vpack.c.b16 %v5308, %v5304
    %v5477 = vpack.c.b16 %v5313, %v5309
    %v5478 = vpack.c.b16 %v5314, %v5310
    %v5479 = vpack.c.b16 %v5315, %v5311
    %v5480 = vpack.c.b16 %v5316, %v5312
    %v5481 = vpack.c.b16 %v5321, %v5317
    %v5482 = vpack.c.b16 %v5322, %v5318
    %v5483 = vpack.c.b16 %v5323, %v5319
    %v5484 = vpack.c.b16 %v5324, %v5320
    %v5485 = vpack.c.b16 %v5329, %v5325
    %v5486 = vpack.c.b16 %v5330, %v5326
    %v5487 = vpack.c.b16 %v5331, %v5327
    %v5488 = vpack.c.b16 %v5332, %v5328
    %v5489 = vpack.c.b16 %v5337, %v5333
    %v5490 = vpack.c.b16 %v5338, %v5334
    %v5491 = vpack.c.b16 %v5339, %v5335
    %v5492 = vpack.c.b16 %v5340, %v5336
    %v5493 = vpack.c.b16 %v5345, %v5341
    %v5494 = vpack.c.b16 %v5346, %v5342
    %v5495 = vpack.c.b16 %v5347, %v5343
    %v5496 = vpack.c.b16 %v5348, %v5344
    %v5497 = vpack.c.b16 %v5353, %v5349
    %v5498 = vpack.c.b16 %v5354, %v5350
    %v5499 = vpack.c.b16 %v5355, %v5351
    %v5500 = vpack.c.b16 %v5356, %v5352
    %v5501 = vpack.c.b16 %v5361, %v5357
    %v5502 = vpack.c.b16 %v5362, %v5358
    %v5503 = vpack.c.b16 %v5363, %v5359
    %v5504 = vpack.c.b16 %v5364, %v5360
    %v5505 = vpack.c.b16 %v5369, %v5365
    %v5506 = vpack.c.b16 %v5370, %v5366
    %v5507 = vpack.c.b16 %v5371, %v5367
    %v5508 = vpack.c.b16 %v5372, %v5368
    %v5509 = vpack.c.b16 %v5377, %v5373
    %v5510 = vpack.c.b16 %v5378, %v5374
    %v5511 = vpack.c.b16 %v5379, %v5375
    %v5512 = vpack.c.b16 %v5380, %v5376
    %v5513 = vpack.c.b16 %v5385, %v5381
    %v5514 = vpack.c.b16 %v5386, %v5382
    %v5515 = vpack.c.b16 %v5387, %v5383
    %v5516 = vpack.c.b16 %v5388, %v5384
    %5645 = vmatprep.subr.bf16.mxu0 %v5390
    %5646 = vmatpush1.bf16.msra.mxu0 %v5389
    %5647 = vmatprep.subr.bf16.mxu0 %v5394
    %5648 = vmatpush1.bf16.msra.mxu0 %v5393
    %5649 = vmatprep.subr.bf16.mxu0 %v5398
    %5650 = vmatpush1.bf16.msra.mxu0 %v5397
    %5651 = vmatprep.subr.bf16.mxu0 %v5402
    %5652 = vmatpush1.bf16.msra.mxu0 %v5401
    %5653 = vmatprep.subr.bf16.mxu0 %v5406
    %5654 = vmatpush1.bf16.msra.mxu0 %v5405
    %5655 = vmatprep.subr.bf16.mxu0 %v5410
    %5656 = vmatpush1.bf16.msra.mxu0 %v5409
    %5657 = vmatprep.subr.bf16.mxu0 %v5414
    %5658 = vmatpush1.bf16.msra.mxu0 %v5413
    %5659 = vmatprep.subr.bf16.mxu0 %v5418
    %5660 = vmatpush1.bf16.msra.mxu0 %v5417
    %5661 = vmatprep.subr.bf16.mxu0 %v5422
    %5662 = vmatpush1.bf16.msra.mxu0 %v5421
    %5663 = vmatprep.subr.bf16.mxu0 %v5426
    %5664 = vmatpush1.bf16.msra.mxu0 %v5425
    %5665 = vmatprep.subr.bf16.mxu0 %v5430
    %5666 = vmatpush1.bf16.msra.mxu0 %v5429
    %5667 = vmatprep.subr.bf16.mxu0 %v5434
    %5668 = vmatpush1.bf16.msra.mxu0 %v5433
    %5669 = vmatprep.subr.bf16.mxu0 %v5438
    %5670 = vmatpush1.bf16.msra.mxu0 %v5437
    %5671 = vmatprep.subr.bf16.mxu0 %v5442
    %5672 = vmatpush1.bf16.msra.mxu0 %v5441
    %5673 = vmatprep.subr.bf16.mxu0 %v5446
    %5674 = vmatpush1.bf16.msra.mxu0 %v5445
    %5675 = vmatprep.subr.bf16.mxu0 %v5450
    %5676 = vmatpush1.bf16.msra.mxu0 %v5449
    %5677 = vmatprep.mubr.bf16.mxu0 %v4874
    %5678 = vmatmul.mubr.bf16.gmra.mrb[0].mxu0 %v4873
    %v5679 = vpop.f32.mrb[0].mxu0
    %v5680 = vadd.f32 0.0, %v5679
    %v5681 = vpop.f32.mrb[0].mxu0
    %v5682 = vadd.f32 0.0, %v5681
    %v5683 = vpop.f32.mrb[0].mxu0
    %v5684 = vadd.f32 0.0, %v5683
    %v5685 = vpop.f32.mrb[0].mxu0
    %v5686 = vadd.f32 0.0, %v5685
    %5687 = vdwg.mxu0
    %5688 = vmatprep.subr.bf16.mxu0 %v5454
    %5689 = vmatpush1.bf16.msra.mxu0 %v5453
    %5690 = vmatprep.subr.bf16.mxu0 %v5458
    %5691 = vmatpush1.bf16.msra.mxu0 %v5457
    %5692 = vmatprep.subr.bf16.mxu0 %v5462
    %5693 = vmatpush1.bf16.msra.mxu0 %v5461
    %5694 = vmatprep.subr.bf16.mxu0 %v5466
    %5695 = vmatpush1.bf16.msra.mxu0 %v5465
    %5696 = vmatprep.subr.bf16.mxu0 %v5470
    %5697 = vmatpush1.bf16.msra.mxu0 %v5469
    %5698 = vmatprep.subr.bf16.mxu0 %v5474
    %5699 = vmatpush1.bf16.msra.mxu0 %v5473
    %5700 = vmatprep.subr.bf16.mxu0 %v5478
    %5701 = vmatpush1.bf16.msra.mxu0 %v5477
    %5702 = vmatprep.subr.bf16.mxu0 %v5482
    %5703 = vmatpush1.bf16.msra.mxu0 %v5481
    %5704 = vmatprep.subr.bf16.mxu0 %v5486
    %5705 = vmatpush1.bf16.msra.mxu0 %v5485
    %5706 = vmatprep.subr.bf16.mxu0 %v5490
    %5707 = vmatpush1.bf16.msra.mxu0 %v5489
    %5708 = vmatprep.subr.bf16.mxu0 %v5494
    %5709 = vmatpush1.bf16.msra.mxu0 %v5493
    %5710 = vmatprep.subr.bf16.mxu0 %v5498
    %5711 = vmatpush1.bf16.msra.mxu0 %v5497
    %5712 = vmatprep.subr.bf16.mxu0 %v5502
    %5713 = vmatpush1.bf16.msra.mxu0 %v5501
    %5714 = vmatprep.subr.bf16.mxu0 %v5506
    %5715 = vmatpush1.bf16.msra.mxu0 %v5505
    %5716 = vmatprep.subr.bf16.mxu0 %v5510
    %5717 = vmatpush1.bf16.msra.mxu0 %v5509
    %5718 = vmatprep.subr.bf16.mxu0 %v5514
    %5719 = vmatpush1.bf16.msra.mxu0 %v5513
    %5720 = vmatprep.mubr.bf16.mxu0 %v4876
    %5721 = vmatmul.mubr.bf16.gmra.mrb[0].mxu0 %v4875
    %v5722 = vpop.f32.mrb[0].mxu0
    %v5723 = vadd.f32 %v5680, %v5722
    %v5724 = vpop.f32.mrb[0].mxu0
    %v5725 = vadd.f32 %v5682, %v5724
    %v5726 = vpop.f32.mrb[0].mxu0
    %v5727 = vadd.f32 %v5684, %v5726
    %v5728 = vpop.f32.mrb[0].mxu0
    %v5729 = vadd.f32 %v5686, %v5728
    %5730 = vdwg.mxu0
    %5731 = vmatprep.subr.bf16.mxu0 %v5392
    %5732 = vmatpush1.bf16.msra.mxu0 %v5391
    %5733 = vmatprep.subr.bf16.mxu0 %v5396
    %5734 = vmatpush1.bf16.msra.mxu0 %v5395
    %5735 = vmatprep.subr.bf16.mxu0 %v5400
    %5736 = vmatpush1.bf16.msra.mxu0 %v5399
    %5737 = vmatprep.subr.bf16.mxu0 %v5404
    %5738 = vmatpush1.bf16.msra.mxu0 %v5403
    %5739 = vmatprep.subr.bf16.mxu0 %v5408
    %5740 = vmatpush1.bf16.msra.mxu0 %v5407
    %5741 = vmatprep.subr.bf16.mxu0 %v5412
    %5742 = vmatpush1.bf16.msra.mxu0 %v5411
    %5743 = vmatprep.subr.bf16.mxu0 %v5416
    %5744 = vmatpush1.bf16.msra.mxu0 %v5415
    %5745 = vmatprep.subr.bf16.mxu0 %v5420
    %5746 = vmatpush1.bf16.msra.mxu0 %v5419
    %5747 = vmatprep.subr.bf16.mxu0 %v5424
    %5748 = vmatpush1.bf16.msra.mxu0 %v5423
    %5749 = vmatprep.subr.bf16.mxu0 %v5428
    %5750 = vmatpush1.bf16.msra.mxu0 %v5427
    %5751 = vmatprep.subr.bf16.mxu0 %v5432
    %5752 = vmatpush1.bf16.msra.mxu0 %v5431
    %5753 = vmatprep.subr.bf16.mxu0 %v5436
    %5754 = vmatpush1.bf16.msra.mxu0 %v5435
    %5755 = vmatprep.subr.bf16.mxu0 %v5440
    %5756 = vmatpush1.bf16.msra.mxu0 %v5439
    %5757 = vmatprep.subr.bf16.mxu0 %v5444
    %5758 = vmatpush1.bf16.msra.mxu0 %v5443
    %5759 = vmatprep.subr.bf16.mxu0 %v5448
    %5760 = vmatpush1.bf16.msra.mxu0 %v5447
    %5761 = vmatprep.subr.bf16.mxu0 %v5452
    %5762 = vmatpush1.bf16.msra.mxu0 %v5451
    %5763 = vmatprep.mubr.bf16.mxu0 %v4874
    %5764 = vmatmul.mubr.bf16.gmra.mrb[0].mxu0 %v4873
    %v5765 = vpop.f32.mrb[0].mxu0
    %v5766 = vadd.f32 0.0, %v5765
    %v5767 = vpop.f32.mrb[0].mxu0
    %v5768 = vadd.f32 0.0, %v5767
    %v5769 = vpop.f32.mrb[0].mxu0
    %v5770 = vadd.f32 0.0, %v5769
    %v5771 = vpop.f32.mrb[0].mxu0
    %v5772 = vadd.f32 0.0, %v5771
    %5773 = vdwg.mxu0
    %5774 = vmatprep.subr.bf16.mxu0 %v5456
    %5775 = vmatpush1.bf16.msra.mxu0 %v5455
    %5776 = vmatprep.subr.bf16.mxu0 %v5460
    %5777 = vmatpush1.bf16.msra.mxu0 %v5459
    %5778 = vmatprep.subr.bf16.mxu0 %v5464
    %5779 = vmatpush1.bf16.msra.mxu0 %v5463
    %5780 = vmatprep.subr.bf16.mxu0 %v5468
    %5781 = vmatpush1.bf16.msra.mxu0 %v5467
    %5782 = vmatprep.subr.bf16.mxu0 %v5472
    %5783 = vmatpush1.bf16.msra.mxu0 %v5471
    %5784 = vmatprep.subr.bf16.mxu0 %v5476
    %5785 = vmatpush1.bf16.msra.mxu0 %v5475
    %5786 = vmatprep.subr.bf16.mxu0 %v5480
    %5787 = vmatpush1.bf16.msra.mxu0 %v5479
    %5788 = vmatprep.subr.bf16.mxu0 %v5484
    %5789 = vmatpush1.bf16.msra.mxu0 %v5483
    %5790 = vmatprep.subr.bf16.mxu0 %v5488
    %5791 = vmatpush1.bf16.msra.mxu0 %v5487
    %5792 = vmatprep.subr.bf16.mxu0 %v5492
    %5793 = vmatpush1.bf16.msra.mxu0 %v5491
    %5794 = vmatprep.subr.bf16.mxu0 %v5496
    %5795 = vmatpush1.bf16.msra.mxu0 %v5495
    %5796 = vmatprep.subr.bf16.mxu0 %v5500
    %5797 = vmatpush1.bf16.msra.mxu0 %v5499
    %5798 = vmatprep.subr.bf16.mxu0 %v5504
    %5799 = vmatpush1.bf16.msra.mxu0 %v5503
    %5800 = vmatprep.subr.bf16.mxu0 %v5508
    %5801 = vmatpush1.bf16.msra.mxu0 %v5507
    %5802 = vmatprep.subr.bf16.mxu0 %v5512
    %5803 = vmatpush1.bf16.msra.mxu0 %v5511
    %5804 = vmatprep.subr.bf16.mxu0 %v5516
    %5805 = vmatpush1.bf16.msra.mxu0 %v5515
    %5806 = vmatprep.mubr.bf16.mxu0 %v4876
    %5807 = vmatmul.mubr.bf16.gmra.mrb[0].mxu0 %v4875
    %v5808 = vpop.f32.mrb[0].mxu0
    %v5809 = vadd.f32 %v5766, %v5808
    %v5810 = vpop.f32.mrb[0].mxu0
    %v5811 = vadd.f32 %v5768, %v5810
    %v5812 = vpop.f32.mrb[0].mxu0
    %v5813 = vadd.f32 %v5770, %v5812
    %v5814 = vpop.f32.mrb[0].mxu0
    %v5815 = vadd.f32 %v5772, %v5814
    %5816 = vdwg.mxu0
    %v5817 = vadd.f32 %v3808, %v5723
    %v5818 = vadd.f32 %v3810, %v5725
    %v5819 = vadd.f32 %v3894, %v5809
    %v5820 = vadd.f32 %v3896, %v5811
    %v5821 = vadd.f32 %v3812, %v5727
    %v5822 = vadd.f32 %v3814, %v5729
    %v5823 = vadd.f32 %v3898, %v5813
    %v5824 = vadd.f32 %v3900, %v5815
    %v5825 = vld [vmem:[#allocation2 + $0x30] sm:$0xff]
    %v5826 = vld [vmem:[#allocation2 + $0x38] sm:$0xff]
    %v5827 = vld [vmem:[#allocation2 + $0x70] sm:$0xff]
    %v5828 = vld [vmem:[#allocation2 + $0x78] sm:$0xff]
    %v5829 = vld [vmem:[#allocation2 + $0xb0] sm:$0xff]
    %v5830 = vld [vmem:[#allocation2 + $0xb8] sm:$0xff]
    %v5831 = vld [vmem:[#allocation2 + $0xf0] sm:$0xff]
    %v5832 = vld [vmem:[#allocation2 + $0xf8] sm:$0xff]
    %v5833 = vld [vmem:[#allocation2 + $0x130] sm:$0xff]
    %v5834 = vld [vmem:[#allocation2 + $0x138] sm:$0xff]
    %v5835 = vld [vmem:[#allocation2 + $0x170] sm:$0xff]
    %v5836 = vld [vmem:[#allocation2 + $0x178] sm:$0xff]
    %v5837 = vld [vmem:[#allocation2 + $0x1b0] sm:$0xff]
    %v5838 = vld [vmem:[#allocation2 + $0x1b8] sm:$0xff]
    %v5839 = vld [vmem:[#allocation2 + $0x1f0] sm:$0xff]
    %v5840 = vld [vmem:[#allocation2 + $0x1f8] sm:$0xff]
    %v5841 = vld [vmem:[#allocation2 + $0x230] sm:$0xff]
    %v5842 = vld [vmem:[#allocation2 + $0x238] sm:$0xff]
    %v5843 = vld [vmem:[#allocation2 + $0x270] sm:$0xff]
    %v5844 = vld [vmem:[#allocation2 + $0x278] sm:$0xff]
    %v5845 = vld [vmem:[#allocation2 + $0x2b0] sm:$0xff]
    %v5846 = vld [vmem:[#allocation2 + $0x2b8] sm:$0xff]
    %v5847 = vld [vmem:[#allocation2 + $0x2f0] sm:$0xff]
    %v5848 = vld [vmem:[#allocation2 + $0x2f8] sm:$0xff]
    %v5849 = vld [vmem:[#allocation2 + $0x330] sm:$0xff]
    %v5850 = vld [vmem:[#allocation2 + $0x338] sm:$0xff]
    %v5851 = vld [vmem:[#allocation2 + $0x370] sm:$0xff]
    %v5852 = vld [vmem:[#allocation2 + $0x378] sm:$0xff]
    %v5853 = vld [vmem:[#allocation2 + $0x3b0] sm:$0xff]
    %v5854 = vld [vmem:[#allocation2 + $0x3b8] sm:$0xff]
    %v5855 = vld [vmem:[#allocation2 + $0x3f0] sm:$0xff]
    %v5856 = vld [vmem:[#allocation2 + $0x3f8] sm:$0xff]
    %v5857 = vld [vmem:[#allocation2 + $0x430] sm:$0xff]
    %v5858 = vld [vmem:[#allocation2 + $0x438] sm:$0xff]
    %v5859 = vld [vmem:[#allocation2 + $0x470] sm:$0xff]
    %v5860 = vld [vmem:[#allocation2 + $0x478] sm:$0xff]
    %v5861 = vld [vmem:[#allocation2 + $0x4b0] sm:$0xff]
    %v5862 = vld [vmem:[#allocation2 + $0x4b8] sm:$0xff]
    %v5863 = vld [vmem:[#allocation2 + $0x4f0] sm:$0xff]
    %v5864 = vld [vmem:[#allocation2 + $0x4f8] sm:$0xff]
    %v5865 = vld [vmem:[#allocation2 + $0x530] sm:$0xff]
    %v5866 = vld [vmem:[#allocation2 + $0x538] sm:$0xff]
    %v5867 = vld [vmem:[#allocation2 + $0x570] sm:$0xff]
    %v5868 = vld [vmem:[#allocation2 + $0x578] sm:$0xff]
    %v5869 = vld [vmem:[#allocation2 + $0x5b0] sm:$0xff]
    %v5870 = vld [vmem:[#allocation2 + $0x5b8] sm:$0xff]
    %v5871 = vld [vmem:[#allocation2 + $0x5f0] sm:$0xff]
    %v5872 = vld [vmem:[#allocation2 + $0x5f8] sm:$0xff]
    %v5873 = vld [vmem:[#allocation2 + $0x630] sm:$0xff]
    %v5874 = vld [vmem:[#allocation2 + $0x638] sm:$0xff]
    %v5875 = vld [vmem:[#allocation2 + $0x670] sm:$0xff]
    %v5876 = vld [vmem:[#allocation2 + $0x678] sm:$0xff]
    %v5877 = vld [vmem:[#allocation2 + $0x6b0] sm:$0xff]
    %v5878 = vld [vmem:[#allocation2 + $0x6b8] sm:$0xff]
    %v5879 = vld [vmem:[#allocation2 + $0x6f0] sm:$0xff]
    %v5880 = vld [vmem:[#allocation2 + $0x6f8] sm:$0xff]
    %v5881 = vld [vmem:[#allocation2 + $0x730] sm:$0xff]
    %v5882 = vld [vmem:[#allocation2 + $0x738] sm:$0xff]
    %v5883 = vld [vmem:[#allocation2 + $0x770] sm:$0xff]
    %v5884 = vld [vmem:[#allocation2 + $0x778] sm:$0xff]
    %v5885 = vld [vmem:[#allocation2 + $0x7b0] sm:$0xff]
    %v5886 = vld [vmem:[#allocation2 + $0x7b8] sm:$0xff]
    %v5887 = vld [vmem:[#allocation2 + $0x7f0] sm:$0xff]
    %v5888 = vld [vmem:[#allocation2 + $0x7f8] sm:$0xff]
    %v5889 = vld [vmem:[#allocation2 + $0x830] sm:$0xff]
    %v5890 = vld [vmem:[#allocation2 + $0x838] sm:$0xff]
    %v5891 = vld [vmem:[#allocation2 + $0x870] sm:$0xff]
    %v5892 = vld [vmem:[#allocation2 + $0x878] sm:$0xff]
    %v5893 = vld [vmem:[#allocation2 + $0x8b0] sm:$0xff]
    %v5894 = vld [vmem:[#allocation2 + $0x8b8] sm:$0xff]
    %v5895 = vld [vmem:[#allocation2 + $0x8f0] sm:$0xff]
    %v5896 = vld [vmem:[#allocation2 + $0x8f8] sm:$0xff]
    %v5897 = vld [vmem:[#allocation2 + $0x930] sm:$0xff]
    %v5898 = vld [vmem:[#allocation2 + $0x938] sm:$0xff]
    %v5899 = vld [vmem:[#allocation2 + $0x970] sm:$0xff]
    %v5900 = vld [vmem:[#allocation2 + $0x978] sm:$0xff]
    %v5901 = vld [vmem:[#allocation2 + $0x9b0] sm:$0xff]
    %v5902 = vld [vmem:[#allocation2 + $0x9b8] sm:$0xff]
    %v5903 = vld [vmem:[#allocation2 + $0x9f0] sm:$0xff]
    %v5904 = vld [vmem:[#allocation2 + $0x9f8] sm:$0xff]
    %v5905 = vld [vmem:[#allocation2 + $0xa30] sm:$0xff]
    %v5906 = vld [vmem:[#allocation2 + $0xa38] sm:$0xff]
    %v5907 = vld [vmem:[#allocation2 + $0xa70] sm:$0xff]
    %v5908 = vld [vmem:[#allocation2 + $0xa78] sm:$0xff]
    %v5909 = vld [vmem:[#allocation2 + $0xab0] sm:$0xff]
    %v5910 = vld [vmem:[#allocation2 + $0xab8] sm:$0xff]
    %v5911 = vld [vmem:[#allocation2 + $0xaf0] sm:$0xff]
    %v5912 = vld [vmem:[#allocation2 + $0xaf8] sm:$0xff]
    %v5913 = vld [vmem:[#allocation2 + $0xb30] sm:$0xff]
    %v5914 = vld [vmem:[#allocation2 + $0xb38] sm:$0xff]
    %v5915 = vld [vmem:[#allocation2 + $0xb70] sm:$0xff]
    %v5916 = vld [vmem:[#allocation2 + $0xb78] sm:$0xff]
    %v5917 = vld [vmem:[#allocation2 + $0xbb0] sm:$0xff]
    %v5918 = vld [vmem:[#allocation2 + $0xbb8] sm:$0xff]
    %v5919 = vld [vmem:[#allocation2 + $0xbf0] sm:$0xff]
    %v5920 = vld [vmem:[#allocation2 + $0xbf8] sm:$0xff]
    %v5921 = vld [vmem:[#allocation2 + $0xc30] sm:$0xff]
    %v5922 = vld [vmem:[#allocation2 + $0xc38] sm:$0xff]
    %v5923 = vld [vmem:[#allocation2 + $0xc70] sm:$0xff]
    %v5924 = vld [vmem:[#allocation2 + $0xc78] sm:$0xff]
    %v5925 = vld [vmem:[#allocation2 + $0xcb0] sm:$0xff]
    %v5926 = vld [vmem:[#allocation2 + $0xcb8] sm:$0xff]
    %v5927 = vld [vmem:[#allocation2 + $0xcf0] sm:$0xff]
    %v5928 = vld [vmem:[#allocation2 + $0xcf8] sm:$0xff]
    %v5929 = vld [vmem:[#allocation2 + $0xd30] sm:$0xff]
    %v5930 = vld [vmem:[#allocation2 + $0xd38] sm:$0xff]
    %v5931 = vld [vmem:[#allocation2 + $0xd70] sm:$0xff]
    %v5932 = vld [vmem:[#allocation2 + $0xd78] sm:$0xff]
    %v5933 = vld [vmem:[#allocation2 + $0xdb0] sm:$0xff]
    %v5934 = vld [vmem:[#allocation2 + $0xdb8] sm:$0xff]
    %v5935 = vld [vmem:[#allocation2 + $0xdf0] sm:$0xff]
    %v5936 = vld [vmem:[#allocation2 + $0xdf8] sm:$0xff]
    %v5937 = vld [vmem:[#allocation2 + $0xe30] sm:$0xff]
    %v5938 = vld [vmem:[#allocation2 + $0xe38] sm:$0xff]
    %v5939 = vld [vmem:[#allocation2 + $0xe70] sm:$0xff]
    %v5940 = vld [vmem:[#allocation2 + $0xe78] sm:$0xff]
    %v5941 = vld [vmem:[#allocation2 + $0xeb0] sm:$0xff]
    %v5942 = vld [vmem:[#allocation2 + $0xeb8] sm:$0xff]
    %v5943 = vld [vmem:[#allocation2 + $0xef0] sm:$0xff]
    %v5944 = vld [vmem:[#allocation2 + $0xef8] sm:$0xff]
    %v5945 = vld [vmem:[#allocation2 + $0xf30] sm:$0xff]
    %v5946 = vld [vmem:[#allocation2 + $0xf38] sm:$0xff]
    %v5947 = vld [vmem:[#allocation2 + $0xf70] sm:$0xff]
    %v5948 = vld [vmem:[#allocation2 + $0xf78] sm:$0xff]
    %v5949 = vld [vmem:[#allocation2 + $0xfb0] sm:$0xff]
    %v5950 = vld [vmem:[#allocation2 + $0xfb8] sm:$0xff]
    %v5951 = vld [vmem:[#allocation2 + $0xff0] sm:$0xff]
    %v5952 = vld [vmem:[#allocation2 + $0xff8] sm:$0xff]
    %s5953 = scalar_lea.vmem %s2, 96
    %v5954 = vld [vmem:[%s5953] ss:$8 sm:$0xf]
    %v5956 = vlaneseq
    %v5957 = vshrl.u32 %v5956, 7
    %v5958 = vsub.s32 0, %v5957
    %v5959 = vrot.slane %v5954, %v5958
    %v5960 = vlaneseq
    %v5961 = vshrl.u32 %v5960, 7
    %v5962 = vsub.s32 1, %v5961
    %v5963 = vrot.slane %v5954, %v5962
    %v5964 = vlaneseq
    %v5965 = vshrl.u32 %v5964, 7
    %v5966 = vsub.s32 2, %v5965
    %v5967 = vrot.slane %v5954, %v5966
    %v5968 = vlaneseq
    %v5969 = vshrl.u32 %v5968, 7
    %v5970 = vsub.s32 3, %v5969
    %v5971 = vrot.slane %v5954, %v5970
    %v6104 = vunpack.c.l.b16 %v5825
    %v6105 = vunpack.c.h.b16 %v5825
    %v6106 = vunpack.c.l.b16 %v5826
    %v6107 = vunpack.c.h.b16 %v5826
    %v6108 = vunpack.c.l.b16 %v5827
    %v6109 = vunpack.c.h.b16 %v5827
    %v6110 = vunpack.c.l.b16 %v5828
    %v6111 = vunpack.c.h.b16 %v5828
    %v6112 = vunpack.c.l.b16 %v5829
    %v6113 = vunpack.c.h.b16 %v5829
    %v6114 = vunpack.c.l.b16 %v5830
    %v6115 = vunpack.c.h.b16 %v5830
    %v6116 = vunpack.c.l.b16 %v5831
    %v6117 = vunpack.c.h.b16 %v5831
    %v6118 = vunpack.c.l.b16 %v5832
    %v6119 = vunpack.c.h.b16 %v5832
    %v6120 = vunpack.c.l.b16 %v5833
    %v6121 = vunpack.c.h.b16 %v5833
    %v6122 = vunpack.c.l.b16 %v5834
    %v6123 = vunpack.c.h.b16 %v5834
    %v6124 = vunpack.c.l.b16 %v5835
    %v6125 = vunpack.c.h.b16 %v5835
    %v6126 = vunpack.c.l.b16 %v5836
    %v6127 = vunpack.c.h.b16 %v5836
    %v6128 = vunpack.c.l.b16 %v5837
    %v6129 = vunpack.c.h.b16 %v5837
    %v6130 = vunpack.c.l.b16 %v5838
    %v6131 = vunpack.c.h.b16 %v5838
    %v6132 = vunpack.c.l.b16 %v5839
    %v6133 = vunpack.c.h.b16 %v5839
    %v6134 = vunpack.c.l.b16 %v5840
    %v6135 = vunpack.c.h.b16 %v5840
    %v6136 = vunpack.c.l.b16 %v5841
    %v6137 = vunpack.c.h.b16 %v5841
    %v6138 = vunpack.c.l.b16 %v5842
    %v6139 = vunpack.c.h.b16 %v5842
    %v6140 = vunpack.c.l.b16 %v5843
    %v6141 = vunpack.c.h.b16 %v5843
    %v6142 = vunpack.c.l.b16 %v5844
    %v6143 = vunpack.c.h.b16 %v5844
    %v6144 = vunpack.c.l.b16 %v5845
    %v6145 = vunpack.c.h.b16 %v5845
    %v6146 = vunpack.c.l.b16 %v5846
    %v6147 = vunpack.c.h.b16 %v5846
    %v6148 = vunpack.c.l.b16 %v5847
    %v6149 = vunpack.c.h.b16 %v5847
    %v6150 = vunpack.c.l.b16 %v5848
    %v6151 = vunpack.c.h.b16 %v5848
    %v6152 = vunpack.c.l.b16 %v5849
    %v6153 = vunpack.c.h.b16 %v5849
    %v6154 = vunpack.c.l.b16 %v5850
    %v6155 = vunpack.c.h.b16 %v5850
    %v6156 = vunpack.c.l.b16 %v5851
    %v6157 = vunpack.c.h.b16 %v5851
    %v6158 = vunpack.c.l.b16 %v5852
    %v6159 = vunpack.c.h.b16 %v5852
    %v6160 = vunpack.c.l.b16 %v5853
    %v6161 = vunpack.c.h.b16 %v5853
    %v6162 = vunpack.c.l.b16 %v5854
    %v6163 = vunpack.c.h.b16 %v5854
    %v6164 = vunpack.c.l.b16 %v5855
    %v6165 = vunpack.c.h.b16 %v5855
    %v6166 = vunpack.c.l.b16 %v5856
    %v6167 = vunpack.c.h.b16 %v5856
    %v6168 = vunpack.c.l.b16 %v5857
    %v6169 = vunpack.c.h.b16 %v5857
    %v6170 = vunpack.c.l.b16 %v5858
    %v6171 = vunpack.c.h.b16 %v5858
    %v6172 = vunpack.c.l.b16 %v5859
    %v6173 = vunpack.c.h.b16 %v5859
    %v6174 = vunpack.c.l.b16 %v5860
    %v6175 = vunpack.c.h.b16 %v5860
    %v6176 = vunpack.c.l.b16 %v5861
    %v6177 = vunpack.c.h.b16 %v5861
    %v6178 = vunpack.c.l.b16 %v5862
    %v6179 = vunpack.c.h.b16 %v5862
    %v6180 = vunpack.c.l.b16 %v5863
    %v6181 = vunpack.c.h.b16 %v5863
    %v6182 = vunpack.c.l.b16 %v5864
    %v6183 = vunpack.c.h.b16 %v5864
    %v6184 = vunpack.c.l.b16 %v5865
    %v6185 = vunpack.c.h.b16 %v5865
    %v6186 = vunpack.c.l.b16 %v5866
    %v6187 = vunpack.c.h.b16 %v5866
    %v6188 = vunpack.c.l.b16 %v5867
    %v6189 = vunpack.c.h.b16 %v5867
    %v6190 = vunpack.c.l.b16 %v5868
    %v6191 = vunpack.c.h.b16 %v5868
    %v6192 = vunpack.c.l.b16 %v5869
    %v6193 = vunpack.c.h.b16 %v5869
    %v6194 = vunpack.c.l.b16 %v5870
    %v6195 = vunpack.c.h.b16 %v5870
    %v6196 = vunpack.c.l.b16 %v5871
    %v6197 = vunpack.c.h.b16 %v5871
    %v6198 = vunpack.c.l.b16 %v5872
    %v6199 = vunpack.c.h.b16 %v5872
    %v6200 = vunpack.c.l.b16 %v5873
    %v6201 = vunpack.c.h.b16 %v5873
    %v6202 = vunpack.c.l.b16 %v5874
    %v6203 = vunpack.c.h.b16 %v5874
    %v6204 = vunpack.c.l.b16 %v5875
    %v6205 = vunpack.c.h.b16 %v5875
    %v6206 = vunpack.c.l.b16 %v5876
    %v6207 = vunpack.c.h.b16 %v5876
    %v6208 = vunpack.c.l.b16 %v5877
    %v6209 = vunpack.c.h.b16 %v5877
    %v6210 = vunpack.c.l.b16 %v5878
    %v6211 = vunpack.c.h.b16 %v5878
    %v6212 = vunpack.c.l.b16 %v5879
    %v6213 = vunpack.c.h.b16 %v5879
    %v6214 = vunpack.c.l.b16 %v5880
    %v6215 = vunpack.c.h.b16 %v5880
    %v6216 = vunpack.c.l.b16 %v5881
    %v6217 = vunpack.c.h.b16 %v5881
    %v6218 = vunpack.c.l.b16 %v5882
    %v6219 = vunpack.c.h.b16 %v5882
    %v6220 = vunpack.c.l.b16 %v5883
    %v6221 = vunpack.c.h.b16 %v5883
    %v6222 = vunpack.c.l.b16 %v5884
    %v6223 = vunpack.c.h.b16 %v5884
    %v6224 = vunpack.c.l.b16 %v5885
    %v6225 = vunpack.c.h.b16 %v5885
    %v6226 = vunpack.c.l.b16 %v5886
    %v6227 = vunpack.c.h.b16 %v5886
    %v6228 = vunpack.c.l.b16 %v5887
    %v6229 = vunpack.c.h.b16 %v5887
    %v6230 = vunpack.c.l.b16 %v5888
    %v6231 = vunpack.c.h.b16 %v5888
    %v6232 = vunpack.c.l.b16 %v5889
    %v6233 = vunpack.c.h.b16 %v5889
    %v6234 = vunpack.c.l.b16 %v5890
    %v6235 = vunpack.c.h.b16 %v5890
    %v6236 = vunpack.c.l.b16 %v5891
    %v6237 = vunpack.c.h.b16 %v5891
    %v6238 = vunpack.c.l.b16 %v5892
    %v6239 = vunpack.c.h.b16 %v5892
    %v6240 = vunpack.c.l.b16 %v5893
    %v6241 = vunpack.c.h.b16 %v5893
    %v6242 = vunpack.c.l.b16 %v5894
    %v6243 = vunpack.c.h.b16 %v5894
    %v6244 = vunpack.c.l.b16 %v5895
    %v6245 = vunpack.c.h.b16 %v5895
    %v6246 = vunpack.c.l.b16 %v5896
    %v6247 = vunpack.c.h.b16 %v5896
    %v6248 = vunpack.c.l.b16 %v5897
    %v6249 = vunpack.c.h.b16 %v5897
    %v6250 = vunpack.c.l.b16 %v5898
    %v6251 = vunpack.c.h.b16 %v5898
    %v6252 = vunpack.c.l.b16 %v5899
    %v6253 = vunpack.c.h.b16 %v5899
    %v6254 = vunpack.c.l.b16 %v5900
    %v6255 = vunpack.c.h.b16 %v5900
    %v6256 = vunpack.c.l.b16 %v5901
    %v6257 = vunpack.c.h.b16 %v5901
    %v6258 = vunpack.c.l.b16 %v5902
    %v6259 = vunpack.c.h.b16 %v5902
    %v6260 = vunpack.c.l.b16 %v5903
    %v6261 = vunpack.c.h.b16 %v5903
    %v6262 = vunpack.c.l.b16 %v5904
    %v6263 = vunpack.c.h.b16 %v5904
    %v6264 = vunpack.c.l.b16 %v5905
    %v6265 = vunpack.c.h.b16 %v5905
    %v6266 = vunpack.c.l.b16 %v5906
    %v6267 = vunpack.c.h.b16 %v5906
    %v6268 = vunpack.c.l.b16 %v5907
    %v6269 = vunpack.c.h.b16 %v5907
    %v6270 = vunpack.c.l.b16 %v5908
    %v6271 = vunpack.c.h.b16 %v5908
    %v6272 = vunpack.c.l.b16 %v5909
    %v6273 = vunpack.c.h.b16 %v5909
    %v6274 = vunpack.c.l.b16 %v5910
    %v6275 = vunpack.c.h.b16 %v5910
    %v6276 = vunpack.c.l.b16 %v5911
    %v6277 = vunpack.c.h.b16 %v5911
    %v6278 = vunpack.c.l.b16 %v5912
    %v6279 = vunpack.c.h.b16 %v5912
    %v6280 = vunpack.c.l.b16 %v5913
    %v6281 = vunpack.c.h.b16 %v5913
    %v6282 = vunpack.c.l.b16 %v5914
    %v6283 = vunpack.c.h.b16 %v5914
    %v6284 = vunpack.c.l.b16 %v5915
    %v6285 = vunpack.c.h.b16 %v5915
    %v6286 = vunpack.c.l.b16 %v5916
    %v6287 = vunpack.c.h.b16 %v5916
    %v6288 = vunpack.c.l.b16 %v5917
    %v6289 = vunpack.c.h.b16 %v5917
    %v6290 = vunpack.c.l.b16 %v5918
    %v6291 = vunpack.c.h.b16 %v5918
    %v6292 = vunpack.c.l.b16 %v5919
    %v6293 = vunpack.c.h.b16 %v5919
    %v6294 = vunpack.c.l.b16 %v5920
    %v6295 = vunpack.c.h.b16 %v5920
    %v6296 = vunpack.c.l.b16 %v5921
    %v6297 = vunpack.c.h.b16 %v5921
    %v6298 = vunpack.c.l.b16 %v5922
    %v6299 = vunpack.c.h.b16 %v5922
    %v6300 = vunpack.c.l.b16 %v5923
    %v6301 = vunpack.c.h.b16 %v5923
    %v6302 = vunpack.c.l.b16 %v5924
    %v6303 = vunpack.c.h.b16 %v5924
    %v6304 = vunpack.c.l.b16 %v5925
    %v6305 = vunpack.c.h.b16 %v5925
    %v6306 = vunpack.c.l.b16 %v5926
    %v6307 = vunpack.c.h.b16 %v5926
    %v6308 = vunpack.c.l.b16 %v5927
    %v6309 = vunpack.c.h.b16 %v5927
    %v6310 = vunpack.c.l.b16 %v5928
    %v6311 = vunpack.c.h.b16 %v5928
    %v6312 = vunpack.c.l.b16 %v5929
    %v6313 = vunpack.c.h.b16 %v5929
    %v6314 = vunpack.c.l.b16 %v5930
    %v6315 = vunpack.c.h.b16 %v5930
    %v6316 = vunpack.c.l.b16 %v5931
    %v6317 = vunpack.c.h.b16 %v5931
    %v6318 = vunpack.c.l.b16 %v5932
    %v6319 = vunpack.c.h.b16 %v5932
    %v6320 = vunpack.c.l.b16 %v5933
    %v6321 = vunpack.c.h.b16 %v5933
    %v6322 = vunpack.c.l.b16 %v5934
    %v6323 = vunpack.c.h.b16 %v5934
    %v6324 = vunpack.c.l.b16 %v5935
    %v6325 = vunpack.c.h.b16 %v5935
    %v6326 = vunpack.c.l.b16 %v5936
    %v6327 = vunpack.c.h.b16 %v5936
    %v6328 = vunpack.c.l.b16 %v5937
    %v6329 = vunpack.c.h.b16 %v5937
    %v6330 = vunpack.c.l.b16 %v5938
    %v6331 = vunpack.c.h.b16 %v5938
    %v6332 = vunpack.c.l.b16 %v5939
    %v6333 = vunpack.c.h.b16 %v5939
    %v6334 = vunpack.c.l.b16 %v5940
    %v6335 = vunpack.c.h.b16 %v5940
    %v6336 = vunpack.c.l.b16 %v5941
    %v6337 = vunpack.c.h.b16 %v5941
    %v6338 = vunpack.c.l.b16 %v5942
    %v6339 = vunpack.c.h.b16 %v5942
    %v6340 = vunpack.c.l.b16 %v5943
    %v6341 = vunpack.c.h.b16 %v5943
    %v6342 = vunpack.c.l.b16 %v5944
    %v6343 = vunpack.c.h.b16 %v5944
    %v6344 = vunpack.c.l.b16 %v5945
    %v6345 = vunpack.c.h.b16 %v5945
    %v6346 = vunpack.c.l.b16 %v5946
    %v6347 = vunpack.c.h.b16 %v5946
    %v6348 = vunpack.c.l.b16 %v5947
    %v6349 = vunpack.c.h.b16 %v5947
    %v6350 = vunpack.c.l.b16 %v5948
    %v6351 = vunpack.c.h.b16 %v5948
    %v6352 = vunpack.c.l.b16 %v5949
    %v6353 = vunpack.c.h.b16 %v5949
    %v6354 = vunpack.c.l.b16 %v5950
    %v6355 = vunpack.c.h.b16 %v5950
    %v6356 = vunpack.c.l.b16 %v5951
    %v6357 = vunpack.c.h.b16 %v5951
    %v6358 = vunpack.c.l.b16 %v5952
    %v6359 = vunpack.c.h.b16 %v5952
    %v6360 = vpack.c.b16 %v6108, %v6104
    %v6361 = vpack.c.b16 %v6109, %v6105
    %v6362 = vpack.c.b16 %v6110, %v6106
    %v6363 = vpack.c.b16 %v6111, %v6107
    %v6364 = vpack.c.b16 %v6116, %v6112
    %v6365 = vpack.c.b16 %v6117, %v6113
    %v6366 = vpack.c.b16 %v6118, %v6114
    %v6367 = vpack.c.b16 %v6119, %v6115
    %v6368 = vpack.c.b16 %v6124, %v6120
    %v6369 = vpack.c.b16 %v6125, %v6121
    %v6370 = vpack.c.b16 %v6126, %v6122
    %v6371 = vpack.c.b16 %v6127, %v6123
    %v6372 = vpack.c.b16 %v6132, %v6128
    %v6373 = vpack.c.b16 %v6133, %v6129
    %v6374 = vpack.c.b16 %v6134, %v6130
    %v6375 = vpack.c.b16 %v6135, %v6131
    %v6376 = vpack.c.b16 %v6140, %v6136
    %v6377 = vpack.c.b16 %v6141, %v6137
    %v6378 = vpack.c.b16 %v6142, %v6138
    %v6379 = vpack.c.b16 %v6143, %v6139
    %v6380 = vpack.c.b16 %v6148, %v6144
    %v6381 = vpack.c.b16 %v6149, %v6145
    %v6382 = vpack.c.b16 %v6150, %v6146
    %v6383 = vpack.c.b16 %v6151, %v6147
    %v6384 = vpack.c.b16 %v6156, %v6152
    %v6385 = vpack.c.b16 %v6157, %v6153
    %v6386 = vpack.c.b16 %v6158, %v6154
    %v6387 = vpack.c.b16 %v6159, %v6155
    %v6388 = vpack.c.b16 %v6164, %v6160
    %v6389 = vpack.c.b16 %v6165, %v6161
    %v6390 = vpack.c.b16 %v6166, %v6162
    %v6391 = vpack.c.b16 %v6167, %v6163
    %v6392 = vpack.c.b16 %v6172, %v6168
    %v6393 = vpack.c.b16 %v6173, %v6169
    %v6394 = vpack.c.b16 %v6174, %v6170
    %v6395 = vpack.c.b16 %v6175, %v6171
    %v6396 = vpack.c.b16 %v6180, %v6176
    %v6397 = vpack.c.b16 %v6181, %v6177
    %v6398 = vpack.c.b16 %v6182, %v6178
    %v6399 = vpack.c.b16 %v6183, %v6179
    %v6400 = vpack.c.b16 %v6188, %v6184
    %v6401 = vpack.c.b16 %v6189, %v6185
    %v6402 = vpack.c.b16 %v6190, %v6186
    %v6403 = vpack.c.b16 %v6191, %v6187
    %v6404 = vpack.c.b16 %v6196, %v6192
    %v6405 = vpack.c.b16 %v6197, %v6193
    %v6406 = vpack.c.b16 %v6198, %v6194
    %v6407 = vpack.c.b16 %v6199, %v6195
    %v6408 = vpack.c.b16 %v6204, %v6200
    %v6409 = vpack.c.b16 %v6205, %v6201
    %v6410 = vpack.c.b16 %v6206, %v6202
    %v6411 = vpack.c.b16 %v6207, %v6203
    %v6412 = vpack.c.b16 %v6212, %v6208
    %v6413 = vpack.c.b16 %v6213, %v6209
    %v6414 = vpack.c.b16 %v6214, %v6210
    %v6415 = vpack.c.b16 %v6215, %v6211
    %v6416 = vpack.c.b16 %v6220, %v6216
    %v6417 = vpack.c.b16 %v6221, %v6217
    %v6418 = vpack.c.b16 %v6222, %v6218
    %v6419 = vpack.c.b16 %v6223, %v6219
    %v6420 = vpack.c.b16 %v6228, %v6224
    %v6421 = vpack.c.b16 %v6229, %v6225
    %v6422 = vpack.c.b16 %v6230, %v6226
    %v6423 = vpack.c.b16 %v6231, %v6227
    %v6424 = vpack.c.b16 %v6236, %v6232
    %v6425 = vpack.c.b16 %v6237, %v6233
    %v6426 = vpack.c.b16 %v6238, %v6234
    %v6427 = vpack.c.b16 %v6239, %v6235
    %v6428 = vpack.c.b16 %v6244, %v6240
    %v6429 = vpack.c.b16 %v6245, %v6241
    %v6430 = vpack.c.b16 %v6246, %v6242
    %v6431 = vpack.c.b16 %v6247, %v6243
    %v6432 = vpack.c.b16 %v6252, %v6248
    %v6433 = vpack.c.b16 %v6253, %v6249
    %v6434 = vpack.c.b16 %v6254, %v6250
    %v6435 = vpack.c.b16 %v6255, %v6251
    %v6436 = vpack.c.b16 %v6260, %v6256
    %v6437 = vpack.c.b16 %v6261, %v6257
    %v6438 = vpack.c.b16 %v6262, %v6258
    %v6439 = vpack.c.b16 %v6263, %v6259
    %v6440 = vpack.c.b16 %v6268, %v6264
    %v6441 = vpack.c.b16 %v6269, %v6265
    %v6442 = vpack.c.b16 %v6270, %v6266
    %v6443 = vpack.c.b16 %v6271, %v6267
    %v6444 = vpack.c.b16 %v6276, %v6272
    %v6445 = vpack.c.b16 %v6277, %v6273
    %v6446 = vpack.c.b16 %v6278, %v6274
    %v6447 = vpack.c.b16 %v6279, %v6275
    %v6448 = vpack.c.b16 %v6284, %v6280
    %v6449 = vpack.c.b16 %v6285, %v6281
    %v6450 = vpack.c.b16 %v6286, %v6282
    %v6451 = vpack.c.b16 %v6287, %v6283
    %v6452 = vpack.c.b16 %v6292, %v6288
    %v6453 = vpack.c.b16 %v6293, %v6289
    %v6454 = vpack.c.b16 %v6294, %v6290
    %v6455 = vpack.c.b16 %v6295, %v6291
    %v6456 = vpack.c.b16 %v6300, %v6296
    %v6457 = vpack.c.b16 %v6301, %v6297
    %v6458 = vpack.c.b16 %v6302, %v6298
    %v6459 = vpack.c.b16 %v6303, %v6299
    %v6460 = vpack.c.b16 %v6308, %v6304
    %v6461 = vpack.c.b16 %v6309, %v6305
    %v6462 = vpack.c.b16 %v6310, %v6306
    %v6463 = vpack.c.b16 %v6311, %v6307
    %v6464 = vpack.c.b16 %v6316, %v6312
    %v6465 = vpack.c.b16 %v6317, %v6313
    %v6466 = vpack.c.b16 %v6318, %v6314
    %v6467 = vpack.c.b16 %v6319, %v6315
    %v6468 = vpack.c.b16 %v6324, %v6320
    %v6469 = vpack.c.b16 %v6325, %v6321
    %v6470 = vpack.c.b16 %v6326, %v6322
    %v6471 = vpack.c.b16 %v6327, %v6323
    %v6472 = vpack.c.b16 %v6332, %v6328
    %v6473 = vpack.c.b16 %v6333, %v6329
    %v6474 = vpack.c.b16 %v6334, %v6330
    %v6475 = vpack.c.b16 %v6335, %v6331
    %v6476 = vpack.c.b16 %v6340, %v6336
    %v6477 = vpack.c.b16 %v6341, %v6337
    %v6478 = vpack.c.b16 %v6342, %v6338
    %v6479 = vpack.c.b16 %v6343, %v6339
    %v6480 = vpack.c.b16 %v6348, %v6344
    %v6481 = vpack.c.b16 %v6349, %v6345
    %v6482 = vpack.c.b16 %v6350, %v6346
    %v6483 = vpack.c.b16 %v6351, %v6347
    %v6484 = vpack.c.b16 %v6356, %v6352
    %v6485 = vpack.c.b16 %v6357, %v6353
    %v6486 = vpack.c.b16 %v6358, %v6354
    %v6487 = vpack.c.b16 %v6359, %v6355
    %6616 = vmatprep.subr.bf16.mxu0 %v6361
    %6617 = vmatpush1.bf16.msra.mxu0 %v6360
    %6618 = vmatprep.subr.bf16.mxu0 %v6365
    %6619 = vmatpush1.bf16.msra.mxu0 %v6364
    %6620 = vmatprep.subr.bf16.mxu0 %v6369
    %6621 = vmatpush1.bf16.msra.mxu0 %v6368
    %6622 = vmatprep.subr.bf16.mxu0 %v6373
    %6623 = vmatpush1.bf16.msra.mxu0 %v6372
    %6624 = vmatprep.subr.bf16.mxu0 %v6377
    %6625 = vmatpush1.bf16.msra.mxu0 %v6376
    %6626 = vmatprep.subr.bf16.mxu0 %v6381
    %6627 = vmatpush1.bf16.msra.mxu0 %v6380
    %6628 = vmatprep.subr.bf16.mxu0 %v6385
    %6629 = vmatpush1.bf16.msra.mxu0 %v6384
    %6630 = vmatprep.subr.bf16.mxu0 %v6389
    %6631 = vmatpush1.bf16.msra.mxu0 %v6388
    %6632 = vmatprep.subr.bf16.mxu0 %v6393
    %6633 = vmatpush1.bf16.msra.mxu0 %v6392
    %6634 = vmatprep.subr.bf16.mxu0 %v6397
    %6635 = vmatpush1.bf16.msra.mxu0 %v6396
    %6636 = vmatprep.subr.bf16.mxu0 %v6401
    %6637 = vmatpush1.bf16.msra.mxu0 %v6400
    %6638 = vmatprep.subr.bf16.mxu0 %v6405
    %6639 = vmatpush1.bf16.msra.mxu0 %v6404
    %6640 = vmatprep.subr.bf16.mxu0 %v6409
    %6641 = vmatpush1.bf16.msra.mxu0 %v6408
    %6642 = vmatprep.subr.bf16.mxu0 %v6413
    %6643 = vmatpush1.bf16.msra.mxu0 %v6412
    %6644 = vmatprep.subr.bf16.mxu0 %v6417
    %6645 = vmatpush1.bf16.msra.mxu0 %v6416
    %6646 = vmatprep.subr.bf16.mxu0 %v6421
    %6647 = vmatpush1.bf16.msra.mxu0 %v6420
    %6648 = vmatprep.mubr.bf16.mxu0 %v216
    %6649 = vmatmul.mubr.bf16.gmra.mrb[0].mxu0 %v215
    %v6650 = vpop.f32.mrb[0].mxu0
    %v6651 = vadd.f32 %v5959, %v6650
    %v6652 = vpop.f32.mrb[0].mxu0
    %v6653 = vadd.f32 %v5963, %v6652
    %v6654 = vpop.f32.mrb[0].mxu0
    %v6655 = vadd.f32 %v5959, %v6654
    %v6656 = vpop.f32.mrb[0].mxu0
    %v6657 = vadd.f32 %v5963, %v6656
    %6658 = vdwg.mxu0
    %6659 = vmatprep.subr.bf16.mxu0 %v6425
    %6660 = vmatpush1.bf16.msra.mxu0 %v6424
    %6661 = vmatprep.subr.bf16.mxu0 %v6429
    %6662 = vmatpush1.bf16.msra.mxu0 %v6428
    %6663 = vmatprep.subr.bf16.mxu0 %v6433
    %6664 = vmatpush1.bf16.msra.mxu0 %v6432
    %6665 = vmatprep.subr.bf16.mxu0 %v6437
    %6666 = vmatpush1.bf16.msra.mxu0 %v6436
    %6667 = vmatprep.subr.bf16.mxu0 %v6441
    %6668 = vmatpush1.bf16.msra.mxu0 %v6440
    %6669 = vmatprep.subr.bf16.mxu0 %v6445
    %6670 = vmatpush1.bf16.msra.mxu0 %v6444
    %6671 = vmatprep.subr.bf16.mxu0 %v6449
    %6672 = vmatpush1.bf16.msra.mxu0 %v6448
    %6673 = vmatprep.subr.bf16.mxu0 %v6453
    %6674 = vmatpush1.bf16.msra.mxu0 %v6452
    %6675 = vmatprep.subr.bf16.mxu0 %v6457
    %6676 = vmatpush1.bf16.msra.mxu0 %v6456
    %6677 = vmatprep.subr.bf16.mxu0 %v6461
    %6678 = vmatpush1.bf16.msra.mxu0 %v6460
    %6679 = vmatprep.subr.bf16.mxu0 %v6465
    %6680 = vmatpush1.bf16.msra.mxu0 %v6464
    %6681 = vmatprep.subr.bf16.mxu0 %v6469
    %6682 = vmatpush1.bf16.msra.mxu0 %v6468
    %6683 = vmatprep.subr.bf16.mxu0 %v6473
    %6684 = vmatpush1.bf16.msra.mxu0 %v6472
    %6685 = vmatprep.subr.bf16.mxu0 %v6477
    %6686 = vmatpush1.bf16.msra.mxu0 %v6476
    %6687 = vmatprep.subr.bf16.mxu0 %v6481
    %6688 = vmatpush1.bf16.msra.mxu0 %v6480
    %6689 = vmatprep.subr.bf16.mxu0 %v6485
    %6690 = vmatpush1.bf16.msra.mxu0 %v6484
    %6691 = vmatprep.mubr.bf16.mxu0 %v218
    %6692 = vmatmul.mubr.bf16.gmra.mrb[0].mxu0 %v217
    %v6693 = vpop.f32.mrb[0].mxu0
    %v6694 = vadd.f32 %v6651, %v6693
    %v6695 = vpop.f32.mrb[0].mxu0
    %v6696 = vadd.f32 %v6653, %v6695
    %v6697 = vpop.f32.mrb[0].mxu0
    %v6698 = vadd.f32 %v6655, %v6697
    %v6699 = vpop.f32.mrb[0].mxu0
    %v6700 = vadd.f32 %v6657, %v6699
    %6701 = vdwg.mxu0
    %6702 = vmatprep.subr.bf16.mxu0 %v6363
    %6703 = vmatpush1.bf16.msra.mxu0 %v6362
    %6704 = vmatprep.subr.bf16.mxu0 %v6367
    %6705 = vmatpush1.bf16.msra.mxu0 %v6366
    %6706 = vmatprep.subr.bf16.mxu0 %v6371
    %6707 = vmatpush1.bf16.msra.mxu0 %v6370
    %6708 = vmatprep.subr.bf16.mxu0 %v6375
    %6709 = vmatpush1.bf16.msra.mxu0 %v6374
    %6710 = vmatprep.subr.bf16.mxu0 %v6379
    %6711 = vmatpush1.bf16.msra.mxu0 %v6378
    %6712 = vmatprep.subr.bf16.mxu0 %v6383
    %6713 = vmatpush1.bf16.msra.mxu0 %v6382
    %6714 = vmatprep.subr.bf16.mxu0 %v6387
    %6715 = vmatpush1.bf16.msra.mxu0 %v6386
    %6716 = vmatprep.subr.bf16.mxu0 %v6391
    %6717 = vmatpush1.bf16.msra.mxu0 %v6390
    %6718 = vmatprep.subr.bf16.mxu0 %v6395
    %6719 = vmatpush1.bf16.msra.mxu0 %v6394
    %6720 = vmatprep.subr.bf16.mxu0 %v6399
    %6721 = vmatpush1.bf16.msra.mxu0 %v6398
    %6722 = vmatprep.subr.bf16.mxu0 %v6403
    %6723 = vmatpush1.bf16.msra.mxu0 %v6402
    %6724 = vmatprep.subr.bf16.mxu0 %v6407
    %6725 = vmatpush1.bf16.msra.mxu0 %v6406
    %6726 = vmatprep.subr.bf16.mxu0 %v6411
    %6727 = vmatpush1.bf16.msra.mxu0 %v6410
    %6728 = vmatprep.subr.bf16.mxu0 %v6415
    %6729 = vmatpush1.bf16.msra.mxu0 %v6414
    %6730 = vmatprep.subr.bf16.mxu0 %v6419
    %6731 = vmatpush1.bf16.msra.mxu0 %v6418
    %6732 = vmatprep.subr.bf16.mxu0 %v6423
    %6733 = vmatpush1.bf16.msra.mxu0 %v6422
    %6734 = vmatprep.mubr.bf16.mxu0 %v216
    %6735 = vmatmul.mubr.bf16.gmra.mrb[0].mxu0 %v215
    %v6736 = vpop.f32.mrb[0].mxu0
    %v6737 = vadd.f32 %v5967, %v6736
    %v6738 = vpop.f32.mrb[0].mxu0
    %v6739 = vadd.f32 %v5971, %v6738
    %v6740 = vpop.f32.mrb[0].mxu0
    %v6741 = vadd.f32 %v5967, %v6740
    %v6742 = vpop.f32.mrb[0].mxu0
    %v6743 = vadd.f32 %v5971, %v6742
    %6744 = vdwg.mxu0
    %6745 = vmatprep.subr.bf16.mxu0 %v6427
    %6746 = vmatpush1.bf16.msra.mxu0 %v6426
    %6747 = vmatprep.subr.bf16.mxu0 %v6431
    %6748 = vmatpush1.bf16.msra.mxu0 %v6430
    %6749 = vmatprep.subr.bf16.mxu0 %v6435
    %6750 = vmatpush1.bf16.msra.mxu0 %v6434
    %6751 = vmatprep.subr.bf16.mxu0 %v6439
    %6752 = vmatpush1.bf16.msra.mxu0 %v6438
    %6753 = vmatprep.subr.bf16.mxu0 %v6443
    %6754 = vmatpush1.bf16.msra.mxu0 %v6442
    %6755 = vmatprep.subr.bf16.mxu0 %v6447
    %6756 = vmatpush1.bf16.msra.mxu0 %v6446
    %6757 = vmatprep.subr.bf16.mxu0 %v6451
    %6758 = vmatpush1.bf16.msra.mxu0 %v6450
    %6759 = vmatprep.subr.bf16.mxu0 %v6455
    %6760 = vmatpush1.bf16.msra.mxu0 %v6454
    %6761 = vmatprep.subr.bf16.mxu0 %v6459
    %6762 = vmatpush1.bf16.msra.mxu0 %v6458
    %6763 = vmatprep.subr.bf16.mxu0 %v6463
    %6764 = vmatpush1.bf16.msra.mxu0 %v6462
    %6765 = vmatprep.subr.bf16.mxu0 %v6467
    %6766 = vmatpush1.bf16.msra.mxu0 %v6466
    %6767 = vmatprep.subr.bf16.mxu0 %v6471
    %6768 = vmatpush1.bf16.msra.mxu0 %v6470
    %6769 = vmatprep.subr.bf16.mxu0 %v6475
    %6770 = vmatpush1.bf16.msra.mxu0 %v6474
    %6771 = vmatprep.subr.bf16.mxu0 %v6479
    %6772 = vmatpush1.bf16.msra.mxu0 %v6478
    %6773 = vmatprep.subr.bf16.mxu0 %v6483
    %6774 = vmatpush1.bf16.msra.mxu0 %v6482
    %6775 = vmatprep.subr.bf16.mxu0 %v6487
    %6776 = vmatpush1.bf16.msra.mxu0 %v6486
    %6777 = vmatprep.mubr.bf16.mxu0 %v218
    %6778 = vmatmul.mubr.bf16.gmra.mrb[0].mxu0 %v217
    %v6779 = vpop.f32.mrb[0].mxu0
    %v6780 = vadd.f32 %v6737, %v6779
    %v6781 = vpop.f32.mrb[0].mxu0
    %v6782 = vadd.f32 %v6739, %v6781
    %v6783 = vpop.f32.mrb[0].mxu0
    %v6784 = vadd.f32 %v6741, %v6783
    %v6785 = vpop.f32.mrb[0].mxu0
    %v6786 = vadd.f32 %v6743, %v6785
    %6787 = vdwg.mxu0
    %v6788 = vmax.f32 %v6694, 0.0
    %v6789 = vmax.f32 %v6696, 0.0
    %v6790 = vmax.f32 %v6780, 0.0
    %v6791 = vmax.f32 %v6782, 0.0
    %v6792 = vmax.f32 %v6698, 0.0
    %v6793 = vmax.f32 %v6700, 0.0
    %v6794 = vmax.f32 %v6784, 0.0
    %v6795 = vmax.f32 %v6786, 0.0
    %v6796 = vpack.c.bf16 %v6792, %v6788
    %v6797 = vpack.c.bf16 %v6793, %v6789
    %v6798 = vpack.c.bf16 %v6794, %v6790
    %v6799 = vpack.c.bf16 %v6795, %v6791
    %v6800 = vld [vmem:[#allocation5 + $0xc00] sm:$0xff]
    %v6801 = vld [vmem:[#allocation5 + $0xc08] sm:$0xff]
    %v6802 = vld [vmem:[#allocation5 + $0xc10] sm:$0xff]
    %v6803 = vld [vmem:[#allocation5 + $0xc18] sm:$0xff]
    %v6804 = vld [vmem:[#allocation5 + $0xc20] sm:$0xff]
    %v6805 = vld [vmem:[#allocation5 + $0xc28] sm:$0xff]
    %v6806 = vld [vmem:[#allocation5 + $0xc30] sm:$0xff]
    %v6807 = vld [vmem:[#allocation5 + $0xc38] sm:$0xff]
    %v6808 = vld [vmem:[#allocation5 + $0xc40] sm:$0xff]
    %v6809 = vld [vmem:[#allocation5 + $0xc48] sm:$0xff]
    %v6810 = vld [vmem:[#allocation5 + $0xc50] sm:$0xff]
    %v6811 = vld [vmem:[#allocation5 + $0xc58] sm:$0xff]
    %v6812 = vld [vmem:[#allocation5 + $0xc60] sm:$0xff]
    %v6813 = vld [vmem:[#allocation5 + $0xc68] sm:$0xff]
    %v6814 = vld [vmem:[#allocation5 + $0xc70] sm:$0xff]
    %v6815 = vld [vmem:[#allocation5 + $0xc78] sm:$0xff]
    %v6816 = vld [vmem:[#allocation5 + $0xc80] sm:$0xff]
    %v6817 = vld [vmem:[#allocation5 + $0xc88] sm:$0xff]
    %v6818 = vld [vmem:[#allocation5 + $0xc90] sm:$0xff]
    %v6819 = vld [vmem:[#allocation5 + $0xc98] sm:$0xff]
    %v6820 = vld [vmem:[#allocation5 + $0xca0] sm:$0xff]
    %v6821 = vld [vmem:[#allocation5 + $0xca8] sm:$0xff]
    %v6822 = vld [vmem:[#allocation5 + $0xcb0] sm:$0xff]
    %v6823 = vld [vmem:[#allocation5 + $0xcb8] sm:$0xff]
    %v6824 = vld [vmem:[#allocation5 + $0xcc0] sm:$0xff]
    %v6825 = vld [vmem:[#allocation5 + $0xcc8] sm:$0xff]
    %v6826 = vld [vmem:[#allocation5 + $0xcd0] sm:$0xff]
    %v6827 = vld [vmem:[#allocation5 + $0xcd8] sm:$0xff]
    %v6828 = vld [vmem:[#allocation5 + $0xce0] sm:$0xff]
    %v6829 = vld [vmem:[#allocation5 + $0xce8] sm:$0xff]
    %v6830 = vld [vmem:[#allocation5 + $0xcf0] sm:$0xff]
    %v6831 = vld [vmem:[#allocation5 + $0xcf8] sm:$0xff]
    %v6832 = vld [vmem:[#allocation5 + $0xd00] sm:$0xff]
    %v6833 = vld [vmem:[#allocation5 + $0xd08] sm:$0xff]
    %v6834 = vld [vmem:[#allocation5 + $0xd10] sm:$0xff]
    %v6835 = vld [vmem:[#allocation5 + $0xd18] sm:$0xff]
    %v6836 = vld [vmem:[#allocation5 + $0xd20] sm:$0xff]
    %v6837 = vld [vmem:[#allocation5 + $0xd28] sm:$0xff]
    %v6838 = vld [vmem:[#allocation5 + $0xd30] sm:$0xff]
    %v6839 = vld [vmem:[#allocation5 + $0xd38] sm:$0xff]
    %v6840 = vld [vmem:[#allocation5 + $0xd40] sm:$0xff]
    %v6841 = vld [vmem:[#allocation5 + $0xd48] sm:$0xff]
    %v6842 = vld [vmem:[#allocation5 + $0xd50] sm:$0xff]
    %v6843 = vld [vmem:[#allocation5 + $0xd58] sm:$0xff]
    %v6844 = vld [vmem:[#allocation5 + $0xd60] sm:$0xff]
    %v6845 = vld [vmem:[#allocation5 + $0xd68] sm:$0xff]
    %v6846 = vld [vmem:[#allocation5 + $0xd70] sm:$0xff]
    %v6847 = vld [vmem:[#allocation5 + $0xd78] sm:$0xff]
    %v6848 = vld [vmem:[#allocation5 + $0xd80] sm:$0xff]
    %v6849 = vld [vmem:[#allocation5 + $0xd88] sm:$0xff]
    %v6850 = vld [vmem:[#allocation5 + $0xd90] sm:$0xff]
    %v6851 = vld [vmem:[#allocation5 + $0xd98] sm:$0xff]
    %v6852 = vld [vmem:[#allocation5 + $0xda0] sm:$0xff]
    %v6853 = vld [vmem:[#allocation5 + $0xda8] sm:$0xff]
    %v6854 = vld [vmem:[#allocation5 + $0xdb0] sm:$0xff]
    %v6855 = vld [vmem:[#allocation5 + $0xdb8] sm:$0xff]
    %v6856 = vld [vmem:[#allocation5 + $0xdc0] sm:$0xff]
    %v6857 = vld [vmem:[#allocation5 + $0xdc8] sm:$0xff]
    %v6858 = vld [vmem:[#allocation5 + $0xdd0] sm:$0xff]
    %v6859 = vld [vmem:[#allocation5 + $0xdd8] sm:$0xff]
    %v6860 = vld [vmem:[#allocation5 + $0xde0] sm:$0xff]
    %v6861 = vld [vmem:[#allocation5 + $0xde8] sm:$0xff]
    %v6862 = vld [vmem:[#allocation5 + $0xdf0] sm:$0xff]
    %v6863 = vld [vmem:[#allocation5 + $0xdf8] sm:$0xff]
    %v6864 = vld [vmem:[#allocation5 + $0xe00] sm:$0xff]
    %v6865 = vld [vmem:[#allocation5 + $0xe08] sm:$0xff]
    %v6866 = vld [vmem:[#allocation5 + $0xe10] sm:$0xff]
    %v6867 = vld [vmem:[#allocation5 + $0xe18] sm:$0xff]
    %v6868 = vld [vmem:[#allocation5 + $0xe20] sm:$0xff]
    %v6869 = vld [vmem:[#allocation5 + $0xe28] sm:$0xff]
    %v6870 = vld [vmem:[#allocation5 + $0xe30] sm:$0xff]
    %v6871 = vld [vmem:[#allocation5 + $0xe38] sm:$0xff]
    %v6872 = vld [vmem:[#allocation5 + $0xe40] sm:$0xff]
    %v6873 = vld [vmem:[#allocation5 + $0xe48] sm:$0xff]
    %v6874 = vld [vmem:[#allocation5 + $0xe50] sm:$0xff]
    %v6875 = vld [vmem:[#allocation5 + $0xe58] sm:$0xff]
    %v6876 = vld [vmem:[#allocation5 + $0xe60] sm:$0xff]
    %v6877 = vld [vmem:[#allocation5 + $0xe68] sm:$0xff]
    %v6878 = vld [vmem:[#allocation5 + $0xe70] sm:$0xff]
    %v6879 = vld [vmem:[#allocation5 + $0xe78] sm:$0xff]
    %v6880 = vld [vmem:[#allocation5 + $0xe80] sm:$0xff]
    %v6881 = vld [vmem:[#allocation5 + $0xe88] sm:$0xff]
    %v6882 = vld [vmem:[#allocation5 + $0xe90] sm:$0xff]
    %v6883 = vld [vmem:[#allocation5 + $0xe98] sm:$0xff]
    %v6884 = vld [vmem:[#allocation5 + $0xea0] sm:$0xff]
    %v6885 = vld [vmem:[#allocation5 + $0xea8] sm:$0xff]
    %v6886 = vld [vmem:[#allocation5 + $0xeb0] sm:$0xff]
    %v6887 = vld [vmem:[#allocation5 + $0xeb8] sm:$0xff]
    %v6888 = vld [vmem:[#allocation5 + $0xec0] sm:$0xff]
    %v6889 = vld [vmem:[#allocation5 + $0xec8] sm:$0xff]
    %v6890 = vld [vmem:[#allocation5 + $0xed0] sm:$0xff]
    %v6891 = vld [vmem:[#allocation5 + $0xed8] sm:$0xff]
    %v6892 = vld [vmem:[#allocation5 + $0xee0] sm:$0xff]
    %v6893 = vld [vmem:[#allocation5 + $0xee8] sm:$0xff]
    %v6894 = vld [vmem:[#allocation5 + $0xef0] sm:$0xff]
    %v6895 = vld [vmem:[#allocation5 + $0xef8] sm:$0xff]
    %v6896 = vld [vmem:[#allocation5 + $0xf00] sm:$0xff]
    %v6897 = vld [vmem:[#allocation5 + $0xf08] sm:$0xff]
    %v6898 = vld [vmem:[#allocation5 + $0xf10] sm:$0xff]
    %v6899 = vld [vmem:[#allocation5 + $0xf18] sm:$0xff]
    %v6900 = vld [vmem:[#allocation5 + $0xf20] sm:$0xff]
    %v6901 = vld [vmem:[#allocation5 + $0xf28] sm:$0xff]
    %v6902 = vld [vmem:[#allocation5 + $0xf30] sm:$0xff]
    %v6903 = vld [vmem:[#allocation5 + $0xf38] sm:$0xff]
    %v6904 = vld [vmem:[#allocation5 + $0xf40] sm:$0xff]
    %v6905 = vld [vmem:[#allocation5 + $0xf48] sm:$0xff]
    %v6906 = vld [vmem:[#allocation5 + $0xf50] sm:$0xff]
    %v6907 = vld [vmem:[#allocation5 + $0xf58] sm:$0xff]
    %v6908 = vld [vmem:[#allocation5 + $0xf60] sm:$0xff]
    %v6909 = vld [vmem:[#allocation5 + $0xf68] sm:$0xff]
    %v6910 = vld [vmem:[#allocation5 + $0xf70] sm:$0xff]
    %v6911 = vld [vmem:[#allocation5 + $0xf78] sm:$0xff]
    %v6912 = vld [vmem:[#allocation5 + $0xf80] sm:$0xff]
    %v6913 = vld [vmem:[#allocation5 + $0xf88] sm:$0xff]
    %v6914 = vld [vmem:[#allocation5 + $0xf90] sm:$0xff]
    %v6915 = vld [vmem:[#allocation5 + $0xf98] sm:$0xff]
    %v6916 = vld [vmem:[#allocation5 + $0xfa0] sm:$0xff]
    %v6917 = vld [vmem:[#allocation5 + $0xfa8] sm:$0xff]
    %v6918 = vld [vmem:[#allocation5 + $0xfb0] sm:$0xff]
    %v6919 = vld [vmem:[#allocation5 + $0xfb8] sm:$0xff]
    %v6920 = vld [vmem:[#allocation5 + $0xfc0] sm:$0xff]
    %v6921 = vld [vmem:[#allocation5 + $0xfc8] sm:$0xff]
    %v6922 = vld [vmem:[#allocation5 + $0xfd0] sm:$0xff]
    %v6923 = vld [vmem:[#allocation5 + $0xfd8] sm:$0xff]
    %v6924 = vld [vmem:[#allocation5 + $0xfe0] sm:$0xff]
    %v6925 = vld [vmem:[#allocation5 + $0xfe8] sm:$0xff]
    %v6926 = vld [vmem:[#allocation5 + $0xff0] sm:$0xff]
    %v6927 = vld [vmem:[#allocation5 + $0xff8] sm:$0xff]
    %v7056 = vunpack.c.l.b16 %v6800
    %v7057 = vunpack.c.h.b16 %v6800
    %v7058 = vunpack.c.l.b16 %v6801
    %v7059 = vunpack.c.h.b16 %v6801
    %v7060 = vunpack.c.l.b16 %v6802
    %v7061 = vunpack.c.h.b16 %v6802
    %v7062 = vunpack.c.l.b16 %v6803
    %v7063 = vunpack.c.h.b16 %v6803
    %v7064 = vunpack.c.l.b16 %v6804
    %v7065 = vunpack.c.h.b16 %v6804
    %v7066 = vunpack.c.l.b16 %v6805
    %v7067 = vunpack.c.h.b16 %v6805
    %v7068 = vunpack.c.l.b16 %v6806
    %v7069 = vunpack.c.h.b16 %v6806
    %v7070 = vunpack.c.l.b16 %v6807
    %v7071 = vunpack.c.h.b16 %v6807
    %v7072 = vunpack.c.l.b16 %v6808
    %v7073 = vunpack.c.h.b16 %v6808
    %v7074 = vunpack.c.l.b16 %v6809
    %v7075 = vunpack.c.h.b16 %v6809
    %v7076 = vunpack.c.l.b16 %v6810
    %v7077 = vunpack.c.h.b16 %v6810
    %v7078 = vunpack.c.l.b16 %v6811
    %v7079 = vunpack.c.h.b16 %v6811
    %v7080 = vunpack.c.l.b16 %v6812
    %v7081 = vunpack.c.h.b16 %v6812
    %v7082 = vunpack.c.l.b16 %v6813
    %v7083 = vunpack.c.h.b16 %v6813
    %v7084 = vunpack.c.l.b16 %v6814
    %v7085 = vunpack.c.h.b16 %v6814
    %v7086 = vunpack.c.l.b16 %v6815
    %v7087 = vunpack.c.h.b16 %v6815
    %v7088 = vunpack.c.l.b16 %v6816
    %v7089 = vunpack.c.h.b16 %v6816
    %v7090 = vunpack.c.l.b16 %v6817
    %v7091 = vunpack.c.h.b16 %v6817
    %v7092 = vunpack.c.l.b16 %v6818
    %v7093 = vunpack.c.h.b16 %v6818
    %v7094 = vunpack.c.l.b16 %v6819
    %v7095 = vunpack.c.h.b16 %v6819
    %v7096 = vunpack.c.l.b16 %v6820
    %v7097 = vunpack.c.h.b16 %v6820
    %v7098 = vunpack.c.l.b16 %v6821
    %v7099 = vunpack.c.h.b16 %v6821
    %v7100 = vunpack.c.l.b16 %v6822
    %v7101 = vunpack.c.h.b16 %v6822
    %v7102 = vunpack.c.l.b16 %v6823
    %v7103 = vunpack.c.h.b16 %v6823
    %v7104 = vunpack.c.l.b16 %v6824
    %v7105 = vunpack.c.h.b16 %v6824
    %v7106 = vunpack.c.l.b16 %v6825
    %v7107 = vunpack.c.h.b16 %v6825
    %v7108 = vunpack.c.l.b16 %v6826
    %v7109 = vunpack.c.h.b16 %v6826
    %v7110 = vunpack.c.l.b16 %v6827
    %v7111 = vunpack.c.h.b16 %v6827
    %v7112 = vunpack.c.l.b16 %v6828
    %v7113 = vunpack.c.h.b16 %v6828
    %v7114 = vunpack.c.l.b16 %v6829
    %v7115 = vunpack.c.h.b16 %v6829
    %v7116 = vunpack.c.l.b16 %v6830
    %v7117 = vunpack.c.h.b16 %v6830
    %v7118 = vunpack.c.l.b16 %v6831
    %v7119 = vunpack.c.h.b16 %v6831
    %v7120 = vunpack.c.l.b16 %v6832
    %v7121 = vunpack.c.h.b16 %v6832
    %v7122 = vunpack.c.l.b16 %v6833
    %v7123 = vunpack.c.h.b16 %v6833
    %v7124 = vunpack.c.l.b16 %v6834
    %v7125 = vunpack.c.h.b16 %v6834
    %v7126 = vunpack.c.l.b16 %v6835
    %v7127 = vunpack.c.h.b16 %v6835
    %v7128 = vunpack.c.l.b16 %v6836
    %v7129 = vunpack.c.h.b16 %v6836
    %v7130 = vunpack.c.l.b16 %v6837
    %v7131 = vunpack.c.h.b16 %v6837
    %v7132 = vunpack.c.l.b16 %v6838
    %v7133 = vunpack.c.h.b16 %v6838
    %v7134 = vunpack.c.l.b16 %v6839
    %v7135 = vunpack.c.h.b16 %v6839
    %v7136 = vunpack.c.l.b16 %v6840
    %v7137 = vunpack.c.h.b16 %v6840
    %v7138 = vunpack.c.l.b16 %v6841
    %v7139 = vunpack.c.h.b16 %v6841
    %v7140 = vunpack.c.l.b16 %v6842
    %v7141 = vunpack.c.h.b16 %v6842
    %v7142 = vunpack.c.l.b16 %v6843
    %v7143 = vunpack.c.h.b16 %v6843
    %v7144 = vunpack.c.l.b16 %v6844
    %v7145 = vunpack.c.h.b16 %v6844
    %v7146 = vunpack.c.l.b16 %v6845
    %v7147 = vunpack.c.h.b16 %v6845
    %v7148 = vunpack.c.l.b16 %v6846
    %v7149 = vunpack.c.h.b16 %v6846
    %v7150 = vunpack.c.l.b16 %v6847
    %v7151 = vunpack.c.h.b16 %v6847
    %v7152 = vunpack.c.l.b16 %v6848
    %v7153 = vunpack.c.h.b16 %v6848
    %v7154 = vunpack.c.l.b16 %v6849
    %v7155 = vunpack.c.h.b16 %v6849
    %v7156 = vunpack.c.l.b16 %v6850
    %v7157 = vunpack.c.h.b16 %v6850
    %v7158 = vunpack.c.l.b16 %v6851
    %v7159 = vunpack.c.h.b16 %v6851
    %v7160 = vunpack.c.l.b16 %v6852
    %v7161 = vunpack.c.h.b16 %v6852
    %v7162 = vunpack.c.l.b16 %v6853
    %v7163 = vunpack.c.h.b16 %v6853
    %v7164 = vunpack.c.l.b16 %v6854
    %v7165 = vunpack.c.h.b16 %v6854
    %v7166 = vunpack.c.l.b16 %v6855
    %v7167 = vunpack.c.h.b16 %v6855
    %v7168 = vunpack.c.l.b16 %v6856
    %v7169 = vunpack.c.h.b16 %v6856
    %v7170 = vunpack.c.l.b16 %v6857
    %v7171 = vunpack.c.h.b16 %v6857
    %v7172 = vunpack.c.l.b16 %v6858
    %v7173 = vunpack.c.h.b16 %v6858
    %v7174 = vunpack.c.l.b16 %v6859
    %v7175 = vunpack.c.h.b16 %v6859
    %v7176 = vunpack.c.l.b16 %v6860
    %v7177 = vunpack.c.h.b16 %v6860
    %v7178 = vunpack.c.l.b16 %v6861
    %v7179 = vunpack.c.h.b16 %v6861
    %v7180 = vunpack.c.l.b16 %v6862
    %v7181 = vunpack.c.h.b16 %v6862
    %v7182 = vunpack.c.l.b16 %v6863
    %v7183 = vunpack.c.h.b16 %v6863
    %v7184 = vunpack.c.l.b16 %v6864
    %v7185 = vunpack.c.h.b16 %v6864
    %v7186 = vunpack.c.l.b16 %v6865
    %v7187 = vunpack.c.h.b16 %v6865
    %v7188 = vunpack.c.l.b16 %v6866
    %v7189 = vunpack.c.h.b16 %v6866
    %v7190 = vunpack.c.l.b16 %v6867
    %v7191 = vunpack.c.h.b16 %v6867
    %v7192 = vunpack.c.l.b16 %v6868
    %v7193 = vunpack.c.h.b16 %v6868
    %v7194 = vunpack.c.l.b16 %v6869
    %v7195 = vunpack.c.h.b16 %v6869
    %v7196 = vunpack.c.l.b16 %v6870
    %v7197 = vunpack.c.h.b16 %v6870
    %v7198 = vunpack.c.l.b16 %v6871
    %v7199 = vunpack.c.h.b16 %v6871
    %v7200 = vunpack.c.l.b16 %v6872
    %v7201 = vunpack.c.h.b16 %v6872
    %v7202 = vunpack.c.l.b16 %v6873
    %v7203 = vunpack.c.h.b16 %v6873
    %v7204 = vunpack.c.l.b16 %v6874
    %v7205 = vunpack.c.h.b16 %v6874
    %v7206 = vunpack.c.l.b16 %v6875
    %v7207 = vunpack.c.h.b16 %v6875
    %v7208 = vunpack.c.l.b16 %v6876
    %v7209 = vunpack.c.h.b16 %v6876
    %v7210 = vunpack.c.l.b16 %v6877
    %v7211 = vunpack.c.h.b16 %v6877
    %v7212 = vunpack.c.l.b16 %v6878
    %v7213 = vunpack.c.h.b16 %v6878
    %v7214 = vunpack.c.l.b16 %v6879
    %v7215 = vunpack.c.h.b16 %v6879
    %v7216 = vunpack.c.l.b16 %v6880
    %v7217 = vunpack.c.h.b16 %v6880
    %v7218 = vunpack.c.l.b16 %v6881
    %v7219 = vunpack.c.h.b16 %v6881
    %v7220 = vunpack.c.l.b16 %v6882
    %v7221 = vunpack.c.h.b16 %v6882
    %v7222 = vunpack.c.l.b16 %v6883
    %v7223 = vunpack.c.h.b16 %v6883
    %v7224 = vunpack.c.l.b16 %v6884
    %v7225 = vunpack.c.h.b16 %v6884
    %v7226 = vunpack.c.l.b16 %v6885
    %v7227 = vunpack.c.h.b16 %v6885
    %v7228 = vunpack.c.l.b16 %v6886
    %v7229 = vunpack.c.h.b16 %v6886
    %v7230 = vunpack.c.l.b16 %v6887
    %v7231 = vunpack.c.h.b16 %v6887
    %v7232 = vunpack.c.l.b16 %v6888
    %v7233 = vunpack.c.h.b16 %v6888
    %v7234 = vunpack.c.l.b16 %v6889
    %v7235 = vunpack.c.h.b16 %v6889
    %v7236 = vunpack.c.l.b16 %v6890
    %v7237 = vunpack.c.h.b16 %v6890
    %v7238 = vunpack.c.l.b16 %v6891
    %v7239 = vunpack.c.h.b16 %v6891
    %v7240 = vunpack.c.l.b16 %v6892
    %v7241 = vunpack.c.h.b16 %v6892
    %v7242 = vunpack.c.l.b16 %v6893
    %v7243 = vunpack.c.h.b16 %v6893
    %v7244 = vunpack.c.l.b16 %v6894
    %v7245 = vunpack.c.h.b16 %v6894
    %v7246 = vunpack.c.l.b16 %v6895
    %v7247 = vunpack.c.h.b16 %v6895
    %v7248 = vunpack.c.l.b16 %v6896
    %v7249 = vunpack.c.h.b16 %v6896
    %v7250 = vunpack.c.l.b16 %v6897
    %v7251 = vunpack.c.h.b16 %v6897
    %v7252 = vunpack.c.l.b16 %v6898
    %v7253 = vunpack.c.h.b16 %v6898
    %v7254 = vunpack.c.l.b16 %v6899
    %v7255 = vunpack.c.h.b16 %v6899
    %v7256 = vunpack.c.l.b16 %v6900
    %v7257 = vunpack.c.h.b16 %v6900
    %v7258 = vunpack.c.l.b16 %v6901
    %v7259 = vunpack.c.h.b16 %v6901
    %v7260 = vunpack.c.l.b16 %v6902
    %v7261 = vunpack.c.h.b16 %v6902
    %v7262 = vunpack.c.l.b16 %v6903
    %v7263 = vunpack.c.h.b16 %v6903
    %v7264 = vunpack.c.l.b16 %v6904
    %v7265 = vunpack.c.h.b16 %v6904
    %v7266 = vunpack.c.l.b16 %v6905
    %v7267 = vunpack.c.h.b16 %v6905
    %v7268 = vunpack.c.l.b16 %v6906
    %v7269 = vunpack.c.h.b16 %v6906
    %v7270 = vunpack.c.l.b16 %v6907
    %v7271 = vunpack.c.h.b16 %v6907
    %v7272 = vunpack.c.l.b16 %v6908
    %v7273 = vunpack.c.h.b16 %v6908
    %v7274 = vunpack.c.l.b16 %v6909
    %v7275 = vunpack.c.h.b16 %v6909
    %v7276 = vunpack.c.l.b16 %v6910
    %v7277 = vunpack.c.h.b16 %v6910
    %v7278 = vunpack.c.l.b16 %v6911
    %v7279 = vunpack.c.h.b16 %v6911
    %v7280 = vunpack.c.l.b16 %v6912
    %v7281 = vunpack.c.h.b16 %v6912
    %v7282 = vunpack.c.l.b16 %v6913
    %v7283 = vunpack.c.h.b16 %v6913
    %v7284 = vunpack.c.l.b16 %v6914
    %v7285 = vunpack.c.h.b16 %v6914
    %v7286 = vunpack.c.l.b16 %v6915
    %v7287 = vunpack.c.h.b16 %v6915
    %v7288 = vunpack.c.l.b16 %v6916
    %v7289 = vunpack.c.h.b16 %v6916
    %v7290 = vunpack.c.l.b16 %v6917
    %v7291 = vunpack.c.h.b16 %v6917
    %v7292 = vunpack.c.l.b16 %v6918
    %v7293 = vunpack.c.h.b16 %v6918
    %v7294 = vunpack.c.l.b16 %v6919
    %v7295 = vunpack.c.h.b16 %v6919
    %v7296 = vunpack.c.l.b16 %v6920
    %v7297 = vunpack.c.h.b16 %v6920
    %v7298 = vunpack.c.l.b16 %v6921
    %v7299 = vunpack.c.h.b16 %v6921
    %v7300 = vunpack.c.l.b16 %v6922
    %v7301 = vunpack.c.h.b16 %v6922
    %v7302 = vunpack.c.l.b16 %v6923
    %v7303 = vunpack.c.h.b16 %v6923
    %v7304 = vunpack.c.l.b16 %v6924
    %v7305 = vunpack.c.h.b16 %v6924
    %v7306 = vunpack.c.l.b16 %v6925
    %v7307 = vunpack.c.h.b16 %v6925
    %v7308 = vunpack.c.l.b16 %v6926
    %v7309 = vunpack.c.h.b16 %v6926
    %v7310 = vunpack.c.l.b16 %v6927
    %v7311 = vunpack.c.h.b16 %v6927
    %v7312 = vpack.c.b16 %v7060, %v7056
    %v7313 = vpack.c.b16 %v7061, %v7057
    %v7314 = vpack.c.b16 %v7062, %v7058
    %v7315 = vpack.c.b16 %v7063, %v7059
    %v7316 = vpack.c.b16 %v7068, %v7064
    %v7317 = vpack.c.b16 %v7069, %v7065
    %v7318 = vpack.c.b16 %v7070, %v7066
    %v7319 = vpack.c.b16 %v7071, %v7067
    %v7320 = vpack.c.b16 %v7076, %v7072
    %v7321 = vpack.c.b16 %v7077, %v7073
    %v7322 = vpack.c.b16 %v7078, %v7074
    %v7323 = vpack.c.b16 %v7079, %v7075
    %v7324 = vpack.c.b16 %v7084, %v7080
    %v7325 = vpack.c.b16 %v7085, %v7081
    %v7326 = vpack.c.b16 %v7086, %v7082
    %v7327 = vpack.c.b16 %v7087, %v7083
    %v7328 = vpack.c.b16 %v7092, %v7088
    %v7329 = vpack.c.b16 %v7093, %v7089
    %v7330 = vpack.c.b16 %v7094, %v7090
    %v7331 = vpack.c.b16 %v7095, %v7091
    %v7332 = vpack.c.b16 %v7100, %v7096
    %v7333 = vpack.c.b16 %v7101, %v7097
    %v7334 = vpack.c.b16 %v7102, %v7098
    %v7335 = vpack.c.b16 %v7103, %v7099
    %v7336 = vpack.c.b16 %v7108, %v7104
    %v7337 = vpack.c.b16 %v7109, %v7105
    %v7338 = vpack.c.b16 %v7110, %v7106
    %v7339 = vpack.c.b16 %v7111, %v7107
    %v7340 = vpack.c.b16 %v7116, %v7112
    %v7341 = vpack.c.b16 %v7117, %v7113
    %v7342 = vpack.c.b16 %v7118, %v7114
    %v7343 = vpack.c.b16 %v7119, %v7115
    %v7344 = vpack.c.b16 %v7124, %v7120
    %v7345 = vpack.c.b16 %v7125, %v7121
    %v7346 = vpack.c.b16 %v7126, %v7122
    %v7347 = vpack.c.b16 %v7127, %v7123
    %v7348 = vpack.c.b16 %v7132, %v7128
    %v7349 = vpack.c.b16 %v7133, %v7129
    %v7350 = vpack.c.b16 %v7134, %v7130
    %v7351 = vpack.c.b16 %v7135, %v7131
    %v7352 = vpack.c.b16 %v7140, %v7136
    %v7353 = vpack.c.b16 %v7141, %v7137
    %v7354 = vpack.c.b16 %v7142, %v7138
    %v7355 = vpack.c.b16 %v7143, %v7139
    %v7356 = vpack.c.b16 %v7148, %v7144
    %v7357 = vpack.c.b16 %v7149, %v7145
    %v7358 = vpack.c.b16 %v7150, %v7146
    %v7359 = vpack.c.b16 %v7151, %v7147
    %v7360 = vpack.c.b16 %v7156, %v7152
    %v7361 = vpack.c.b16 %v7157, %v7153
    %v7362 = vpack.c.b16 %v7158, %v7154
    %v7363 = vpack.c.b16 %v7159, %v7155
    %v7364 = vpack.c.b16 %v7164, %v7160
    %v7365 = vpack.c.b16 %v7165, %v7161
    %v7366 = vpack.c.b16 %v7166, %v7162
    %v7367 = vpack.c.b16 %v7167, %v7163
    %v7368 = vpack.c.b16 %v7172, %v7168
    %v7369 = vpack.c.b16 %v7173, %v7169
    %v7370 = vpack.c.b16 %v7174, %v7170
    %v7371 = vpack.c.b16 %v7175, %v7171
    %v7372 = vpack.c.b16 %v7180, %v7176
    %v7373 = vpack.c.b16 %v7181, %v7177
    %v7374 = vpack.c.b16 %v7182, %v7178
    %v7375 = vpack.c.b16 %v7183, %v7179
    %v7376 = vpack.c.b16 %v7188, %v7184
    %v7377 = vpack.c.b16 %v7189, %v7185
    %v7378 = vpack.c.b16 %v7190, %v7186
    %v7379 = vpack.c.b16 %v7191, %v7187
    %v7380 = vpack.c.b16 %v7196, %v7192
    %v7381 = vpack.c.b16 %v7197, %v7193
    %v7382 = vpack.c.b16 %v7198, %v7194
    %v7383 = vpack.c.b16 %v7199, %v7195
    %v7384 = vpack.c.b16 %v7204, %v7200
    %v7385 = vpack.c.b16 %v7205, %v7201
    %v7386 = vpack.c.b16 %v7206, %v7202
    %v7387 = vpack.c.b16 %v7207, %v7203
    %v7388 = vpack.c.b16 %v7212, %v7208
    %v7389 = vpack.c.b16 %v7213, %v7209
    %v7390 = vpack.c.b16 %v7214, %v7210
    %v7391 = vpack.c.b16 %v7215, %v7211
    %v7392 = vpack.c.b16 %v7220, %v7216
    %v7393 = vpack.c.b16 %v7221, %v7217
    %v7394 = vpack.c.b16 %v7222, %v7218
    %v7395 = vpack.c.b16 %v7223, %v7219
    %v7396 = vpack.c.b16 %v7228, %v7224
    %v7397 = vpack.c.b16 %v7229, %v7225
    %v7398 = vpack.c.b16 %v7230, %v7226
    %v7399 = vpack.c.b16 %v7231, %v7227
    %v7400 = vpack.c.b16 %v7236, %v7232
    %v7401 = vpack.c.b16 %v7237, %v7233
    %v7402 = vpack.c.b16 %v7238, %v7234
    %v7403 = vpack.c.b16 %v7239, %v7235
    %v7404 = vpack.c.b16 %v7244, %v7240
    %v7405 = vpack.c.b16 %v7245, %v7241
    %v7406 = vpack.c.b16 %v7246, %v7242
    %v7407 = vpack.c.b16 %v7247, %v7243
    %v7408 = vpack.c.b16 %v7252, %v7248
    %v7409 = vpack.c.b16 %v7253, %v7249
    %v7410 = vpack.c.b16 %v7254, %v7250
    %v7411 = vpack.c.b16 %v7255, %v7251
    %v7412 = vpack.c.b16 %v7260, %v7256
    %v7413 = vpack.c.b16 %v7261, %v7257
    %v7414 = vpack.c.b16 %v7262, %v7258
    %v7415 = vpack.c.b16 %v7263, %v7259
    %v7416 = vpack.c.b16 %v7268, %v7264
    %v7417 = vpack.c.b16 %v7269, %v7265
    %v7418 = vpack.c.b16 %v7270, %v7266
    %v7419 = vpack.c.b16 %v7271, %v7267
    %v7420 = vpack.c.b16 %v7276, %v7272
    %v7421 = vpack.c.b16 %v7277, %v7273
    %v7422 = vpack.c.b16 %v7278, %v7274
    %v7423 = vpack.c.b16 %v7279, %v7275
    %v7424 = vpack.c.b16 %v7284, %v7280
    %v7425 = vpack.c.b16 %v7285, %v7281
    %v7426 = vpack.c.b16 %v7286, %v7282
    %v7427 = vpack.c.b16 %v7287, %v7283
    %v7428 = vpack.c.b16 %v7292, %v7288
    %v7429 = vpack.c.b16 %v7293, %v7289
    %v7430 = vpack.c.b16 %v7294, %v7290
    %v7431 = vpack.c.b16 %v7295, %v7291
    %v7432 = vpack.c.b16 %v7300, %v7296
    %v7433 = vpack.c.b16 %v7301, %v7297
    %v7434 = vpack.c.b16 %v7302, %v7298
    %v7435 = vpack.c.b16 %v7303, %v7299
    %v7436 = vpack.c.b16 %v7308, %v7304
    %v7437 = vpack.c.b16 %v7309, %v7305
    %v7438 = vpack.c.b16 %v7310, %v7306
    %v7439 = vpack.c.b16 %v7311, %v7307
    %7568 = vmatprep.subr.bf16.mxu0 %v7313
    %7569 = vmatpush1.bf16.msra.mxu0 %v7312
    %7570 = vmatprep.subr.bf16.mxu0 %v7317
    %7571 = vmatpush1.bf16.msra.mxu0 %v7316
    %7572 = vmatprep.subr.bf16.mxu0 %v7321
    %7573 = vmatpush1.bf16.msra.mxu0 %v7320
    %7574 = vmatprep.subr.bf16.mxu0 %v7325
    %7575 = vmatpush1.bf16.msra.mxu0 %v7324
    %7576 = vmatprep.subr.bf16.mxu0 %v7329
    %7577 = vmatpush1.bf16.msra.mxu0 %v7328
    %7578 = vmatprep.subr.bf16.mxu0 %v7333
    %7579 = vmatpush1.bf16.msra.mxu0 %v7332
    %7580 = vmatprep.subr.bf16.mxu0 %v7337
    %7581 = vmatpush1.bf16.msra.mxu0 %v7336
    %7582 = vmatprep.subr.bf16.mxu0 %v7341
    %7583 = vmatpush1.bf16.msra.mxu0 %v7340
    %7584 = vmatprep.subr.bf16.mxu0 %v7345
    %7585 = vmatpush1.bf16.msra.mxu0 %v7344
    %7586 = vmatprep.subr.bf16.mxu0 %v7349
    %7587 = vmatpush1.bf16.msra.mxu0 %v7348
    %7588 = vmatprep.subr.bf16.mxu0 %v7353
    %7589 = vmatpush1.bf16.msra.mxu0 %v7352
    %7590 = vmatprep.subr.bf16.mxu0 %v7357
    %7591 = vmatpush1.bf16.msra.mxu0 %v7356
    %7592 = vmatprep.subr.bf16.mxu0 %v7361
    %7593 = vmatpush1.bf16.msra.mxu0 %v7360
    %7594 = vmatprep.subr.bf16.mxu0 %v7365
    %7595 = vmatpush1.bf16.msra.mxu0 %v7364
    %7596 = vmatprep.subr.bf16.mxu0 %v7369
    %7597 = vmatpush1.bf16.msra.mxu0 %v7368
    %7598 = vmatprep.subr.bf16.mxu0 %v7373
    %7599 = vmatpush1.bf16.msra.mxu0 %v7372
    %7600 = vmatprep.mubr.bf16.mxu0 %v6797
    %7601 = vmatmul.mubr.bf16.gmra.mrb[0].mxu0 %v6796
    %v7602 = vpop.f32.mrb[0].mxu0
    %v7603 = vadd.f32 0.0, %v7602
    %v7604 = vpop.f32.mrb[0].mxu0
    %v7605 = vadd.f32 0.0, %v7604
    %v7606 = vpop.f32.mrb[0].mxu0
    %v7607 = vadd.f32 0.0, %v7606
    %v7608 = vpop.f32.mrb[0].mxu0
    %v7609 = vadd.f32 0.0, %v7608
    %7610 = vdwg.mxu0
    %7611 = vmatprep.subr.bf16.mxu0 %v7377
    %7612 = vmatpush1.bf16.msra.mxu0 %v7376
    %7613 = vmatprep.subr.bf16.mxu0 %v7381
    %7614 = vmatpush1.bf16.msra.mxu0 %v7380
    %7615 = vmatprep.subr.bf16.mxu0 %v7385
    %7616 = vmatpush1.bf16.msra.mxu0 %v7384
    %7617 = vmatprep.subr.bf16.mxu0 %v7389
    %7618 = vmatpush1.bf16.msra.mxu0 %v7388
    %7619 = vmatprep.subr.bf16.mxu0 %v7393
    %7620 = vmatpush1.bf16.msra.mxu0 %v7392
    %7621 = vmatprep.subr.bf16.mxu0 %v7397
    %7622 = vmatpush1.bf16.msra.mxu0 %v7396
    %7623 = vmatprep.subr.bf16.mxu0 %v7401
    %7624 = vmatpush1.bf16.msra.mxu0 %v7400
    %7625 = vmatprep.subr.bf16.mxu0 %v7405
    %7626 = vmatpush1.bf16.msra.mxu0 %v7404
    %7627 = vmatprep.subr.bf16.mxu0 %v7409
    %7628 = vmatpush1.bf16.msra.mxu0 %v7408
    %7629 = vmatprep.subr.bf16.mxu0 %v7413
    %7630 = vmatpush1.bf16.msra.mxu0 %v7412
    %7631 = vmatprep.subr.bf16.mxu0 %v7417
    %7632 = vmatpush1.bf16.msra.mxu0 %v7416
    %7633 = vmatprep.subr.bf16.mxu0 %v7421
    %7634 = vmatpush1.bf16.msra.mxu0 %v7420
    %7635 = vmatprep.subr.bf16.mxu0 %v7425
    %7636 = vmatpush1.bf16.msra.mxu0 %v7424
    %7637 = vmatprep.subr.bf16.mxu0 %v7429
    %7638 = vmatpush1.bf16.msra.mxu0 %v7428
    %7639 = vmatprep.subr.bf16.mxu0 %v7433
    %7640 = vmatpush1.bf16.msra.mxu0 %v7432
    %7641 = vmatprep.subr.bf16.mxu0 %v7437
    %7642 = vmatpush1.bf16.msra.mxu0 %v7436
    %7643 = vmatprep.mubr.bf16.mxu0 %v6799
    %7644 = vmatmul.mubr.bf16.gmra.mrb[0].mxu0 %v6798
    %v7645 = vpop.f32.mrb[0].mxu0
    %v7646 = vadd.f32 %v7603, %v7645
    %v7647 = vpop.f32.mrb[0].mxu0
    %v7648 = vadd.f32 %v7605, %v7647
    %v7649 = vpop.f32.mrb[0].mxu0
    %v7650 = vadd.f32 %v7607, %v7649
    %v7651 = vpop.f32.mrb[0].mxu0
    %v7652 = vadd.f32 %v7609, %v7651
    %7653 = vdwg.mxu0
    %7654 = vmatprep.subr.bf16.mxu0 %v7315
    %7655 = vmatpush1.bf16.msra.mxu0 %v7314
    %7656 = vmatprep.subr.bf16.mxu0 %v7319
    %7657 = vmatpush1.bf16.msra.mxu0 %v7318
    %7658 = vmatprep.subr.bf16.mxu0 %v7323
    %7659 = vmatpush1.bf16.msra.mxu0 %v7322
    %7660 = vmatprep.subr.bf16.mxu0 %v7327
    %7661 = vmatpush1.bf16.msra.mxu0 %v7326
    %7662 = vmatprep.subr.bf16.mxu0 %v7331
    %7663 = vmatpush1.bf16.msra.mxu0 %v7330
    %7664 = vmatprep.subr.bf16.mxu0 %v7335
    %7665 = vmatpush1.bf16.msra.mxu0 %v7334
    %7666 = vmatprep.subr.bf16.mxu0 %v7339
    %7667 = vmatpush1.bf16.msra.mxu0 %v7338
    %7668 = vmatprep.subr.bf16.mxu0 %v7343
    %7669 = vmatpush1.bf16.msra.mxu0 %v7342
    %7670 = vmatprep.subr.bf16.mxu0 %v7347
    %7671 = vmatpush1.bf16.msra.mxu0 %v7346
    %7672 = vmatprep.subr.bf16.mxu0 %v7351
    %7673 = vmatpush1.bf16.msra.mxu0 %v7350
    %7674 = vmatprep.subr.bf16.mxu0 %v7355
    %7675 = vmatpush1.bf16.msra.mxu0 %v7354
    %7676 = vmatprep.subr.bf16.mxu0 %v7359
    %7677 = vmatpush1.bf16.msra.mxu0 %v7358
    %7678 = vmatprep.subr.bf16.mxu0 %v7363
    %7679 = vmatpush1.bf16.msra.mxu0 %v7362
    %7680 = vmatprep.subr.bf16.mxu0 %v7367
    %7681 = vmatpush1.bf16.msra.mxu0 %v7366
    %7682 = vmatprep.subr.bf16.mxu0 %v7371
    %7683 = vmatpush1.bf16.msra.mxu0 %v7370
    %7684 = vmatprep.subr.bf16.mxu0 %v7375
    %7685 = vmatpush1.bf16.msra.mxu0 %v7374
    %7686 = vmatprep.mubr.bf16.mxu0 %v6797
    %7687 = vmatmul.mubr.bf16.gmra.mrb[0].mxu0 %v6796
    %v7688 = vpop.f32.mrb[0].mxu0
    %v7689 = vadd.f32 0.0, %v7688
    %v7690 = vpop.f32.mrb[0].mxu0
    %v7691 = vadd.f32 0.0, %v7690
    %v7692 = vpop.f32.mrb[0].mxu0
    %v7693 = vadd.f32 0.0, %v7692
    %v7694 = vpop.f32.mrb[0].mxu0
    %v7695 = vadd.f32 0.0, %v7694
    %7696 = vdwg.mxu0
    %7697 = vmatprep.subr.bf16.mxu0 %v7379
    %7698 = vmatpush1.bf16.msra.mxu0 %v7378
    %7699 = vmatprep.subr.bf16.mxu0 %v7383
    %7700 = vmatpush1.bf16.msra.mxu0 %v7382
    %7701 = vmatprep.subr.bf16.mxu0 %v7387
    %7702 = vmatpush1.bf16.msra.mxu0 %v7386
    %7703 = vmatprep.subr.bf16.mxu0 %v7391
    %7704 = vmatpush1.bf16.msra.mxu0 %v7390
    %7705 = vmatprep.subr.bf16.mxu0 %v7395
    %7706 = vmatpush1.bf16.msra.mxu0 %v7394
    %7707 = vmatprep.subr.bf16.mxu0 %v7399
    %7708 = vmatpush1.bf16.msra.mxu0 %v7398
    %7709 = vmatprep.subr.bf16.mxu0 %v7403
    %7710 = vmatpush1.bf16.msra.mxu0 %v7402
    %7711 = vmatprep.subr.bf16.mxu0 %v7407
    %7712 = vmatpush1.bf16.msra.mxu0 %v7406
    %7713 = vmatprep.subr.bf16.mxu0 %v7411
    %7714 = vmatpush1.bf16.msra.mxu0 %v7410
    %7715 = vmatprep.subr.bf16.mxu0 %v7415
    %7716 = vmatpush1.bf16.msra.mxu0 %v7414
    %7717 = vmatprep.subr.bf16.mxu0 %v7419
    %7718 = vmatpush1.bf16.msra.mxu0 %v7418
    %7719 = vmatprep.subr.bf16.mxu0 %v7423
    %7720 = vmatpush1.bf16.msra.mxu0 %v7422
    %7721 = vmatprep.subr.bf16.mxu0 %v7427
    %7722 = vmatpush1.bf16.msra.mxu0 %v7426
    %7723 = vmatprep.subr.bf16.mxu0 %v7431
    %7724 = vmatpush1.bf16.msra.mxu0 %v7430
    %7725 = vmatprep.subr.bf16.mxu0 %v7435
    %7726 = vmatpush1.bf16.msra.mxu0 %v7434
    %7727 = vmatprep.subr.bf16.mxu0 %v7439
    %7728 = vmatpush1.bf16.msra.mxu0 %v7438
    %7729 = vmatprep.mubr.bf16.mxu0 %v6799
    %7730 = vmatmul.mubr.bf16.gmra.mrb[0].mxu0 %v6798
    %v7731 = vpop.f32.mrb[0].mxu0
    %v7732 = vadd.f32 %v7689, %v7731
    %v7733 = vpop.f32.mrb[0].mxu0
    %v7734 = vadd.f32 %v7691, %v7733
    %v7735 = vpop.f32.mrb[0].mxu0
    %v7736 = vadd.f32 %v7693, %v7735
    %v7737 = vpop.f32.mrb[0].mxu0
    %v7738 = vadd.f32 %v7695, %v7737
    %7739 = vdwg.mxu0
    %v7740 = vadd.f32 %v5817, %v7646
    %v7741 = vadd.f32 %v5818, %v7648
    %v7742 = vadd.f32 %v5819, %v7732
    %v7743 = vadd.f32 %v5820, %v7734
    %v7744 = vadd.f32 %v5821, %v7650
    %v7745 = vadd.f32 %v5822, %v7652
    %v7746 = vadd.f32 %v5823, %v7736
    %v7747 = vadd.f32 %v5824, %v7738
    %v7748 = vld [vmem:[%s4] ss:$8 sm:$0xf]
    %v7750 = vlaneseq
    %v7751 = vshrl.u32 %v7750, 7
    %v7752 = vsub.s32 0, %v7751
    %v7753 = vrot.slane %v7748, %v7752
    %v7754 = vlaneseq
    %v7755 = vshrl.u32 %v7754, 7
    %v7756 = vsub.s32 1, %v7755
    %v7757 = vrot.slane %v7748, %v7756
    %v7758 = vlaneseq
    %v7759 = vshrl.u32 %v7758, 7
    %v7760 = vsub.s32 2, %v7759
    %v7761 = vrot.slane %v7748, %v7760
    %v7762 = vlaneseq
    %v7763 = vshrl.u32 %v7762, 7
    %v7764 = vsub.s32 3, %v7763
    %v7765 = vrot.slane %v7748, %v7764
    %v7770 = vadd.f32 %v7740, %v7753
    %v7771 = vadd.f32 %v7741, %v7757
    %v7772 = vadd.f32 %v7742, %v7761
    %v7773 = vadd.f32 %v7743, %v7765
    %v7774 = vadd.f32 %v7744, %v7753
    %v7775 = vadd.f32 %v7745, %v7757
    %v7776 = vadd.f32 %v7746, %v7761
    %v7777 = vadd.f32 %v7747, %v7765
    %7778 = vst [vmem:[#allocation7] sm:$0xff] %v7770
    %7779 = vst [vmem:[#allocation7 + $0x8] sm:$0xff] %v7771
    %7780 = vst [vmem:[#allocation7 + $0x10] sm:$0xff] %v7772
    %7781 = vst [vmem:[#allocation7 + $0x18] sm:$0xff] %v7773
    %7782 = vst [vmem:[#allocation7 + $0x20] sm:$0xff] %v7774
    %7783 = vst [vmem:[#allocation7 + $0x28] sm:$0xff] %v7775
    %7784 = vst [vmem:[#allocation7 + $0x30] sm:$0xff] %v7776
    %7785 = vst [vmem:[#allocation7 + $0x38] sm:$0xff] %v7777
    // Predicated region
    $region30: #{feed_forward.1} parent=1 // pred_check
      _
    $region31: #{feed_forward.1} parent=1 // pred_check_branch
      %7787 = sbr.rel (0) target = $region33
    $region32: #{feed_forward.1} parent=1 // pred_region
      %s7789 = ssub.s32 1024, 1024
      %7790 = vsyncadd [#allocation4], %s7789
      %s7791 = sshll.u32 [#allocation7], 4
      %s7792 = int_to_ptr.vmem [resolvable:$true] %s7791
      %7797 = dma.vmem_to_hbm [thread:$0]  %s7792, 1024, %s5, [#allocation4], 512, 512, 32
    $region33: #{feed_forward.1} parent=1 // pred_fallthru
      _
    // Predicated region
    $region34: #{feed_forward.1} parent=1 // pred_check
      _
    $region35: #{feed_forward.1} parent=1 // pred_check_branch
      %7799 = sbr.rel (0) target = $region37
    $region36: #{feed_forward.1} parent=1 // pred_region
      %7800 = dma.done [#allocation4], 1024
    $region37: #{feed_forward.1} parent=1 // pred_fallthru
      _
    %7801 = vsyncpa [#allocation3], 1
    %7802 = vsyncpa [#allocation6], 1
    %7803 = vsyncpa [#allocation4], 1

</llo_original>
